<compile_context>
chip_gen: v7x
topology: tpu7x:2x2x1
jax: 0.10.0
libtpu: 0.0.40
codegen_flags: <defaults>
</compile_context>

<pallas_src>
import functools

import jax
import jax.numpy as jnp
from jax.experimental import pallas as pl
from jax.experimental.pallas import tpu as pltpu

block_size = 128
n_embd = 128


# ----------------------------------------------------------------------------
# Fused kernel: one batch element per grid step.
#   qkv_scratch = x @ Wqkv                 (one (T,C)x(C,3*H*hs) MXU matmul,
#                                           scale pre-folded into q columns)
#   per head h: p    = exp(mask(q k^T) - rowmax)
#               o_h  = (p @ v) * recip(rowsum(p))
#               acc += o_h @ Wp[h*hs:(h+1)*hs, :]
#   out = acc + bp                         (lane-dense (T, C) store)
# ----------------------------------------------------------------------------
def _mha_fused_kernel(x_ref, wqkv_ref, wp_ref, bp_ref, o_ref, qkv_ref, *,
                      num_heads, head_size):
    T = x_ref.shape[1]
    D = num_heads * head_size

    # Single full-width QKV projection for all heads; stage in bf16 VMEM
    # scratch so the unrolled head loop re-loads small slices instead of
    # holding a (T, 3*D) f32 value live (vreg spill).
    qkv_ref[...] = jnp.dot(
        x_ref[0], wqkv_ref[...],
        preferred_element_type=jnp.float32).astype(jnp.bfloat16)

    # Causal mask, shared across heads.
    row = jax.lax.broadcasted_iota(jnp.int32, (T, T), 0)
    col = jax.lax.broadcasted_iota(jnp.int32, (T, T), 1)
    causal = col <= row

    acc = jnp.zeros((T, n_embd), dtype=jnp.float32)

    for h in range(num_heads):                    # H is small; fully unrolled
        lo = h * head_size
        hi = lo + head_size
        q = qkv_ref[:, lo:hi]                     # (T, hs) bf16 (pre-scaled)
        k = qkv_ref[:, D + lo:D + hi]             # (T, hs) bf16
        v = qkv_ref[:, 2 * D + lo:2 * D + hi]     # (T, hs) bf16

        # Contract over head_size directly (no explicit k.T / XLU transpose).
        scores = jax.lax.dot_general(
            q, k, dimension_numbers=(((1,), (1,)), ((), ())),
            preferred_element_type=jnp.float32)               # (T, T) f32
        scores = jnp.where(causal, scores, -jnp.inf)

        # Online-softmax-style: normalize after the (T,hs) matmul, not before.
        m = jnp.max(scores, axis=-1, keepdims=True)
        p = jnp.exp(scores - m)                               # (T, T) f32
        denom = jnp.sum(p, axis=-1, keepdims=True)            # (T, 1)

        o_h = jnp.dot(p.astype(jnp.bfloat16), v,
                      preferred_element_type=jnp.float32)     # (T, hs) f32
        o_h = o_h * pl.reciprocal(denom, approx=True)         # deferred norm

        # Per-head output projection via the sublane-aligned row slice of Wp;
        # avoids the lane-concatenate of four 32-wide head outputs.
        acc = acc + jnp.dot(o_h.astype(jnp.bfloat16), wp_ref[lo:hi, :],
                            preferred_element_type=jnp.float32)

    out = acc + bp_ref[...]
    o_ref[0] = out.astype(o_ref.dtype)


@jax.jit
def multi_head_attention(x, wq, wk, wv, wp, bp):
    """x: (B, T, C); wq/wk/wv: (H, C, hs); wp: (H*hs, C); bp: (C,)."""
    B, T, C = x.shape
    H, _, hs = wq.shape
    D = H * hs
    scale = hs ** -0.5

    # Fuse per-head projection weights into a single (C, 3*D) bf16 matrix,
    # folding the softmax scale into the q columns (free host-side).
    def flatten(w):                               # (H, C, hs) -> (C, H*hs)
        return jnp.transpose(w, (1, 0, 2)).reshape(C, H * hs)

    wqkv = jnp.concatenate(
        [flatten(wq) * scale, flatten(wk), flatten(wv)],
        axis=-1).astype(jnp.bfloat16)                               # (C, 3*D)
    wp_b = wp.astype(jnp.bfloat16)                                  # (D, C)
    bp2 = bp.reshape(1, C).astype(jnp.float32)
    x_b = x.astype(jnp.bfloat16)                  # halve input DMA / VMEM

    kernel = functools.partial(_mha_fused_kernel, num_heads=H, head_size=hs)

    out = pl.pallas_call(
        kernel,
        out_shape=jax.ShapeDtypeStruct((B, T, C), x.dtype),
        grid=(B,),
        in_specs=[
            pl.BlockSpec((1, T, C), lambda b: (b, 0, 0)),
            # Constant block indices -> weights stay resident in VMEM across b.
            pl.BlockSpec((C, 3 * D), lambda b: (0, 0)),
            pl.BlockSpec((D, C), lambda b: (0, 0)),
            pl.BlockSpec((1, C), lambda b: (0, 0)),
        ],
        out_specs=pl.BlockSpec((1, T, C), lambda b: (b, 0, 0)),
        scratch_shapes=[pltpu.VMEM((T, 3 * D), jnp.bfloat16)],
        compiler_params=pltpu.CompilerParams(
            dimension_semantics=("parallel",)),
    )(x_b, wqkv, wp_b, bp2)

    # dropout layers in eval mode -> identity
    return out


def _reference(x, wq, wk, wv, wp, bp):
    """Pure-JAX f32 reference matching the PyTorch forward (dropout in eval)."""
    B, T, C = x.shape
    H, _, hs = wq.shape
    q = jnp.einsum("btc,hcd->bhtd", x, wq)
    k = jnp.einsum("btc,hcd->bhtd", x, wk)
    v = jnp.einsum("btc,hcd->bhtd", x, wv)
    scores = jnp.einsum("bhtd,bhsd->bhts", q, k) * (hs ** -0.5)
    mask = jnp.tril(jnp.ones((T, T), dtype=bool))
    scores = jnp.where(mask, scores, -jnp.inf)
    wei = jax.nn.softmax(scores, axis=-1)
    o = jnp.einsum("bhts,bhsd->bhtd", wei, v)
    o = jnp.transpose(o, (0, 2, 1, 3)).reshape(B, T, H * hs)
    return o @ wp + bp


if __name__ == "__main__":
    B = 2
    T = block_size          # 128 (full context); T <= block_size per the module
    C = n_embd              # 128
    H = 4
    hs = C // H             # 32

    key = jax.random.PRNGKey(0)
    kx, kq, kk, kv, kp, kb = jax.random.split(key, 6)

    x = jax.random.normal(kx, (B, T, C), dtype=jnp.float32)
    # deterministic parameter init (~ torch Linear uniform scale)
    s = 1.0 / (C ** 0.5)
    wq = jax.random.uniform(kq, (H, C, hs), jnp.float32, -s, s)
    wk = jax.random.uniform(kk, (H, C, hs), jnp.float32, -s, s)
    wv = jax.random.uniform(kv, (H, C, hs), jnp.float32, -s, s)
    wp = jax.random.uniform(kp, (H * hs, C), jnp.float32, -s, s)
    bp = jax.random.uniform(kb, (C,), jnp.float32, -s, s)

    out = multi_head_attention(x, wq, wk, wv, wp, bp)
    out = jax.block_until_ready(out)

    ref = _reference(x, wq, wk, wv, wp, bp)
    assert out.shape == (B, T, C), out.shape
    # bf16 matmul operands + approx reciprocal -> relaxed tolerance vs f32 ref.
    assert jnp.allclose(out, ref, atol=2e-2, rtol=2e-2), \
        float(jnp.max(jnp.abs(out - ref)))

    print("KERNEL_OK")
</pallas_src>

<mosaic_0001>
module attributes {stable_mosaic.version = 11 : i64} {
  func.func @_mha_fused_kernel(%arg0: i32, %arg1: memref<1x128x128xbf16, #tpu.memory_space<vmem>>, %arg2: memref<128x384xbf16, #tpu.memory_space<vmem>>, %arg3: memref<128x128xbf16, #tpu.memory_space<vmem>>, %arg4: memref<1x128xf32, #tpu.memory_space<vmem>>, %arg5: memref<1x128x128xf32, #tpu.memory_space<vmem>>, %arg6: memref<128x384xbf16, #tpu.memory_space<vmem>>) attributes {dimension_semantics = [#tpu.dimension_semantics<parallel>], iteration_bounds = array<i64: 2>, scalar_prefetch = 0 : i64, scratch_operands = 1 : i64, tpu.core_type = #tpu.core_type<tc>, window_params = [{transform_indices = @transform_0, window_bounds = array<i64: 1, 128, 128>}, {pipeline_mode = #tpu.pipeline_mode<synchronous>, transform_indices = @transform_1, window_bounds = array<i64: 128, 384>}, {pipeline_mode = #tpu.pipeline_mode<synchronous>, transform_indices = @transform_2, window_bounds = array<i64: 128, 128>}, {pipeline_mode = #tpu.pipeline_mode<synchronous>, transform_indices = @transform_3, window_bounds = array<i64: 1, 128>}, {transform_indices = @transform_4, window_bounds = array<i64: 1, 128, 128>}]} {
    %c0 = arith.constant 0 : index
    %c0_0 = arith.constant 0 : index
    %c0_1 = arith.constant 0 : index
    %0 = vector.load %arg1[%c0, %c0_0, %c0_1] : memref<1x128x128xbf16, #tpu.memory_space<vmem>>, vector<1x128x128xbf16>
    %1 = vector.shape_cast %0 : vector<1x128x128xbf16> to vector<128x128xbf16>
    %c0_2 = arith.constant 0 : index
    %c0_3 = arith.constant 0 : index
    %2 = vector.load %arg2[%c0_2, %c0_3] : memref<128x384xbf16, #tpu.memory_space<vmem>>, vector<128x384xbf16>
    %cst = arith.constant dense<0.000000e+00> : vector<128x384xf32>
    %3 = tpu.matmul %1, %2, %cst {dimension_numbers = #tpu.dot_dimension_numbers<[1], [0], [0], [1], [0, 0, 1, 1], [], []>} : vector<128x128xbf16>, vector<128x384xbf16>, vector<128x384xf32> -> vector<128x384xf32>
    %4 = arith.truncf %3 : vector<128x384xf32> to vector<128x384xbf16>
    %c0_4 = arith.constant 0 : index
    %c0_5 = arith.constant 0 : index
    %5 = vector.load %arg6[%c0_4, %c0_5] : memref<128x384xbf16, #tpu.memory_space<vmem>>, vector<128x384xbf16>
    tpu.vector_store %arg6[%c0_4, %c0_5], %4 {strides = array<i32>} : memref<128x384xbf16, #tpu.memory_space<vmem>>, vector<128x384xbf16>,
    %6 = tpu.iota {dimensions = array<i32: 0>} : vector<128x128xi32>
    %7 = tpu.iota {dimensions = array<i32: 1>} : vector<128x128xi32>
    %8 = arith.cmpi sle, %7, %6 : vector<128x128xi32>
    %cst_6 = arith.constant 0.000000e+00 : f32
    %9 = vector.broadcast %cst_6 : f32 to vector<128x128xf32>
    %c0_7 = arith.constant 0 : index
    %c0_8 = arith.constant 0 : index
    %10 = vector.load %arg6[%c0_7, %c0_8] : memref<128x384xbf16, #tpu.memory_space<vmem>>, vector<128x32xbf16>
    %c0_9 = arith.constant 0 : index
    %c128 = arith.constant 128 : index
    %11 = vector.load %arg6[%c0_9, %c128] : memref<128x384xbf16, #tpu.memory_space<vmem>>, vector<128x32xbf16>
    %c0_10 = arith.constant 0 : index
    %c256 = arith.constant 256 : index
    %12 = vector.load %arg6[%c0_10, %c256] : memref<128x384xbf16, #tpu.memory_space<vmem>>, vector<128x32xbf16>
    %cst_11 = arith.constant dense<0.000000e+00> : vector<128x128xf32>
    %13 = tpu.matmul %10, %11, %cst_11 {dimension_numbers = #tpu.dot_dimension_numbers<[1], [1], [0], [0], [0, 0, 1, 0], [], []>} : vector<128x32xbf16>, vector<128x32xbf16>, vector<128x128xf32> -> vector<128x128xf32>
    %cst_12 = arith.constant 0xFF800000 : f32
    %14 = vector.broadcast %cst_12 : f32 to vector<128x128xf32>
    %15 = arith.select %8, %13, %14 : vector<128x128xi1>, vector<128x128xf32>
    %cst_13 = arith.constant dense<0xFF800000> : vector<128xf32>
    %16 = vector.multi_reduction <maximumf>, %15, %cst_13 [1] : vector<128x128xf32> to vector<128xf32>
    %17 = vector.shape_cast %16 : vector<128xf32> to vector<128x1xf32>
    %18 = vector.broadcast %17 : vector<128x1xf32> to vector<128x128xf32>
    %19 = arith.subf %15, %18 : vector<128x128xf32>
    %20 = math.exp %19 : vector<128x128xf32>
    %cst_14 = arith.constant dense<0.000000e+00> : vector<128xf32>
    %21 = vector.multi_reduction <add>, %20, %cst_14 [1] : vector<128x128xf32> to vector<128xf32>
    %22 = vector.shape_cast %21 : vector<128xf32> to vector<128x1xf32>
    %23 = arith.truncf %20 : vector<128x128xf32> to vector<128x128xbf16>
    %cst_15 = arith.constant dense<0.000000e+00> : vector<128x32xf32>
    %24 = tpu.matmul %23, %12, %cst_15 {dimension_numbers = #tpu.dot_dimension_numbers<[1], [0], [0], [1], [0, 0, 1, 1], [], []>} : vector<128x128xbf16>, vector<128x32xbf16>, vector<128x32xf32> -> vector<128x32xf32>
    %25 = tpu.reciprocal %22 {approx = true} : vector<128x1xf32> -> vector<128x1xf32>
    %26 = vector.broadcast %25 : vector<128x1xf32> to vector<128x32xf32>
    %27 = arith.mulf %24, %26 : vector<128x32xf32>
    %28 = arith.truncf %27 : vector<128x32xf32> to vector<128x32xbf16>
    %c0_16 = arith.constant 0 : index
    %c0_17 = arith.constant 0 : index
    %29 = vector.load %arg3[%c0_16, %c0_17] : memref<128x128xbf16, #tpu.memory_space<vmem>>, vector<32x128xbf16>
    %cst_18 = arith.constant dense<0.000000e+00> : vector<128x128xf32>
    %30 = tpu.matmul %28, %29, %cst_18 {dimension_numbers = #tpu.dot_dimension_numbers<[1], [0], [0], [1], [0, 0, 1, 1], [], []>} : vector<128x32xbf16>, vector<32x128xbf16>, vector<128x128xf32> -> vector<128x128xf32>
    %31 = arith.addf %9, %30 : vector<128x128xf32>
    %c0_19 = arith.constant 0 : index
    %c32 = arith.constant 32 : index
    %32 = vector.load %arg6[%c0_19, %c32] : memref<128x384xbf16, #tpu.memory_space<vmem>>, vector<128x32xbf16>
    %c0_20 = arith.constant 0 : index
    %c160 = arith.constant 160 : index
    %33 = vector.load %arg6[%c0_20, %c160] : memref<128x384xbf16, #tpu.memory_space<vmem>>, vector<128x32xbf16>
    %c0_21 = arith.constant 0 : index
    %c288 = arith.constant 288 : index
    %34 = vector.load %arg6[%c0_21, %c288] : memref<128x384xbf16, #tpu.memory_space<vmem>>, vector<128x32xbf16>
    %cst_22 = arith.constant dense<0.000000e+00> : vector<128x128xf32>
    %35 = tpu.matmul %32, %33, %cst_22 {dimension_numbers = #tpu.dot_dimension_numbers<[1], [1], [0], [0], [0, 0, 1, 0], [], []>} : vector<128x32xbf16>, vector<128x32xbf16>, vector<128x128xf32> -> vector<128x128xf32>
    %cst_23 = arith.constant 0xFF800000 : f32
    %36 = vector.broadcast %cst_23 : f32 to vector<128x128xf32>
    %37 = arith.select %8, %35, %36 : vector<128x128xi1>, vector<128x128xf32>
    %cst_24 = arith.constant dense<0xFF800000> : vector<128xf32>
    %38 = vector.multi_reduction <maximumf>, %37, %cst_24 [1] : vector<128x128xf32> to vector<128xf32>
    %39 = vector.shape_cast %38 : vector<128xf32> to vector<128x1xf32>
    %40 = vector.broadcast %39 : vector<128x1xf32> to vector<128x128xf32>
    %41 = arith.subf %37, %40 : vector<128x128xf32>
    %42 = math.exp %41 : vector<128x128xf32>
    %cst_25 = arith.constant dense<0.000000e+00> : vector<128xf32>
    %43 = vector.multi_reduction <add>, %42, %cst_25 [1] : vector<128x128xf32> to vector<128xf32>
    %44 = vector.shape_cast %43 : vector<128xf32> to vector<128x1xf32>
    %45 = arith.truncf %42 : vector<128x128xf32> to vector<128x128xbf16>
    %cst_26 = arith.constant dense<0.000000e+00> : vector<128x32xf32>
    %46 = tpu.matmul %45, %34, %cst_26 {dimension_numbers = #tpu.dot_dimension_numbers<[1], [0], [0], [1], [0, 0, 1, 1], [], []>} : vector<128x128xbf16>, vector<128x32xbf16>, vector<128x32xf32> -> vector<128x32xf32>
    %47 = tpu.reciprocal %44 {approx = true} : vector<128x1xf32> -> vector<128x1xf32>
    %48 = vector.broadcast %47 : vector<128x1xf32> to vector<128x32xf32>
    %49 = arith.mulf %46, %48 : vector<128x32xf32>
    %50 = arith.truncf %49 : vector<128x32xf32> to vector<128x32xbf16>
    %c32_27 = arith.constant 32 : index
    %c0_28 = arith.constant 0 : index
    %51 = vector.load %arg3[%c32_27, %c0_28] : memref<128x128xbf16, #tpu.memory_space<vmem>>, vector<32x128xbf16>
    %cst_29 = arith.constant dense<0.000000e+00> : vector<128x128xf32>
    %52 = tpu.matmul %50, %51, %cst_29 {dimension_numbers = #tpu.dot_dimension_numbers<[1], [0], [0], [1], [0, 0, 1, 1], [], []>} : vector<128x32xbf16>, vector<32x128xbf16>, vector<128x128xf32> -> vector<128x128xf32>
    %53 = arith.addf %31, %52 : vector<128x128xf32>
    %c0_30 = arith.constant 0 : index
    %c64 = arith.constant 64 : index
    %54 = vector.load %arg6[%c0_30, %c64] : memref<128x384xbf16, #tpu.memory_space<vmem>>, vector<128x32xbf16>
    %c0_31 = arith.constant 0 : index
    %c192 = arith.constant 192 : index
    %55 = vector.load %arg6[%c0_31, %c192] : memref<128x384xbf16, #tpu.memory_space<vmem>>, vector<128x32xbf16>
    %c0_32 = arith.constant 0 : index
    %c320 = arith.constant 320 : index
    %56 = vector.load %arg6[%c0_32, %c320] : memref<128x384xbf16, #tpu.memory_space<vmem>>, vector<128x32xbf16>
    %cst_33 = arith.constant dense<0.000000e+00> : vector<128x128xf32>
    %57 = tpu.matmul %54, %55, %cst_33 {dimension_numbers = #tpu.dot_dimension_numbers<[1], [1], [0], [0], [0, 0, 1, 0], [], []>} : vector<128x32xbf16>, vector<128x32xbf16>, vector<128x128xf32> -> vector<128x128xf32>
    %cst_34 = arith.constant 0xFF800000 : f32
    %58 = vector.broadcast %cst_34 : f32 to vector<128x128xf32>
    %59 = arith.select %8, %57, %58 : vector<128x128xi1>, vector<128x128xf32>
    %cst_35 = arith.constant dense<0xFF800000> : vector<128xf32>
    %60 = vector.multi_reduction <maximumf>, %59, %cst_35 [1] : vector<128x128xf32> to vector<128xf32>
    %61 = vector.shape_cast %60 : vector<128xf32> to vector<128x1xf32>
    %62 = vector.broadcast %61 : vector<128x1xf32> to vector<128x128xf32>
    %63 = arith.subf %59, %62 : vector<128x128xf32>
    %64 = math.exp %63 : vector<128x128xf32>
    %cst_36 = arith.constant dense<0.000000e+00> : vector<128xf32>
    %65 = vector.multi_reduction <add>, %64, %cst_36 [1] : vector<128x128xf32> to vector<128xf32>
    %66 = vector.shape_cast %65 : vector<128xf32> to vector<128x1xf32>
    %67 = arith.truncf %64 : vector<128x128xf32> to vector<128x128xbf16>
    %cst_37 = arith.constant dense<0.000000e+00> : vector<128x32xf32>
    %68 = tpu.matmul %67, %56, %cst_37 {dimension_numbers = #tpu.dot_dimension_numbers<[1], [0], [0], [1], [0, 0, 1, 1], [], []>} : vector<128x128xbf16>, vector<128x32xbf16>, vector<128x32xf32> -> vector<128x32xf32>
    %69 = tpu.reciprocal %66 {approx = true} : vector<128x1xf32> -> vector<128x1xf32>
    %70 = vector.broadcast %69 : vector<128x1xf32> to vector<128x32xf32>
    %71 = arith.mulf %68, %70 : vector<128x32xf32>
    %72 = arith.truncf %71 : vector<128x32xf32> to vector<128x32xbf16>
    %c64_38 = arith.constant 64 : index
    %c0_39 = arith.constant 0 : index
    %73 = vector.load %arg3[%c64_38, %c0_39] : memref<128x128xbf16, #tpu.memory_space<vmem>>, vector<32x128xbf16>
    %cst_40 = arith.constant dense<0.000000e+00> : vector<128x128xf32>
    %74 = tpu.matmul %72, %73, %cst_40 {dimension_numbers = #tpu.dot_dimension_numbers<[1], [0], [0], [1], [0, 0, 1, 1], [], []>} : vector<128x32xbf16>, vector<32x128xbf16>, vector<128x128xf32> -> vector<128x128xf32>
    %75 = arith.addf %53, %74 : vector<128x128xf32>
    %c0_41 = arith.constant 0 : index
    %c96 = arith.constant 96 : index
    %76 = vector.load %arg6[%c0_41, %c96] : memref<128x384xbf16, #tpu.memory_space<vmem>>, vector<128x32xbf16>
    %c0_42 = arith.constant 0 : index
    %c224 = arith.constant 224 : index
    %77 = vector.load %arg6[%c0_42, %c224] : memref<128x384xbf16, #tpu.memory_space<vmem>>, vector<128x32xbf16>
    %c0_43 = arith.constant 0 : index
    %c352 = arith.constant 352 : index
    %78 = vector.load %arg6[%c0_43, %c352] : memref<128x384xbf16, #tpu.memory_space<vmem>>, vector<128x32xbf16>
    %cst_44 = arith.constant dense<0.000000e+00> : vector<128x128xf32>
    %79 = tpu.matmul %76, %77, %cst_44 {dimension_numbers = #tpu.dot_dimension_numbers<[1], [1], [0], [0], [0, 0, 1, 0], [], []>} : vector<128x32xbf16>, vector<128x32xbf16>, vector<128x128xf32> -> vector<128x128xf32>
    %cst_45 = arith.constant 0xFF800000 : f32
    %80 = vector.broadcast %cst_45 : f32 to vector<128x128xf32>
    %81 = arith.select %8, %79, %80 : vector<128x128xi1>, vector<128x128xf32>
    %cst_46 = arith.constant dense<0xFF800000> : vector<128xf32>
    %82 = vector.multi_reduction <maximumf>, %81, %cst_46 [1] : vector<128x128xf32> to vector<128xf32>
    %83 = vector.shape_cast %82 : vector<128xf32> to vector<128x1xf32>
    %84 = vector.broadcast %83 : vector<128x1xf32> to vector<128x128xf32>
    %85 = arith.subf %81, %84 : vector<128x128xf32>
    %86 = math.exp %85 : vector<128x128xf32>
    %cst_47 = arith.constant dense<0.000000e+00> : vector<128xf32>
    %87 = vector.multi_reduction <add>, %86, %cst_47 [1] : vector<128x128xf32> to vector<128xf32>
    %88 = vector.shape_cast %87 : vector<128xf32> to vector<128x1xf32>
    %89 = arith.truncf %86 : vector<128x128xf32> to vector<128x128xbf16>
    %cst_48 = arith.constant dense<0.000000e+00> : vector<128x32xf32>
    %90 = tpu.matmul %89, %78, %cst_48 {dimension_numbers = #tpu.dot_dimension_numbers<[1], [0], [0], [1], [0, 0, 1, 1], [], []>} : vector<128x128xbf16>, vector<128x32xbf16>, vector<128x32xf32> -> vector<128x32xf32>
    %91 = tpu.reciprocal %88 {approx = true} : vector<128x1xf32> -> vector<128x1xf32>
    %92 = vector.broadcast %91 : vector<128x1xf32> to vector<128x32xf32>
    %93 = arith.mulf %90, %92 : vector<128x32xf32>
    %94 = arith.truncf %93 : vector<128x32xf32> to vector<128x32xbf16>
    %c96_49 = arith.constant 96 : index
    %c0_50 = arith.constant 0 : index
    %95 = vector.load %arg3[%c96_49, %c0_50] : memref<128x128xbf16, #tpu.memory_space<vmem>>, vector<32x128xbf16>
    %cst_51 = arith.constant dense<0.000000e+00> : vector<128x128xf32>
    %96 = tpu.matmul %94, %95, %cst_51 {dimension_numbers = #tpu.dot_dimension_numbers<[1], [0], [0], [1], [0, 0, 1, 1], [], []>} : vector<128x32xbf16>, vector<32x128xbf16>, vector<128x128xf32> -> vector<128x128xf32>
    %97 = arith.addf %75, %96 : vector<128x128xf32>
    %c0_52 = arith.constant 0 : index
    %c0_53 = arith.constant 0 : index
    %98 = vector.load %arg4[%c0_52, %c0_53] : memref<1x128xf32, #tpu.memory_space<vmem>>, vector<1x128xf32>
    %99 = vector.broadcast %98 : vector<1x128xf32> to vector<128x128xf32>
    %100 = arith.addf %97, %99 : vector<128x128xf32>
    %c0_54 = arith.constant 0 : index
    %c0_55 = arith.constant 0 : index
    %c0_56 = arith.constant 0 : index
    %101 = vector.load %arg5[%c0_54, %c0_55, %c0_56] : memref<1x128x128xf32, #tpu.memory_space<vmem>>, vector<1x128x128xf32>
    %102 = vector.shape_cast %101 : vector<1x128x128xf32> to vector<128x128xf32>
    %103 = vector.shape_cast %100 : vector<128x128xf32> to vector<1x128x128xf32>
    tpu.vector_store %arg5[%c0_54, %c0_55, %c0_56], %103 {strides = array<i32>} : memref<1x128x128xf32, #tpu.memory_space<vmem>>, vector<1x128x128xf32>,
    return
  }
  func.func @transform_0(%arg0: i32) -> (i32, i32, i32) {
    %c0_i32 = arith.constant 0 : i32
    %c0_i32_0 = arith.constant 0 : i32
    %c0_i32_1 = arith.constant 0 : i32
    return %arg0, %c0_i32, %c0_i32_0 : i32, i32, i32
  }
  func.func @transform_1(%arg0: i32) -> (i32, i32) {
    %c0_i32 = arith.constant 0 : i32
    %c0_i32_0 = arith.constant 0 : i32
    %c0_i32_1 = arith.constant 0 : i32
    return %c0_i32, %c0_i32_0 : i32, i32
  }
  func.func @transform_2(%arg0: i32) -> (i32, i32) {
    %c0_i32 = arith.constant 0 : i32
    %c0_i32_0 = arith.constant 0 : i32
    %c0_i32_1 = arith.constant 0 : i32
    return %c0_i32, %c0_i32_0 : i32, i32
  }
  func.func @transform_3(%arg0: i32) -> (i32, i32) {
    %c0_i32 = arith.constant 0 : i32
    %c0_i32_0 = arith.constant 0 : i32
    %c0_i32_1 = arith.constant 0 : i32
    return %c0_i32, %c0_i32_0 : i32, i32
  }
  func.func @transform_4(%arg0: i32) -> (i32, i32, i32) {
    %c0_i32 = arith.constant 0 : i32
    %c0_i32_0 = arith.constant 0 : i32
    %c0_i32_1 = arith.constant 0 : i32
    return %arg0, %c0_i32, %c0_i32_0 : i32, i32, i32
  }
}

</mosaic_0001>

<llo_original>
// kernel: multi_head_attention.1
$region0: #{multi_head_attention.1}
  #allocation0 [shape = 'u32[]', space=smem, size = 0x4, offset = 0x4, fixed_abs, tag = 'smem constant byte address 0x4 - core index']
  #allocation1 [shape = 'u32[144,128]{1,0:T(1,128)}', space=vmem, size = 0x12000, scoped, tag = 'internal scratch']
  #allocation2 [shape = 'bf16[128,384]{1,0:T(16,128)(2,1)}', space=vmem, size = 0x18000, scoped, tag = 'scratch operand']
  %s0 = inlined_call_operand.vmem [shape: bf16[2,128,128], index: 0, kind: input, shape index: {}]
  %s1 = inlined_call_operand.vmem [shape: bf16[128,384], index: 1, kind: input, shape index: {}]
  %s2 = inlined_call_operand.vmem [shape: bf16[128,128], index: 2, kind: input, shape index: {}]
  %s3 = inlined_call_operand.vmem [shape: f32[1,128], index: 3, kind: input, shape index: {}]
  %s4 = inlined_call_operand.hbm [shape: f32[2,128,128], index: 4, kind: output, shape index: {}]
  %s5 = sld [smem:[#allocation0]]
  $region49: #{multi_head_attention.1} parent=0
    _
  %s7 = ssub.s32 1, %s5
  %s8 = scalar_select 0, %s7, %s5
  $region1: #{multi_head_attention.1} parent=0
    #allocation3 [shape = 'u8[131072]{0}', space=vmem, size = 0x20000, scoped, tag = 'output window, operand 0']
    #allocation4 [shape = 's32[2]{0}', space=sflag, size = 0x8, scoped, tag = 'scoped memory for multi_head_attention.1']
    %9 = vsyncpa [#allocation4], 0
    %s10 = scalar_lea.sflag [#allocation4], 1
    %11 = vsyncpa %s10, 0
    loop: start=0, step=1, limit=4
    $region2: #{multi_head_attention.1} parent=1 // loop_pre_header
      _
    $region3: #{multi_head_attention.1} parent=1 // loop_header
      %s13 = sphi 0, %s17
      %p14 = scmp.ge.s32.totalorder %s13, 4
      %s23 = sphi 0, %s25
      %s26 = sphi 0, %s23
      %s27 = sphi 0, %s26
      %s43 = sphi 0, %s27
      %s47 = sphi 0, %s47
      %s49 = sphi 0, %s47
      %s50 = sphi 0, %s49
      %s64 = sphi 0, %s50
      %s68 = sphi 0, %s68
      %s70 = sphi 0, %s68
      %s71 = sphi 0, %s70
      %s85 = sphi 0, %s71
      %s89 = sphi 0, %s89
      %s91 = sphi 0, %s89
      %s92 = sphi 0, %s91
      %s106 = sphi 0, %s92
      %s112 = sphi 0, %s114
      %s115 = sphi 0, %s112
      %s116 = sphi 0, %s115
      %s132 = sphi 0, %s116
    $region4: #{multi_head_attention.1} parent=1 // loop_header_branch
      %16 = sbr.rel (%p14) target = $region8
    $region5: #{multi_head_attention.1} parent=1 // loop_body
      %s18 = ssub.s32 %s13, 1
      %s19 = ssub.s32 %s13, 2
      %s20 = sadd.s32 %s13, 1
      %s21 = ssub.s32 %s13, %s20
      %p22 = scmp.eq.s32.totalorder %s21, 0
      %s24 = sadd.s32 %s23, 1
      %s25 = scalar_select %p22, %s23, %s24
      %p28 = pneg %p22
      %p29 = scmp.eq.s32.totalorder %s13, 1
      %p30 = por %p28, %p29
      %p31 = scmp.ne.s32.totalorder %s23, %s26
      %p32 = scmp.eq.s32.totalorder %s13, 0
      %p33 = por %p31, %p32
      %p34 = scmp.ne.s32.totalorder %s23, %s26
      %p35 = scmp.eq.s32.totalorder %s18, 1
      %p36 = por %p34, %p35
      %p37 = scmp.ne.s32.totalorder %s26, %s27
      %p38 = scmp.eq.s32.totalorder %s18, 0
      %p39 = por %p37, %p38
      %p40 = scmp.ne.s32.totalorder %s26, %s27
      %p41 = scmp.eq.s32.totalorder %s19, 1
      %p42 = por %p40, %p41
      %p44 = scmp.ne.s32.totalorder %s27, %s43
      %p45 = scmp.eq.s32.totalorder %s19, 0
      %p46 = por %p44, %p45
      %s48 = sadd.s32 %s47, 1
      %p51 = scmp.eq.s32.totalorder %s13, 1
      %p52 = scmp.ne.s32.totalorder %s47, %s49
      %p53 = scmp.eq.s32.totalorder %s13, 0
      %p54 = por %p52, %p53
      %p55 = scmp.ne.s32.totalorder %s47, %s49
      %p56 = scmp.eq.s32.totalorder %s18, 1
      %p57 = por %p55, %p56
      %p58 = scmp.ne.s32.totalorder %s49, %s50
      %p59 = scmp.eq.s32.totalorder %s18, 0
      %p60 = por %p58, %p59
      %p61 = scmp.ne.s32.totalorder %s49, %s50
      %p62 = scmp.eq.s32.totalorder %s19, 1
      %p63 = por %p61, %p62
      %p65 = scmp.ne.s32.totalorder %s50, %s64
      %p66 = scmp.eq.s32.totalorder %s19, 0
      %p67 = por %p65, %p66
      %s69 = sadd.s32 %s68, 1
      %p72 = scmp.eq.s32.totalorder %s13, 1
      %p73 = scmp.ne.s32.totalorder %s68, %s70
      %p74 = scmp.eq.s32.totalorder %s13, 0
      %p75 = por %p73, %p74
      %p76 = scmp.ne.s32.totalorder %s68, %s70
      %p77 = scmp.eq.s32.totalorder %s18, 1
      %p78 = por %p76, %p77
      %p79 = scmp.ne.s32.totalorder %s70, %s71
      %p80 = scmp.eq.s32.totalorder %s18, 0
      %p81 = por %p79, %p80
      %p82 = scmp.ne.s32.totalorder %s70, %s71
      %p83 = scmp.eq.s32.totalorder %s19, 1
      %p84 = por %p82, %p83
      %p86 = scmp.ne.s32.totalorder %s71, %s85
      %p87 = scmp.eq.s32.totalorder %s19, 0
      %p88 = por %p86, %p87
      %s90 = sadd.s32 %s89, 1
      %p93 = scmp.eq.s32.totalorder %s13, 1
      %p94 = scmp.ne.s32.totalorder %s89, %s91
      %p95 = scmp.eq.s32.totalorder %s13, 0
      %p96 = por %p94, %p95
      %p97 = scmp.ne.s32.totalorder %s89, %s91
      %p98 = scmp.eq.s32.totalorder %s18, 1
      %p99 = por %p97, %p98
      %p100 = scmp.ne.s32.totalorder %s91, %s92
      %p101 = scmp.eq.s32.totalorder %s18, 0
      %p102 = por %p100, %p101
      %p103 = scmp.ne.s32.totalorder %s91, %s92
      %p104 = scmp.eq.s32.totalorder %s19, 1
      %p105 = por %p103, %p104
      %p107 = scmp.ne.s32.totalorder %s92, %s106
      %p108 = scmp.eq.s32.totalorder %s19, 0
      %p109 = por %p107, %p108
      %s110 = ssub.s32 %s13, %s20
      %p111 = scmp.eq.s32.totalorder %s110, 0
      %s113 = sadd.s32 %s112, 1
      %s114 = scalar_select %p111, %s112, %s113
      %p117 = pneg %p111
      %p118 = scmp.eq.s32.totalorder %s13, 1
      %p119 = por %p117, %p118
      %p120 = scmp.ne.s32.totalorder %s112, %s115
      %p121 = scmp.eq.s32.totalorder %s13, 0
      %p122 = por %p120, %p121
      %p123 = scmp.ne.s32.totalorder %s112, %s115
      %p124 = scmp.eq.s32.totalorder %s18, 1
      %p125 = por %p123, %p124
      %p126 = scmp.ne.s32.totalorder %s115, %s116
      %p127 = scmp.eq.s32.totalorder %s18, 0
      %p128 = por %p126, %p127
      %p129 = scmp.ne.s32.totalorder %s115, %s116
      %p130 = scmp.eq.s32.totalorder %s19, 1
      %p131 = por %p129, %p130
      %p133 = scmp.ne.s32.totalorder %s116, %s132
      %p134 = scmp.eq.s32.totalorder %s19, 0
      %p135 = por %p133, %p134
      %p136 = scmp.le.s32.totalorder 1, %s13
      %p137 = scmp.lt.s32.totalorder %s13, 3
      %p138 = pnand %p136, %p137
      %p139 = pneg %p138
      // Predicated region
      $region9: #{multi_head_attention.1} parent=5 // pred_check
        _
      $region10: #{multi_head_attention.1} parent=5 // pred_check_branch
        %141 = sbr.rel (%p138) target = $region12
      $region11: #{multi_head_attention.1} parent=5 // pred_region
        %s142 = ssub.s32 %s13, 1
        // Predicated region
        $region13: #{multi_head_attention.1} parent=11 // pred_check
          %p143 = pneg %p60
        $region14: #{multi_head_attention.1} parent=11 // pred_check_branch
          %145 = sbr.rel (%p143) target = $region16
        $region15: #{multi_head_attention.1} parent=11 // pred_region
          _
        $region16: #{multi_head_attention.1} parent=11 // pred_fallthru
          _
        // Predicated region
        $region17: #{multi_head_attention.1} parent=11 // pred_check
          %p146 = pneg %p81
        $region18: #{multi_head_attention.1} parent=11 // pred_check_branch
          %148 = sbr.rel (%p146) target = $region20
        $region19: #{multi_head_attention.1} parent=11 // pred_region
          _
        $region20: #{multi_head_attention.1} parent=11 // pred_fallthru
          _
        // Predicated region
        $region21: #{multi_head_attention.1} parent=11 // pred_check
          %p149 = pneg %p102
        $region22: #{multi_head_attention.1} parent=11 // pred_check_branch
          %151 = sbr.rel (%p149) target = $region24
        $region23: #{multi_head_attention.1} parent=11 // pred_region
          _
        $region24: #{multi_head_attention.1} parent=11 // pred_fallthru
          _
      $region12: #{multi_head_attention.1} parent=5 // pred_fallthru
        _
      %p152 = scmp.lt.s32.totalorder %s13, 2
      // Predicated region
      $region25: #{multi_head_attention.1} parent=5 // pred_check
        %p153 = pneg %p152
      $region26: #{multi_head_attention.1} parent=5 // pred_check_branch
        %155 = sbr.rel (%p153) target = $region28
      $region27: #{multi_head_attention.1} parent=5 // pred_region
        // Predicated region
        $region29: #{multi_head_attention.1} parent=27 // pred_check
          %p156 = pneg %p33
        $region30: #{multi_head_attention.1} parent=27 // pred_check_branch
          %158 = sbr.rel (%p156) target = $region32
        $region31: #{multi_head_attention.1} parent=27 // pred_region
          %p159 = scmp.lt.s32.totalorder %s13, 1
          %s160 = scalar_select %p159, %s13, 1
          %s161 = smul.addr %s160, 16
          %s162 = smul.addr %s161, 4
          %s163 = scalar_lea.vmem %s0, %s162
        $region32: #{multi_head_attention.1} parent=27 // pred_fallthru
          _
      $region28: #{multi_head_attention.1} parent=5 // pred_fallthru
        _
      %p164 = scmp.le.s32.totalorder 1, %s13
      %p165 = scmp.lt.s32.totalorder %s13, 3
      %p166 = pnand %p164, %p165
      %p167 = pneg %p166
      // Predicated region
      $region33: #{multi_head_attention.1} parent=5 // pred_check
        _
      $region34: #{multi_head_attention.1} parent=5 // pred_check_branch
        %169 = sbr.rel (%p166) target = $region36
      $region35: #{multi_head_attention.1} parent=5 // pred_region
        %s170 = ssub.s32 %s13, 1
        %p171 = scmp.lt.s32.totalorder %s18, 1
        %s172 = scalar_select %p171, %s18, 1
        %s173 = smul.addr %s172, 16
        %s174 = smul.addr %s173, 4
        %s175 = scalar_lea.vmem %s0, %s174
        %p176 = pneg %p39
        %p177 = pneg %p36
        %p178 = pneg %p60
        %p179 = pneg %p57
        %p180 = pneg %p81
        %p181 = pneg %p78
        %p182 = pneg %p102
        %p183 = pneg %p99
        %p184 = pneg %p128
        %p185 = pneg %p125
        %s186 = sand.u32 %s115, 1
        %s187 = scalar_lea.sflag [#allocation4], %s186
        %s188 = sand.u32 %s115, 1
        %s189 = smul.addr %s188, 128
        %s190 = scalar_lea.vmem [#allocation3], %s189
        %p191 = scmp.lt.s32.totalorder %s18, 1
        %s192 = scalar_select %p191, %s18, 1
        %s193 = smul.addr %s192, 16
        %s194 = smul.addr %s193, 4
        %s195 = scalar_lea.vmem %s0, %s194
        %v197 = vld [vmem:[%s195] sm:$0xf]
        %v198 = vld [vmem:[%s195 + $0x4] sm:$0xf]
        %v199 = vld [vmem:[%s195 + $0x8] sm:$0xf]
        %v200 = vld [vmem:[%s195 + $0xc] sm:$0xf]
        %v201 = vld [vmem:[%s195 + $0x10] sm:$0xf]
        %v202 = vld [vmem:[%s195 + $0x14] sm:$0xf]
        %v203 = vld [vmem:[%s195 + $0x18] sm:$0xf]
        %v204 = vld [vmem:[%s195 + $0x1c] sm:$0xf]
        %v205 = vld [vmem:[%s195 + $0x20] sm:$0xf]
        %v206 = vld [vmem:[%s195 + $0x24] sm:$0xf]
        %v207 = vld [vmem:[%s195 + $0x28] sm:$0xf]
        %v208 = vld [vmem:[%s195 + $0x2c] sm:$0xf]
        %v209 = vld [vmem:[%s195 + $0x30] sm:$0xf]
        %v210 = vld [vmem:[%s195 + $0x34] sm:$0xf]
        %v211 = vld [vmem:[%s195 + $0x38] sm:$0xf]
        %v212 = vld [vmem:[%s195 + $0x3c] sm:$0xf]
        %v213 = vld [vmem:[%s1] sm:$0xff]
        %v214 = vld [vmem:[%s1 + $0x8] sm:$0xf]
        %v215 = vld [vmem:[%s1 + $0xc] sm:$0xff]
        %v216 = vld [vmem:[%s1 + $0x14] sm:$0xf]
        %v217 = vld [vmem:[%s1 + $0x18] sm:$0xff]
        %v218 = vld [vmem:[%s1 + $0x20] sm:$0xf]
        %v219 = vld [vmem:[%s1 + $0x24] sm:$0xff]
        %v220 = vld [vmem:[%s1 + $0x2c] sm:$0xf]
        %v221 = vld [vmem:[%s1 + $0x30] sm:$0xff]
        %v222 = vld [vmem:[%s1 + $0x38] sm:$0xf]
        %v223 = vld [vmem:[%s1 + $0x3c] sm:$0xff]
        %v224 = vld [vmem:[%s1 + $0x44] sm:$0xf]
        %v225 = vld [vmem:[%s1 + $0x48] sm:$0xff]
        %v226 = vld [vmem:[%s1 + $0x50] sm:$0xf]
        %v227 = vld [vmem:[%s1 + $0x54] sm:$0xff]
        %v228 = vld [vmem:[%s1 + $0x5c] sm:$0xf]
        %v229 = vld [vmem:[%s1 + $0x60] sm:$0xff]
        %v230 = vld [vmem:[%s1 + $0x68] sm:$0xf]
        %v231 = vld [vmem:[%s1 + $0x6c] sm:$0xff]
        %v232 = vld [vmem:[%s1 + $0x74] sm:$0xf]
        %v233 = vld [vmem:[%s1 + $0x78] sm:$0xff]
        %v234 = vld [vmem:[%s1 + $0x80] sm:$0xf]
        %v235 = vld [vmem:[%s1 + $0x84] sm:$0xff]
        %v236 = vld [vmem:[%s1 + $0x8c] sm:$0xf]
        %v237 = vld [vmem:[%s1 + $0x90] sm:$0xff]
        %v238 = vld [vmem:[%s1 + $0x98] sm:$0xf]
        %v239 = vld [vmem:[%s1 + $0x9c] sm:$0xff]
        %v240 = vld [vmem:[%s1 + $0xa4] sm:$0xf]
        %v241 = vld [vmem:[%s1 + $0xa8] sm:$0xff]
        %v242 = vld [vmem:[%s1 + $0xb0] sm:$0xf]
        %v243 = vld [vmem:[%s1 + $0xb4] sm:$0xff]
        %v244 = vld [vmem:[%s1 + $0xbc] sm:$0xf]
        %v261 = vunpack.c.l.b16 %v197
        %v262 = vunpack.c.l.b16 %v198
        %v263 = vunpack.c.l.b16 %v199
        %v264 = vunpack.c.l.b16 %v200
        %v265 = vunpack.c.l.b16 %v201
        %v266 = vunpack.c.l.b16 %v202
        %v267 = vunpack.c.l.b16 %v203
        %v268 = vunpack.c.l.b16 %v204
        %v269 = vunpack.c.l.b16 %v205
        %v270 = vunpack.c.l.b16 %v206
        %v271 = vunpack.c.l.b16 %v207
        %v272 = vunpack.c.l.b16 %v208
        %v273 = vunpack.c.l.b16 %v209
        %v274 = vunpack.c.l.b16 %v210
        %v275 = vunpack.c.l.b16 %v211
        %v276 = vunpack.c.l.b16 %v212
        %v277 = vpack.c.b16 %v262, %v261
        %v278 = vpack.c.b16 %v264, %v263
        %v279 = vpack.c.b16 %v266, %v265
        %v280 = vpack.c.b16 %v268, %v267
        %v281 = vpack.c.b16 %v270, %v269
        %v282 = vpack.c.b16 %v272, %v271
        %v283 = vpack.c.b16 %v274, %v273
        %v284 = vpack.c.b16 %v276, %v275
        %v325 = vunpack.c.l.b16 %v213
        %v326 = vunpack.c.h.b16 %v213
        %v327 = vunpack.c.l.b16 %v214
        %v328 = vunpack.c.l.b16 %v215
        %v329 = vunpack.c.h.b16 %v215
        %v330 = vunpack.c.l.b16 %v216
        %v331 = vunpack.c.l.b16 %v217
        %v332 = vunpack.c.h.b16 %v217
        %v333 = vunpack.c.l.b16 %v218
        %v334 = vunpack.c.l.b16 %v219
        %v335 = vunpack.c.h.b16 %v219
        %v336 = vunpack.c.l.b16 %v220
        %v337 = vunpack.c.l.b16 %v221
        %v338 = vunpack.c.h.b16 %v221
        %v339 = vunpack.c.l.b16 %v222
        %v340 = vunpack.c.l.b16 %v223
        %v341 = vunpack.c.h.b16 %v223
        %v342 = vunpack.c.l.b16 %v224
        %v343 = vunpack.c.l.b16 %v225
        %v344 = vunpack.c.h.b16 %v225
        %v345 = vunpack.c.l.b16 %v226
        %v346 = vunpack.c.l.b16 %v227
        %v347 = vunpack.c.h.b16 %v227
        %v348 = vunpack.c.l.b16 %v228
        %v349 = vunpack.c.l.b16 %v229
        %v350 = vunpack.c.h.b16 %v229
        %v351 = vunpack.c.l.b16 %v230
        %v352 = vunpack.c.l.b16 %v231
        %v353 = vunpack.c.h.b16 %v231
        %v354 = vunpack.c.l.b16 %v232
        %v355 = vunpack.c.l.b16 %v233
        %v356 = vunpack.c.h.b16 %v233
        %v357 = vunpack.c.l.b16 %v234
        %v358 = vunpack.c.l.b16 %v235
        %v359 = vunpack.c.h.b16 %v235
        %v360 = vunpack.c.l.b16 %v236
        %v361 = vunpack.c.l.b16 %v237
        %v362 = vunpack.c.h.b16 %v237
        %v363 = vunpack.c.l.b16 %v238
        %v364 = vunpack.c.l.b16 %v239
        %v365 = vunpack.c.h.b16 %v239
        %v366 = vunpack.c.l.b16 %v240
        %v367 = vunpack.c.l.b16 %v241
        %v368 = vunpack.c.h.b16 %v241
        %v369 = vunpack.c.l.b16 %v242
        %v370 = vunpack.c.l.b16 %v243
        %v371 = vunpack.c.h.b16 %v243
        %v372 = vunpack.c.l.b16 %v244
        %v373 = vpack.c.b16 %v328, %v325
        %v374 = vpack.c.b16 %v329, %v326
        %v375 = vpack.c.b16 %v330, %v327
        %v376 = vpack.c.b16 %v334, %v331
        %v377 = vpack.c.b16 %v335, %v332
        %v378 = vpack.c.b16 %v336, %v333
        %v379 = vpack.c.b16 %v340, %v337
        %v380 = vpack.c.b16 %v341, %v338
        %v381 = vpack.c.b16 %v342, %v339
        %v382 = vpack.c.b16 %v346, %v343
        %v383 = vpack.c.b16 %v347, %v344
        %v384 = vpack.c.b16 %v348, %v345
        %v385 = vpack.c.b16 %v352, %v349
        %v386 = vpack.c.b16 %v353, %v350
        %v387 = vpack.c.b16 %v354, %v351
        %v388 = vpack.c.b16 %v358, %v355
        %v389 = vpack.c.b16 %v359, %v356
        %v390 = vpack.c.b16 %v360, %v357
        %v391 = vpack.c.b16 %v364, %v361
        %v392 = vpack.c.b16 %v365, %v362
        %v393 = vpack.c.b16 %v366, %v363
        %v394 = vpack.c.b16 %v370, %v367
        %v395 = vpack.c.b16 %v371, %v368
        %v396 = vpack.c.b16 %v372, %v369
        %421 = vmatprep.subr.bf16.mxu0 %v374
        %422 = vmatpush1.bf16.msra.mxu0 %v373
        %423 = vmatprep.subr.bf16.mxu0 %v377
        %424 = vmatpush1.bf16.msra.mxu0 %v376
        %425 = vmatprep.subr.bf16.mxu0 %v380
        %426 = vmatpush1.bf16.msra.mxu0 %v379
        %427 = vmatprep.subr.bf16.mxu0 %v383
        %428 = vmatpush1.bf16.msra.mxu0 %v382
        %429 = vmatprep.subr.bf16.mxu0 %v386
        %430 = vmatpush1.bf16.msra.mxu0 %v385
        %431 = vmatprep.subr.bf16.mxu0 %v389
        %432 = vmatpush1.bf16.msra.mxu0 %v388
        %433 = vmatprep.subr.bf16.mxu0 %v392
        %434 = vmatpush1.bf16.msra.mxu0 %v391
        %435 = vmatprep.subr.bf16.mxu0 %v395
        %436 = vmatpush1.bf16.msra.mxu0 %v394
        %437 = vmatprep.subr.bf16.mxu0 0
        %438 = vmatpush1.bf16.msra.mxu0 0
        %439 = vmatprep.subr.bf16.mxu0 0
        %440 = vmatpush1.bf16.msra.mxu0 0
        %441 = vmatprep.subr.bf16.mxu0 0
        %442 = vmatpush1.bf16.msra.mxu0 0
        %443 = vmatprep.subr.bf16.mxu0 0
        %444 = vmatpush1.bf16.msra.mxu0 0
        %445 = vmatprep.subr.bf16.mxu0 0
        %446 = vmatpush1.bf16.msra.mxu0 0
        %447 = vmatprep.subr.bf16.mxu0 0
        %448 = vmatpush1.bf16.msra.mxu0 0
        %449 = vmatprep.subr.bf16.mxu0 0
        %450 = vmatpush1.bf16.msra.mxu0 0
        %451 = vmatprep.subr.bf16.mxu0 0
        %452 = vmatpush1.bf16.msra.mxu0 0
        %453 = vmatprep.mubr.bf16.mxu0 0
        %454 = vmatmul.mubr.bf16.gmra.mrb[0].mxu0 %v277
        %v455 = vpop.f32.mrb[0].mxu0
        %v456 = vadd.f32 0.0, %v455
        %v457 = vpop.f32.mrb[0].mxu0
        %v458 = vadd.f32 0.0, %v457
        %v459 = vpop.f32.mrb[0].mxu0
        %v460 = vadd.f32 0.0, %v459
        %v461 = vpop.f32.mrb[0].mxu0
        %v462 = vadd.f32 0.0, %v461
        %463 = vmatprep.mubr.bf16.mxu0 0
        %464 = vmatmul.mubr.bf16.gmra.mrb[0].mxu0 %v278
        %v465 = vpop.f32.mrb[0].mxu0
        %v466 = vadd.f32 0.0, %v465
        %v467 = vpop.f32.mrb[0].mxu0
        %v468 = vadd.f32 0.0, %v467
        %v469 = vpop.f32.mrb[0].mxu0
        %v470 = vadd.f32 0.0, %v469
        %v471 = vpop.f32.mrb[0].mxu0
        %v472 = vadd.f32 0.0, %v471
        %473 = vmatprep.mubr.bf16.mxu0 0
        %474 = vmatmul.mubr.bf16.gmra.mrb[0].mxu0 %v279
        %v475 = vpop.f32.mrb[0].mxu0
        %v476 = vadd.f32 0.0, %v475
        %v477 = vpop.f32.mrb[0].mxu0
        %v478 = vadd.f32 0.0, %v477
        %v479 = vpop.f32.mrb[0].mxu0
        %v480 = vadd.f32 0.0, %v479
        %v481 = vpop.f32.mrb[0].mxu0
        %v482 = vadd.f32 0.0, %v481
        %483 = vmatprep.mubr.bf16.mxu0 0
        %484 = vmatmul.mubr.bf16.gmra.mrb[0].mxu0 %v280
        %v485 = vpop.f32.mrb[0].mxu0
        %v486 = vadd.f32 0.0, %v485
        %v487 = vpop.f32.mrb[0].mxu0
        %v488 = vadd.f32 0.0, %v487
        %v489 = vpop.f32.mrb[0].mxu0
        %v490 = vadd.f32 0.0, %v489
        %v491 = vpop.f32.mrb[0].mxu0
        %v492 = vadd.f32 0.0, %v491
        %493 = vmatprep.mubr.bf16.mxu0 0
        %494 = vmatmul.mubr.bf16.gmra.mrb[0].mxu0 %v281
        %v495 = vpop.f32.mrb[0].mxu0
        %v496 = vadd.f32 0.0, %v495
        %v497 = vpop.f32.mrb[0].mxu0
        %v498 = vadd.f32 0.0, %v497
        %v499 = vpop.f32.mrb[0].mxu0
        %v500 = vadd.f32 0.0, %v499
        %v501 = vpop.f32.mrb[0].mxu0
        %v502 = vadd.f32 0.0, %v501
        %503 = vmatprep.mubr.bf16.mxu0 0
        %504 = vmatmul.mubr.bf16.gmra.mrb[0].mxu0 %v282
        %v505 = vpop.f32.mrb[0].mxu0
        %v506 = vadd.f32 0.0, %v505
        %v507 = vpop.f32.mrb[0].mxu0
        %v508 = vadd.f32 0.0, %v507
        %v509 = vpop.f32.mrb[0].mxu0
        %v510 = vadd.f32 0.0, %v509
        %v511 = vpop.f32.mrb[0].mxu0
        %v512 = vadd.f32 0.0, %v511
        %513 = vmatprep.mubr.bf16.mxu0 0
        %514 = vmatmul.mubr.bf16.gmra.mrb[0].mxu0 %v283
        %v515 = vpop.f32.mrb[0].mxu0
        %v516 = vadd.f32 0.0, %v515
        %v517 = vpop.f32.mrb[0].mxu0
        %v518 = vadd.f32 0.0, %v517
        %v519 = vpop.f32.mrb[0].mxu0
        %v520 = vadd.f32 0.0, %v519
        %v521 = vpop.f32.mrb[0].mxu0
        %v522 = vadd.f32 0.0, %v521
        %523 = vmatprep.mubr.bf16.mxu0 0
        %524 = vmatmul.mubr.bf16.gmra.mrb[0].mxu0 %v284
        %v525 = vpop.f32.mrb[0].mxu0
        %v526 = vadd.f32 0.0, %v525
        %v527 = vpop.f32.mrb[0].mxu0
        %v528 = vadd.f32 0.0, %v527
        %v529 = vpop.f32.mrb[0].mxu0
        %v530 = vadd.f32 0.0, %v529
        %v531 = vpop.f32.mrb[0].mxu0
        %v532 = vadd.f32 0.0, %v531
        %533 = vdwg.mxu0
        %534 = vmatprep.subr.bf16.mxu0 0
        %535 = vmatpush1.bf16.msra.mxu0 %v375
        %536 = vmatprep.subr.bf16.mxu0 0
        %537 = vmatpush1.bf16.msra.mxu0 %v378
        %538 = vmatprep.subr.bf16.mxu0 0
        %539 = vmatpush1.bf16.msra.mxu0 %v381
        %540 = vmatprep.subr.bf16.mxu0 0
        %541 = vmatpush1.bf16.msra.mxu0 %v384
        %542 = vmatprep.subr.bf16.mxu0 0
        %543 = vmatpush1.bf16.msra.mxu0 %v387
        %544 = vmatprep.subr.bf16.mxu0 0
        %545 = vmatpush1.bf16.msra.mxu0 %v390
        %546 = vmatprep.subr.bf16.mxu0 0
        %547 = vmatpush1.bf16.msra.mxu0 %v393
        %548 = vmatprep.subr.bf16.mxu0 0
        %549 = vmatpush1.bf16.msra.mxu0 %v396
        %550 = vmatprep.subr.bf16.mxu0 0
        %551 = vmatpush1.bf16.msra.mxu0 0
        %552 = vmatprep.subr.bf16.mxu0 0
        %553 = vmatpush1.bf16.msra.mxu0 0
        %554 = vmatprep.subr.bf16.mxu0 0
        %555 = vmatpush1.bf16.msra.mxu0 0
        %556 = vmatprep.subr.bf16.mxu0 0
        %557 = vmatpush1.bf16.msra.mxu0 0
        %558 = vmatprep.subr.bf16.mxu0 0
        %559 = vmatpush1.bf16.msra.mxu0 0
        %560 = vmatprep.subr.bf16.mxu0 0
        %561 = vmatpush1.bf16.msra.mxu0 0
        %562 = vmatprep.subr.bf16.mxu0 0
        %563 = vmatpush1.bf16.msra.mxu0 0
        %564 = vmatprep.subr.bf16.mxu0 0
        %565 = vmatpush1.bf16.msra.mxu0 0
        %566 = vmatprep.mubr.bf16.mxu0 0
        %567 = vmatmul.mubr.bf16.gmra.mrb[0].mxu0 %v277
        %v568 = vpop.f32.mrb[0].mxu0
        %v569 = vadd.f32 0.0, %v568
        %v570 = vpop.f32.mrb[0].mxu0
        %v571 = vpop.f32.mrb[0].mxu0
        %v572 = vadd.f32 0.0, %v571
        %v573 = vpop.f32.mrb[0].mxu0
        %574 = vmatprep.mubr.bf16.mxu0 0
        %575 = vmatmul.mubr.bf16.gmra.mrb[0].mxu0 %v278
        %v576 = vpop.f32.mrb[0].mxu0
        %v577 = vadd.f32 0.0, %v576
        %v578 = vpop.f32.mrb[0].mxu0
        %v579 = vpop.f32.mrb[0].mxu0
        %v580 = vadd.f32 0.0, %v579
        %v581 = vpop.f32.mrb[0].mxu0
        %582 = vmatprep.mubr.bf16.mxu0 0
        %583 = vmatmul.mubr.bf16.gmra.mrb[0].mxu0 %v279
        %v584 = vpop.f32.mrb[0].mxu0
        %v585 = vadd.f32 0.0, %v584
        %v586 = vpop.f32.mrb[0].mxu0
        %v587 = vpop.f32.mrb[0].mxu0
        %v588 = vadd.f32 0.0, %v587
        %v589 = vpop.f32.mrb[0].mxu0
        %590 = vmatprep.mubr.bf16.mxu0 0
        %591 = vmatmul.mubr.bf16.gmra.mrb[0].mxu0 %v280
        %v592 = vpop.f32.mrb[0].mxu0
        %v593 = vadd.f32 0.0, %v592
        %v594 = vpop.f32.mrb[0].mxu0
        %v595 = vpop.f32.mrb[0].mxu0
        %v596 = vadd.f32 0.0, %v595
        %v597 = vpop.f32.mrb[0].mxu0
        %598 = vmatprep.mubr.bf16.mxu0 0
        %599 = vmatmul.mubr.bf16.gmra.mrb[0].mxu0 %v281
        %v600 = vpop.f32.mrb[0].mxu0
        %v601 = vadd.f32 0.0, %v600
        %v602 = vpop.f32.mrb[0].mxu0
        %v603 = vpop.f32.mrb[0].mxu0
        %v604 = vadd.f32 0.0, %v603
        %v605 = vpop.f32.mrb[0].mxu0
        %606 = vmatprep.mubr.bf16.mxu0 0
        %607 = vmatmul.mubr.bf16.gmra.mrb[0].mxu0 %v282
        %v608 = vpop.f32.mrb[0].mxu0
        %v609 = vadd.f32 0.0, %v608
        %v610 = vpop.f32.mrb[0].mxu0
        %v611 = vpop.f32.mrb[0].mxu0
        %v612 = vadd.f32 0.0, %v611
        %v613 = vpop.f32.mrb[0].mxu0
        %614 = vmatprep.mubr.bf16.mxu0 0
        %615 = vmatmul.mubr.bf16.gmra.mrb[0].mxu0 %v283
        %v616 = vpop.f32.mrb[0].mxu0
        %v617 = vadd.f32 0.0, %v616
        %v618 = vpop.f32.mrb[0].mxu0
        %v619 = vpop.f32.mrb[0].mxu0
        %v620 = vadd.f32 0.0, %v619
        %v621 = vpop.f32.mrb[0].mxu0
        %622 = vmatprep.mubr.bf16.mxu0 0
        %623 = vmatmul.mubr.bf16.gmra.mrb[0].mxu0 %v284
        %v624 = vpop.f32.mrb[0].mxu0
        %v625 = vadd.f32 0.0, %v624
        %v626 = vpop.f32.mrb[0].mxu0
        %v627 = vpop.f32.mrb[0].mxu0
        %v628 = vadd.f32 0.0, %v627
        %v629 = vpop.f32.mrb[0].mxu0
        %630 = vdwg.mxu0
        %v631 = vpack.c.bf16 %v460, %v456
        %v632 = vpack.c.bf16 %v462, %v458
        %v633 = vpack.c.bf16 %v572, %v569
        %v634 = vpack.c.bf16 %v470, %v466
        %v635 = vpack.c.bf16 %v472, %v468
        %v636 = vpack.c.bf16 %v580, %v577
        %v637 = vpack.c.bf16 %v480, %v476
        %v638 = vpack.c.bf16 %v482, %v478
        %v639 = vpack.c.bf16 %v588, %v585
        %v640 = vpack.c.bf16 %v490, %v486
        %v641 = vpack.c.bf16 %v492, %v488
        %v642 = vpack.c.bf16 %v596, %v593
        %v643 = vpack.c.bf16 %v500, %v496
        %v644 = vpack.c.bf16 %v502, %v498
        %v645 = vpack.c.bf16 %v604, %v601
        %v646 = vpack.c.bf16 %v510, %v506
        %v647 = vpack.c.bf16 %v512, %v508
        %v648 = vpack.c.bf16 %v612, %v609
        %v649 = vpack.c.bf16 %v520, %v516
        %v650 = vpack.c.bf16 %v522, %v518
        %v651 = vpack.c.bf16 %v620, %v617
        %v652 = vpack.c.bf16 %v530, %v526
        %v653 = vpack.c.bf16 %v532, %v528
        %v654 = vpack.c.bf16 %v628, %v625
        %655 = vst [vmem:[#allocation2] sm:$0xff] %v631
        %656 = vst [vmem:[#allocation2 + $0x8] sm:$0xff] %v632
        %657 = vst [vmem:[#allocation2 + $0x10] sm:$0xff] %v633
        %658 = vst [vmem:[#allocation2 + $0x18] sm:$0xff] %v634
        %659 = vst [vmem:[#allocation2 + $0x20] sm:$0xff] %v635
        %660 = vst [vmem:[#allocation2 + $0x28] sm:$0xff] %v636
        %661 = vst [vmem:[#allocation2 + $0x30] sm:$0xff] %v637
        %662 = vst [vmem:[#allocation2 + $0x38] sm:$0xff] %v638
        %663 = vst [vmem:[#allocation2 + $0x40] sm:$0xff] %v639
        %664 = vst [vmem:[#allocation2 + $0x48] sm:$0xff] %v640
        %665 = vst [vmem:[#allocation2 + $0x50] sm:$0xff] %v641
        %666 = vst [vmem:[#allocation2 + $0x58] sm:$0xff] %v642
        %667 = vst [vmem:[#allocation2 + $0x60] sm:$0xff] %v643
        %668 = vst [vmem:[#allocation2 + $0x68] sm:$0xff] %v644
        %669 = vst [vmem:[#allocation2 + $0x70] sm:$0xff] %v645
        %670 = vst [vmem:[#allocation2 + $0x78] sm:$0xff] %v646
        %671 = vst [vmem:[#allocation2 + $0x80] sm:$0xff] %v647
        %672 = vst [vmem:[#allocation2 + $0x88] sm:$0xff] %v648
        %673 = vst [vmem:[#allocation2 + $0x90] sm:$0xff] %v649
        %674 = vst [vmem:[#allocation2 + $0x98] sm:$0xff] %v650
        %675 = vst [vmem:[#allocation2 + $0xa0] sm:$0xff] %v651
        %676 = vst [vmem:[#allocation2 + $0xa8] sm:$0xff] %v652
        %677 = vst [vmem:[#allocation2 + $0xb0] sm:$0xff] %v653
        %678 = vst [vmem:[#allocation2 + $0xb8] sm:$0xff] %v654
        %v679 = vlaneseq
        %v680 = vshrl.u32 %v679, 7
        %v681 = vadd.s32 %v680, 8
        %v682 = vadd.s32 %v680, 16
        %v683 = vadd.s32 %v680, 24
        %v684 = vadd.s32 %v680, 32
        %v685 = vadd.s32 %v680, 40
        %v686 = vadd.s32 %v680, 48
        %v687 = vadd.s32 %v680, 56
        %v688 = vadd.s32 %v680, 64
        %v689 = vadd.s32 %v680, 72
        %v690 = vadd.s32 %v680, 80
        %v691 = vadd.s32 %v680, 88
        %v692 = vadd.s32 %v680, 96
        %v693 = vadd.s32 %v680, 104
        %v694 = vadd.s32 %v680, 112
        %v695 = vadd.s32 %v680, 120
        %v696 = vlaneseq
        %v697 = vand.u32 %v696, 127
        %vm698 = vcmp.le.s32.totalorder %v697, %v680
        %vm699 = vcmp.le.s32.totalorder %v697, %v681
        %vm700 = vcmp.le.s32.totalorder %v697, %v682
        %vm701 = vcmp.le.s32.totalorder %v697, %v683
        %vm702 = vcmp.le.s32.totalorder %v697, %v684
        %vm703 = vcmp.le.s32.totalorder %v697, %v685
        %vm704 = vcmp.le.s32.totalorder %v697, %v686
        %vm705 = vcmp.le.s32.totalorder %v697, %v687
        %vm706 = vcmp.le.s32.totalorder %v697, %v688
        %vm707 = vcmp.le.s32.totalorder %v697, %v689
        %vm708 = vcmp.le.s32.totalorder %v697, %v690
        %vm709 = vcmp.le.s32.totalorder %v697, %v691
        %vm710 = vcmp.le.s32.totalorder %v697, %v692
        %vm711 = vcmp.le.s32.totalorder %v697, %v693
        %vm712 = vcmp.le.s32.totalorder %v697, %v694
        %vm713 = vcmp.le.s32.totalorder %v697, %v695
        %v714 = vld [vmem:[#allocation2] sm:$0xff]
        %v715 = vld [vmem:[#allocation2 + $0x18] sm:$0xff]
        %v716 = vld [vmem:[#allocation2 + $0x30] sm:$0xff]
        %v717 = vld [vmem:[#allocation2 + $0x48] sm:$0xff]
        %v718 = vld [vmem:[#allocation2 + $0x60] sm:$0xff]
        %v719 = vld [vmem:[#allocation2 + $0x78] sm:$0xff]
        %v720 = vld [vmem:[#allocation2 + $0x90] sm:$0xff]
        %v721 = vld [vmem:[#allocation2 + $0xa8] sm:$0xff]
        %v722 = vld [vmem:[#allocation2 + $0x8] sm:$0xff]
        %v723 = vld [vmem:[#allocation2 + $0x20] sm:$0xff]
        %v724 = vld [vmem:[#allocation2 + $0x38] sm:$0xff]
        %v725 = vld [vmem:[#allocation2 + $0x50] sm:$0xff]
        %v726 = vld [vmem:[#allocation2 + $0x68] sm:$0xff]
        %v727 = vld [vmem:[#allocation2 + $0x80] sm:$0xff]
        %v728 = vld [vmem:[#allocation2 + $0x98] sm:$0xff]
        %v729 = vld [vmem:[#allocation2 + $0xb0] sm:$0xff]
        %v730 = vld [vmem:[#allocation2 + $0x10] sm:$0xff]
        %v731 = vld [vmem:[#allocation2 + $0x28] sm:$0xff]
        %v732 = vld [vmem:[#allocation2 + $0x40] sm:$0xff]
        %v733 = vld [vmem:[#allocation2 + $0x58] sm:$0xff]
        %v734 = vld [vmem:[#allocation2 + $0x70] sm:$0xff]
        %v735 = vld [vmem:[#allocation2 + $0x88] sm:$0xff]
        %v736 = vld [vmem:[#allocation2 + $0xa0] sm:$0xff]
        %v737 = vld [vmem:[#allocation2 + $0xb8] sm:$0xff]
        %vm738 = vcmask 261120
        %v740 = vsel %vm738, %v714, 0
        %v743 = vsel %vm738, %v715, 0
        %v746 = vsel %vm738, %v716, 0
        %v749 = vsel %vm738, %v717, 0
        %v752 = vsel %vm738, %v718, 0
        %v755 = vsel %vm738, %v719, 0
        %v758 = vsel %vm738, %v720, 0
        %v761 = vsel %vm738, %v721, 0
        %v764 = vsel %vm738, %v722, 0
        %v767 = vsel %vm738, %v723, 0
        %v770 = vsel %vm738, %v724, 0
        %v773 = vsel %vm738, %v725, 0
        %v776 = vsel %vm738, %v726, 0
        %v779 = vsel %vm738, %v727, 0
        %v782 = vsel %vm738, %v728, 0
        %v785 = vsel %vm738, %v729, 0
        %787 = vmatprep.subr.bf16.mxu0 0
        %788 = vmatpush1.bf16.xpose.msra.mxu0 %v764
        %789 = vmatprep.subr.bf16.mxu0 0
        %790 = vmatpush1.bf16.xpose.msra.mxu0 %v767
        %791 = vmatprep.subr.bf16.mxu0 0
        %792 = vmatpush1.bf16.xpose.msra.mxu0 %v770
        %793 = vmatprep.subr.bf16.mxu0 0
        %794 = vmatpush1.bf16.xpose.msra.mxu0 %v773
        %795 = vmatprep.subr.bf16.mxu0 0
        %796 = vmatpush1.bf16.xpose.msra.mxu0 %v776
        %797 = vmatprep.subr.bf16.mxu0 0
        %798 = vmatpush1.bf16.xpose.msra.mxu0 %v779
        %799 = vmatprep.subr.bf16.mxu0 0
        %800 = vmatpush1.bf16.xpose.msra.mxu0 %v782
        %801 = vmatprep.subr.bf16.mxu0 0
        %802 = vmatpush1.bf16.xpose.msra.mxu0 %v785
        %803 = vmatprep.subr.bf16.mxu0 0
        %804 = vmatpush1.bf16.xpose.msra.mxu0 0
        %805 = vmatprep.subr.bf16.mxu0 0
        %806 = vmatpush1.bf16.xpose.msra.mxu0 0
        %807 = vmatprep.subr.bf16.mxu0 0
        %808 = vmatpush1.bf16.xpose.msra.mxu0 0
        %809 = vmatprep.subr.bf16.mxu0 0
        %810 = vmatpush1.bf16.xpose.msra.mxu0 0
        %811 = vmatprep.subr.bf16.mxu0 0
        %812 = vmatpush1.bf16.xpose.msra.mxu0 0
        %813 = vmatprep.subr.bf16.mxu0 0
        %814 = vmatpush1.bf16.xpose.msra.mxu0 0
        %815 = vmatprep.subr.bf16.mxu0 0
        %816 = vmatpush1.bf16.xpose.msra.mxu0 0
        %817 = vmatprep.subr.bf16.mxu0 0
        %818 = vmatpush1.bf16.xpose.msra.mxu0 0
        %819 = vmatprep.mubr.bf16.mxu0 0
        %820 = vmatmul.mubr.bf16.gmra.mrb[0].mxu0 %v740
        %v821 = vpop.f32.mrb[0].mxu0
        %v822 = vadd.f32 0.0, %v821
        %v823 = vpop.f32.mrb[0].mxu0
        %v824 = vpop.f32.mrb[0].mxu0
        %v825 = vadd.f32 0.0, %v824
        %v826 = vpop.f32.mrb[0].mxu0
        %827 = vmatprep.mubr.bf16.mxu0 0
        %828 = vmatmul.mubr.bf16.gmra.mrb[0].mxu0 %v743
        %v829 = vpop.f32.mrb[0].mxu0
        %v830 = vadd.f32 0.0, %v829
        %v831 = vpop.f32.mrb[0].mxu0
        %v832 = vpop.f32.mrb[0].mxu0
        %v833 = vadd.f32 0.0, %v832
        %v834 = vpop.f32.mrb[0].mxu0
        %835 = vmatprep.mubr.bf16.mxu0 0
        %836 = vmatmul.mubr.bf16.gmra.mrb[0].mxu0 %v746
        %v837 = vpop.f32.mrb[0].mxu0
        %v838 = vadd.f32 0.0, %v837
        %v839 = vpop.f32.mrb[0].mxu0
        %v840 = vpop.f32.mrb[0].mxu0
        %v841 = vadd.f32 0.0, %v840
        %v842 = vpop.f32.mrb[0].mxu0
        %843 = vmatprep.mubr.bf16.mxu0 0
        %844 = vmatmul.mubr.bf16.gmra.mrb[0].mxu0 %v749
        %v845 = vpop.f32.mrb[0].mxu0
        %v846 = vadd.f32 0.0, %v845
        %v847 = vpop.f32.mrb[0].mxu0
        %v848 = vpop.f32.mrb[0].mxu0
        %v849 = vadd.f32 0.0, %v848
        %v850 = vpop.f32.mrb[0].mxu0
        %851 = vmatprep.mubr.bf16.mxu0 0
        %852 = vmatmul.mubr.bf16.gmra.mrb[0].mxu0 %v752
        %v853 = vpop.f32.mrb[0].mxu0
        %v854 = vadd.f32 0.0, %v853
        %v855 = vpop.f32.mrb[0].mxu0
        %v856 = vpop.f32.mrb[0].mxu0
        %v857 = vadd.f32 0.0, %v856
        %v858 = vpop.f32.mrb[0].mxu0
        %859 = vmatprep.mubr.bf16.mxu0 0
        %860 = vmatmul.mubr.bf16.gmra.mrb[0].mxu0 %v755
        %v861 = vpop.f32.mrb[0].mxu0
        %v862 = vadd.f32 0.0, %v861
        %v863 = vpop.f32.mrb[0].mxu0
        %v864 = vpop.f32.mrb[0].mxu0
        %v865 = vadd.f32 0.0, %v864
        %v866 = vpop.f32.mrb[0].mxu0
        %867 = vmatprep.mubr.bf16.mxu0 0
        %868 = vmatmul.mubr.bf16.gmra.mrb[0].mxu0 %v758
        %v869 = vpop.f32.mrb[0].mxu0
        %v870 = vadd.f32 0.0, %v869
        %v871 = vpop.f32.mrb[0].mxu0
        %v872 = vpop.f32.mrb[0].mxu0
        %v873 = vadd.f32 0.0, %v872
        %v874 = vpop.f32.mrb[0].mxu0
        %875 = vmatprep.mubr.bf16.mxu0 0
        %876 = vmatmul.mubr.bf16.gmra.mrb[0].mxu0 %v761
        %v877 = vpop.f32.mrb[0].mxu0
        %v878 = vadd.f32 0.0, %v877
        %v879 = vpop.f32.mrb[0].mxu0
        %v880 = vpop.f32.mrb[0].mxu0
        %v881 = vadd.f32 0.0, %v880
        %v882 = vpop.f32.mrb[0].mxu0
        %883 = vdwg.mxu0
        %v884 = vsel %vm698, %v822, -inf
        %v885 = vsel %vm699, %v825, -inf
        %v886 = vsel %vm700, %v830, -inf
        %v887 = vsel %vm701, %v833, -inf
        %v888 = vsel %vm702, %v838, -inf
        %v889 = vsel %vm703, %v841, -inf
        %v890 = vsel %vm704, %v846, -inf
        %v891 = vsel %vm705, %v849, -inf
        %v892 = vsel %vm706, %v854, -inf
        %v893 = vsel %vm707, %v857, -inf
        %v894 = vsel %vm708, %v862, -inf
        %v895 = vsel %vm709, %v865, -inf
        %v896 = vsel %vm710, %v870, -inf
        %v897 = vsel %vm711, %v873, -inf
        %v898 = vsel %vm712, %v878, -inf
        %v899 = vsel %vm713, %v881, -inf
        %900 = vmax.xlane.f32.xlu0 %v884
        %v901 = vpop.xlane.xlu0 %900
        %902 = vmax.xlane.f32.xlu0 %v885
        %v903 = vpop.xlane.xlu0 %902
        %904 = vmax.xlane.f32.xlu0 %v886
        %v905 = vpop.xlane.xlu0 %904
        %906 = vmax.xlane.f32.xlu0 %v887
        %v907 = vpop.xlane.xlu0 %906
        %908 = vmax.xlane.f32.xlu0 %v888
        %v909 = vpop.xlane.xlu0 %908
        %910 = vmax.xlane.f32.xlu0 %v889
        %v911 = vpop.xlane.xlu0 %910
        %912 = vmax.xlane.f32.xlu0 %v890
        %v913 = vpop.xlane.xlu0 %912
        %914 = vmax.xlane.f32.xlu0 %v891
        %v915 = vpop.xlane.xlu0 %914
        %916 = vmax.xlane.f32.xlu0 %v892
        %v917 = vpop.xlane.xlu0 %916
        %918 = vmax.xlane.f32.xlu0 %v893
        %v919 = vpop.xlane.xlu0 %918
        %920 = vmax.xlane.f32.xlu0 %v894
        %v921 = vpop.xlane.xlu0 %920
        %922 = vmax.xlane.f32.xlu0 %v895
        %v923 = vpop.xlane.xlu0 %922
        %924 = vmax.xlane.f32.xlu0 %v896
        %v925 = vpop.xlane.xlu0 %924
        %926 = vmax.xlane.f32.xlu0 %v897
        %v927 = vpop.xlane.xlu0 %926
        %928 = vmax.xlane.f32.xlu0 %v898
        %v929 = vpop.xlane.xlu0 %928
        %930 = vmax.xlane.f32.xlu0 %v899
        %v931 = vpop.xlane.xlu0 %930
        %v932 = vsub.f32 %v884, %v901
        %v933 = vsub.f32 %v885, %v903
        %v934 = vsub.f32 %v886, %v905
        %v935 = vsub.f32 %v887, %v907
        %v936 = vsub.f32 %v888, %v909
        %v937 = vsub.f32 %v889, %v911
        %v938 = vsub.f32 %v890, %v913
        %v939 = vsub.f32 %v891, %v915
        %v940 = vsub.f32 %v892, %v917
        %v941 = vsub.f32 %v893, %v919
        %v942 = vsub.f32 %v894, %v921
        %v943 = vsub.f32 %v895, %v923
        %v944 = vsub.f32 %v896, %v925
        %v945 = vsub.f32 %v897, %v927
        %v946 = vsub.f32 %v898, %v929
        %v947 = vsub.f32 %v899, %v931
        %v948 = vmul.f32 %v932, 1.442695
        %v949 = vpow.pop %v948
        %v950 = vmul.f32 %v933, 1.442695
        %v951 = vpow.pop %v950
        %v952 = vmul.f32 %v934, 1.442695
        %v953 = vpow.pop %v952
        %v954 = vmul.f32 %v935, 1.442695
        %v955 = vpow.pop %v954
        %v956 = vmul.f32 %v936, 1.442695
        %v957 = vpow.pop %v956
        %v958 = vmul.f32 %v937, 1.442695
        %v959 = vpow.pop %v958
        %v960 = vmul.f32 %v938, 1.442695
        %v961 = vpow.pop %v960
        %v962 = vmul.f32 %v939, 1.442695
        %v963 = vpow.pop %v962
        %v964 = vmul.f32 %v940, 1.442695
        %v965 = vpow.pop %v964
        %v966 = vmul.f32 %v941, 1.442695
        %v967 = vpow.pop %v966
        %v968 = vmul.f32 %v942, 1.442695
        %v969 = vpow.pop %v968
        %v970 = vmul.f32 %v943, 1.442695
        %v971 = vpow.pop %v970
        %v972 = vmul.f32 %v944, 1.442695
        %v973 = vpow.pop %v972
        %v974 = vmul.f32 %v945, 1.442695
        %v975 = vpow.pop %v974
        %v976 = vmul.f32 %v946, 1.442695
        %v977 = vpow.pop %v976
        %v978 = vmul.f32 %v947, 1.442695
        %v979 = vpow.pop %v978
        %980 = vadd.xlane.f32.xlu0 %v949
        %v981 = vpop.xlane.xlu0 %980
        %982 = vadd.xlane.f32.xlu0 %v951
        %v983 = vpop.xlane.xlu0 %982
        %984 = vadd.xlane.f32.xlu0 %v953
        %v985 = vpop.xlane.xlu0 %984
        %986 = vadd.xlane.f32.xlu0 %v955
        %v987 = vpop.xlane.xlu0 %986
        %988 = vadd.xlane.f32.xlu0 %v957
        %v989 = vpop.xlane.xlu0 %988
        %990 = vadd.xlane.f32.xlu0 %v959
        %v991 = vpop.xlane.xlu0 %990
        %992 = vadd.xlane.f32.xlu0 %v961
        %v993 = vpop.xlane.xlu0 %992
        %994 = vadd.xlane.f32.xlu0 %v963
        %v995 = vpop.xlane.xlu0 %994
        %996 = vadd.xlane.f32.xlu0 %v965
        %v997 = vpop.xlane.xlu0 %996
        %998 = vadd.xlane.f32.xlu0 %v967
        %v999 = vpop.xlane.xlu0 %998
        %1000 = vadd.xlane.f32.xlu0 %v969
        %v1001 = vpop.xlane.xlu0 %1000
        %1002 = vadd.xlane.f32.xlu0 %v971
        %v1003 = vpop.xlane.xlu0 %1002
        %1004 = vadd.xlane.f32.xlu0 %v973
        %v1005 = vpop.xlane.xlu0 %1004
        %1006 = vadd.xlane.f32.xlu0 %v975
        %v1007 = vpop.xlane.xlu0 %1006
        %1008 = vadd.xlane.f32.xlu0 %v977
        %v1009 = vpop.xlane.xlu0 %1008
        %1010 = vadd.xlane.f32.xlu0 %v979
        %v1011 = vpop.xlane.xlu0 %1010
        %v1012 = vpack.c.bf16 %v951, %v949
        %v1013 = vpack.c.bf16 %v955, %v953
        %v1014 = vpack.c.bf16 %v959, %v957
        %v1015 = vpack.c.bf16 %v963, %v961
        %v1016 = vpack.c.bf16 %v967, %v965
        %v1017 = vpack.c.bf16 %v971, %v969
        %v1018 = vpack.c.bf16 %v975, %v973
        %v1019 = vpack.c.bf16 %v979, %v977
        %1020 = vmatprep.subr.bf16.mxu0 0
        %1021 = vmatpush1.bf16.msra.mxu0 %v730
        %1022 = vmatprep.subr.bf16.mxu0 0
        %1023 = vmatpush1.bf16.msra.mxu0 %v731
        %1024 = vmatprep.subr.bf16.mxu0 0
        %1025 = vmatpush1.bf16.msra.mxu0 %v732
        %1026 = vmatprep.subr.bf16.mxu0 0
        %1027 = vmatpush1.bf16.msra.mxu0 %v733
        %1028 = vmatprep.subr.bf16.mxu0 0
        %1029 = vmatpush1.bf16.msra.mxu0 %v734
        %1030 = vmatprep.subr.bf16.mxu0 0
        %1031 = vmatpush1.bf16.msra.mxu0 %v735
        %1032 = vmatprep.subr.bf16.mxu0 0
        %1033 = vmatpush1.bf16.msra.mxu0 %v736
        %1034 = vmatprep.subr.bf16.mxu0 0
        %1035 = vmatpush1.bf16.msra.mxu0 %v737
        %1036 = vmatprep.subr.bf16.mxu0 0
        %1037 = vmatpush1.bf16.msra.mxu0 0
        %1038 = vmatprep.subr.bf16.mxu0 0
        %1039 = vmatpush1.bf16.msra.mxu0 0
        %1040 = vmatprep.subr.bf16.mxu0 0
        %1041 = vmatpush1.bf16.msra.mxu0 0
        %1042 = vmatprep.subr.bf16.mxu0 0
        %1043 = vmatpush1.bf16.msra.mxu0 0
        %1044 = vmatprep.subr.bf16.mxu0 0
        %1045 = vmatpush1.bf16.msra.mxu0 0
        %1046 = vmatprep.subr.bf16.mxu0 0
        %1047 = vmatpush1.bf16.msra.mxu0 0
        %1048 = vmatprep.subr.bf16.mxu0 0
        %1049 = vmatpush1.bf16.msra.mxu0 0
        %1050 = vmatprep.subr.bf16.mxu0 0
        %1051 = vmatpush1.bf16.msra.mxu0 0
        %1052 = vmatprep.mubr.bf16.mxu0 0
        %1053 = vmatmul.mubr.bf16.gmra.mrb[0].mxu0 %v1012
        %v1054 = vpop.f32.mrb[0].mxu0
        %v1055 = vadd.f32 0.0, %v1054
        %v1056 = vpop.f32.mrb[0].mxu0
        %v1057 = vpop.f32.mrb[0].mxu0
        %v1058 = vadd.f32 0.0, %v1057
        %v1059 = vpop.f32.mrb[0].mxu0
        %1060 = vmatprep.mubr.bf16.mxu0 0
        %1061 = vmatmul.mubr.bf16.gmra.mrb[0].mxu0 %v1013
        %v1062 = vpop.f32.mrb[0].mxu0
        %v1063 = vadd.f32 0.0, %v1062
        %v1064 = vpop.f32.mrb[0].mxu0
        %v1065 = vpop.f32.mrb[0].mxu0
        %v1066 = vadd.f32 0.0, %v1065
        %v1067 = vpop.f32.mrb[0].mxu0
        %1068 = vmatprep.mubr.bf16.mxu0 0
        %1069 = vmatmul.mubr.bf16.gmra.mrb[0].mxu0 %v1014
        %v1070 = vpop.f32.mrb[0].mxu0
        %v1071 = vadd.f32 0.0, %v1070
        %v1072 = vpop.f32.mrb[0].mxu0
        %v1073 = vpop.f32.mrb[0].mxu0
        %v1074 = vadd.f32 0.0, %v1073
        %v1075 = vpop.f32.mrb[0].mxu0
        %1076 = vmatprep.mubr.bf16.mxu0 0
        %1077 = vmatmul.mubr.bf16.gmra.mrb[0].mxu0 %v1015
        %v1078 = vpop.f32.mrb[0].mxu0
        %v1079 = vadd.f32 0.0, %v1078
        %v1080 = vpop.f32.mrb[0].mxu0
        %v1081 = vpop.f32.mrb[0].mxu0
        %v1082 = vadd.f32 0.0, %v1081
        %v1083 = vpop.f32.mrb[0].mxu0
        %1084 = vmatprep.mubr.bf16.mxu0 0
        %1085 = vmatmul.mubr.bf16.gmra.mrb[0].mxu0 %v1016
        %v1086 = vpop.f32.mrb[0].mxu0
        %v1087 = vadd.f32 0.0, %v1086
        %v1088 = vpop.f32.mrb[0].mxu0
        %v1089 = vpop.f32.mrb[0].mxu0
        %v1090 = vadd.f32 0.0, %v1089
        %v1091 = vpop.f32.mrb[0].mxu0
        %1092 = vmatprep.mubr.bf16.mxu0 0
        %1093 = vmatmul.mubr.bf16.gmra.mrb[0].mxu0 %v1017
        %v1094 = vpop.f32.mrb[0].mxu0
        %v1095 = vadd.f32 0.0, %v1094
        %v1096 = vpop.f32.mrb[0].mxu0
        %v1097 = vpop.f32.mrb[0].mxu0
        %v1098 = vadd.f32 0.0, %v1097
        %v1099 = vpop.f32.mrb[0].mxu0
        %1100 = vmatprep.mubr.bf16.mxu0 0
        %1101 = vmatmul.mubr.bf16.gmra.mrb[0].mxu0 %v1018
        %v1102 = vpop.f32.mrb[0].mxu0
        %v1103 = vadd.f32 0.0, %v1102
        %v1104 = vpop.f32.mrb[0].mxu0
        %v1105 = vpop.f32.mrb[0].mxu0
        %v1106 = vadd.f32 0.0, %v1105
        %v1107 = vpop.f32.mrb[0].mxu0
        %1108 = vmatprep.mubr.bf16.mxu0 0
        %1109 = vmatmul.mubr.bf16.gmra.mrb[0].mxu0 %v1019
        %v1110 = vpop.f32.mrb[0].mxu0
        %v1111 = vadd.f32 0.0, %v1110
        %v1112 = vpop.f32.mrb[0].mxu0
        %v1113 = vpop.f32.mrb[0].mxu0
        %v1114 = vadd.f32 0.0, %v1113
        %v1115 = vpop.f32.mrb[0].mxu0
        %1116 = vdwg.mxu0
        %v1117 = vrcp.pop %v981
        %v1118 = vrcp.pop %v983
        %v1119 = vrcp.pop %v985
        %v1120 = vrcp.pop %v987
        %v1121 = vrcp.pop %v989
        %v1122 = vrcp.pop %v991
        %v1123 = vrcp.pop %v993
        %v1124 = vrcp.pop %v995
        %v1125 = vrcp.pop %v997
        %v1126 = vrcp.pop %v999
        %v1127 = vrcp.pop %v1001
        %v1128 = vrcp.pop %v1003
        %v1129 = vrcp.pop %v1005
        %v1130 = vrcp.pop %v1007
        %v1131 = vrcp.pop %v1009
        %v1132 = vrcp.pop %v1011
        %v1133 = vmul.f32 %v1055, %v1117
        %v1134 = vmul.f32 %v1058, %v1118
        %v1135 = vmul.f32 %v1063, %v1119
        %v1136 = vmul.f32 %v1066, %v1120
        %v1137 = vmul.f32 %v1071, %v1121
        %v1138 = vmul.f32 %v1074, %v1122
        %v1139 = vmul.f32 %v1079, %v1123
        %v1140 = vmul.f32 %v1082, %v1124
        %v1141 = vmul.f32 %v1087, %v1125
        %v1142 = vmul.f32 %v1090, %v1126
        %v1143 = vmul.f32 %v1095, %v1127
        %v1144 = vmul.f32 %v1098, %v1128
        %v1145 = vmul.f32 %v1103, %v1129
        %v1146 = vmul.f32 %v1106, %v1130
        %v1147 = vmul.f32 %v1111, %v1131
        %v1148 = vmul.f32 %v1114, %v1132
        %v1149 = vpack.c.bf16 %v1134, %v1133
        %v1150 = vpack.c.bf16 %v1136, %v1135
        %v1151 = vpack.c.bf16 %v1138, %v1137
        %v1152 = vpack.c.bf16 %v1140, %v1139
        %v1153 = vpack.c.bf16 %v1142, %v1141
        %v1154 = vpack.c.bf16 %v1144, %v1143
        %v1155 = vpack.c.bf16 %v1146, %v1145
        %v1156 = vpack.c.bf16 %v1148, %v1147
        %v1157 = vld [vmem:[%s2] sm:$0xf]
        %v1158 = vld [vmem:[%s2 + $0x4] sm:$0xf]
        %v1159 = vld [vmem:[%s2 + $0x8] sm:$0xf]
        %v1160 = vld [vmem:[%s2 + $0xc] sm:$0xf]
        %1169 = vrot.lane.b32.xlu0 %v714, 96
        %v1170 = vpop.permute.xlu0 %1169
        %1171 = vrot.lane.b32.xlu0 %v715, 96
        %v1172 = vpop.permute.xlu0 %1171
        %1173 = vrot.lane.b32.xlu0 %v716, 96
        %v1174 = vpop.permute.xlu0 %1173
        %1175 = vrot.lane.b32.xlu0 %v717, 96
        %v1176 = vpop.permute.xlu0 %1175
        %1177 = vrot.lane.b32.xlu0 %v718, 96
        %v1178 = vpop.permute.xlu0 %1177
        %1179 = vrot.lane.b32.xlu0 %v719, 96
        %v1180 = vpop.permute.xlu0 %1179
        %1181 = vrot.lane.b32.xlu0 %v720, 96
        %v1182 = vpop.permute.xlu0 %1181
        %1183 = vrot.lane.b32.xlu0 %v721, 96
        %v1184 = vpop.permute.xlu0 %1183
        %1193 = vrot.lane.b32.xlu0 %v722, 96
        %v1194 = vpop.permute.xlu0 %1193
        %1195 = vrot.lane.b32.xlu0 %v723, 96
        %v1196 = vpop.permute.xlu0 %1195
        %1197 = vrot.lane.b32.xlu0 %v724, 96
        %v1198 = vpop.permute.xlu0 %1197
        %1199 = vrot.lane.b32.xlu0 %v725, 96
        %v1200 = vpop.permute.xlu0 %1199
        %1201 = vrot.lane.b32.xlu0 %v726, 96
        %v1202 = vpop.permute.xlu0 %1201
        %1203 = vrot.lane.b32.xlu0 %v727, 96
        %v1204 = vpop.permute.xlu0 %1203
        %1205 = vrot.lane.b32.xlu0 %v728, 96
        %v1206 = vpop.permute.xlu0 %1205
        %1207 = vrot.lane.b32.xlu0 %v729, 96
        %v1208 = vpop.permute.xlu0 %1207
        %v1210 = vsel %vm738, %v1170, 0
        %v1213 = vsel %vm738, %v1172, 0
        %v1216 = vsel %vm738, %v1174, 0
        %v1219 = vsel %vm738, %v1176, 0
        %v1222 = vsel %vm738, %v1178, 0
        %v1225 = vsel %vm738, %v1180, 0
        %v1228 = vsel %vm738, %v1182, 0
        %v1231 = vsel %vm738, %v1184, 0
        %v1234 = vsel %vm738, %v1194, 0
        %v1237 = vsel %vm738, %v1196, 0
        %v1240 = vsel %vm738, %v1198, 0
        %v1243 = vsel %vm738, %v1200, 0
        %v1246 = vsel %vm738, %v1202, 0
        %v1249 = vsel %vm738, %v1204, 0
        %v1252 = vsel %vm738, %v1206, 0
        %v1255 = vsel %vm738, %v1208, 0
        %1257 = vmatprep.subr.bf16.mxu0 0
        %1258 = vmatpush1.bf16.xpose.msra.mxu0 %v1234
        %1259 = vmatprep.subr.bf16.mxu0 0
        %1260 = vmatpush1.bf16.xpose.msra.mxu0 %v1237
        %1261 = vmatprep.subr.bf16.mxu0 0
        %1262 = vmatpush1.bf16.xpose.msra.mxu0 %v1240
        %1263 = vmatprep.subr.bf16.mxu0 0
        %1264 = vmatpush1.bf16.xpose.msra.mxu0 %v1243
        %1265 = vmatprep.subr.bf16.mxu0 0
        %1266 = vmatpush1.bf16.xpose.msra.mxu0 %v1246
        %1267 = vmatprep.subr.bf16.mxu0 0
        %1268 = vmatpush1.bf16.xpose.msra.mxu0 %v1249
        %1269 = vmatprep.subr.bf16.mxu0 0
        %1270 = vmatpush1.bf16.xpose.msra.mxu0 %v1252
        %1271 = vmatprep.subr.bf16.mxu0 0
        %1272 = vmatpush1.bf16.xpose.msra.mxu0 %v1255
        %1273 = vmatprep.subr.bf16.mxu0 0
        %1274 = vmatpush1.bf16.xpose.msra.mxu0 0
        %1275 = vmatprep.subr.bf16.mxu0 0
        %1276 = vmatpush1.bf16.xpose.msra.mxu0 0
        %1277 = vmatprep.subr.bf16.mxu0 0
        %1278 = vmatpush1.bf16.xpose.msra.mxu0 0
        %1279 = vmatprep.subr.bf16.mxu0 0
        %1280 = vmatpush1.bf16.xpose.msra.mxu0 0
        %1281 = vmatprep.subr.bf16.mxu0 0
        %1282 = vmatpush1.bf16.xpose.msra.mxu0 0
        %1283 = vmatprep.subr.bf16.mxu0 0
        %1284 = vmatpush1.bf16.xpose.msra.mxu0 0
        %1285 = vmatprep.subr.bf16.mxu0 0
        %1286 = vmatpush1.bf16.xpose.msra.mxu0 0
        %1287 = vmatprep.subr.bf16.mxu0 0
        %1288 = vmatpush1.bf16.xpose.msra.mxu0 0
        %1289 = vmatprep.mubr.bf16.mxu0 0
        %1290 = vmatmul.mubr.bf16.gmra.mrb[0].mxu0 %v1210
        %v1291 = vpop.f32.mrb[0].mxu0
        %v1292 = vadd.f32 0.0, %v1291
        %v1293 = vpop.f32.mrb[0].mxu0
        %v1294 = vpop.f32.mrb[0].mxu0
        %v1295 = vadd.f32 0.0, %v1294
        %v1296 = vpop.f32.mrb[0].mxu0
        %1297 = vmatprep.mubr.bf16.mxu0 0
        %1298 = vmatmul.mubr.bf16.gmra.mrb[0].mxu0 %v1213
        %v1299 = vpop.f32.mrb[0].mxu0
        %v1300 = vadd.f32 0.0, %v1299
        %v1301 = vpop.f32.mrb[0].mxu0
        %v1302 = vpop.f32.mrb[0].mxu0
        %v1303 = vadd.f32 0.0, %v1302
        %v1304 = vpop.f32.mrb[0].mxu0
        %1305 = vmatprep.mubr.bf16.mxu0 0
        %1306 = vmatmul.mubr.bf16.gmra.mrb[0].mxu0 %v1216
        %v1307 = vpop.f32.mrb[0].mxu0
        %v1308 = vadd.f32 0.0, %v1307
        %v1309 = vpop.f32.mrb[0].mxu0
        %v1310 = vpop.f32.mrb[0].mxu0
        %v1311 = vadd.f32 0.0, %v1310
        %v1312 = vpop.f32.mrb[0].mxu0
        %1313 = vmatprep.mubr.bf16.mxu0 0
        %1314 = vmatmul.mubr.bf16.gmra.mrb[0].mxu0 %v1219
        %v1315 = vpop.f32.mrb[0].mxu0
        %v1316 = vadd.f32 0.0, %v1315
        %v1317 = vpop.f32.mrb[0].mxu0
        %v1318 = vpop.f32.mrb[0].mxu0
        %v1319 = vadd.f32 0.0, %v1318
        %v1320 = vpop.f32.mrb[0].mxu0
        %1321 = vmatprep.mubr.bf16.mxu0 0
        %1322 = vmatmul.mubr.bf16.gmra.mrb[0].mxu0 %v1222
        %v1323 = vpop.f32.mrb[0].mxu0
        %v1324 = vadd.f32 0.0, %v1323
        %v1325 = vpop.f32.mrb[0].mxu0
        %v1326 = vpop.f32.mrb[0].mxu0
        %v1327 = vadd.f32 0.0, %v1326
        %v1328 = vpop.f32.mrb[0].mxu0
        %1329 = vmatprep.mubr.bf16.mxu0 0
        %1330 = vmatmul.mubr.bf16.gmra.mrb[0].mxu0 %v1225
        %v1331 = vpop.f32.mrb[0].mxu0
        %v1332 = vadd.f32 0.0, %v1331
        %v1333 = vpop.f32.mrb[0].mxu0
        %v1334 = vpop.f32.mrb[0].mxu0
        %v1335 = vadd.f32 0.0, %v1334
        %v1336 = vpop.f32.mrb[0].mxu0
        %1337 = vmatprep.mubr.bf16.mxu0 0
        %1338 = vmatmul.mubr.bf16.gmra.mrb[0].mxu0 %v1228
        %v1339 = vpop.f32.mrb[0].mxu0
        %v1340 = vadd.f32 0.0, %v1339
        %v1341 = vpop.f32.mrb[0].mxu0
        %v1342 = vpop.f32.mrb[0].mxu0
        %v1343 = vadd.f32 0.0, %v1342
        %v1344 = vpop.f32.mrb[0].mxu0
        %1345 = vmatprep.mubr.bf16.mxu0 0
        %1346 = vmatmul.mubr.bf16.gmra.mrb[0].mxu0 %v1231
        %v1347 = vpop.f32.mrb[0].mxu0
        %v1348 = vadd.f32 0.0, %v1347
        %v1349 = vpop.f32.mrb[0].mxu0
        %v1350 = vpop.f32.mrb[0].mxu0
        %v1351 = vadd.f32 0.0, %v1350
        %v1352 = vpop.f32.mrb[0].mxu0
        %1353 = vdwg.mxu0
        %v1354 = vsel %vm698, %v1292, -inf
        %v1355 = vsel %vm699, %v1295, -inf
        %v1356 = vsel %vm700, %v1300, -inf
        %v1357 = vsel %vm701, %v1303, -inf
        %v1358 = vsel %vm702, %v1308, -inf
        %v1359 = vsel %vm703, %v1311, -inf
        %v1360 = vsel %vm704, %v1316, -inf
        %v1361 = vsel %vm705, %v1319, -inf
        %v1362 = vsel %vm706, %v1324, -inf
        %v1363 = vsel %vm707, %v1327, -inf
        %v1364 = vsel %vm708, %v1332, -inf
        %v1365 = vsel %vm709, %v1335, -inf
        %v1366 = vsel %vm710, %v1340, -inf
        %v1367 = vsel %vm711, %v1343, -inf
        %v1368 = vsel %vm712, %v1348, -inf
        %v1369 = vsel %vm713, %v1351, -inf
        %1370 = vmax.xlane.f32.xlu0 %v1354
        %v1371 = vpop.xlane.xlu0 %1370
        %1372 = vmax.xlane.f32.xlu0 %v1355
        %v1373 = vpop.xlane.xlu0 %1372
        %1374 = vmax.xlane.f32.xlu0 %v1356
        %v1375 = vpop.xlane.xlu0 %1374
        %1376 = vmax.xlane.f32.xlu0 %v1357
        %v1377 = vpop.xlane.xlu0 %1376
        %1378 = vmax.xlane.f32.xlu0 %v1358
        %v1379 = vpop.xlane.xlu0 %1378
        %1380 = vmax.xlane.f32.xlu0 %v1359
        %v1381 = vpop.xlane.xlu0 %1380
        %1382 = vmax.xlane.f32.xlu0 %v1360
        %v1383 = vpop.xlane.xlu0 %1382
        %1384 = vmax.xlane.f32.xlu0 %v1361
        %v1385 = vpop.xlane.xlu0 %1384
        %1386 = vmax.xlane.f32.xlu0 %v1362
        %v1387 = vpop.xlane.xlu0 %1386
        %1388 = vmax.xlane.f32.xlu0 %v1363
        %v1389 = vpop.xlane.xlu0 %1388
        %1390 = vmax.xlane.f32.xlu0 %v1364
        %v1391 = vpop.xlane.xlu0 %1390
        %1392 = vmax.xlane.f32.xlu0 %v1365
        %v1393 = vpop.xlane.xlu0 %1392
        %1394 = vmax.xlane.f32.xlu0 %v1366
        %v1395 = vpop.xlane.xlu0 %1394
        %1396 = vmax.xlane.f32.xlu0 %v1367
        %v1397 = vpop.xlane.xlu0 %1396
        %1398 = vmax.xlane.f32.xlu0 %v1368
        %v1399 = vpop.xlane.xlu0 %1398
        %1400 = vmax.xlane.f32.xlu0 %v1369
        %v1401 = vpop.xlane.xlu0 %1400
        %v1402 = vsub.f32 %v1354, %v1371
        %v1403 = vsub.f32 %v1355, %v1373
        %v1404 = vsub.f32 %v1356, %v1375
        %v1405 = vsub.f32 %v1357, %v1377
        %v1406 = vsub.f32 %v1358, %v1379
        %v1407 = vsub.f32 %v1359, %v1381
        %v1408 = vsub.f32 %v1360, %v1383
        %v1409 = vsub.f32 %v1361, %v1385
        %v1410 = vsub.f32 %v1362, %v1387
        %v1411 = vsub.f32 %v1363, %v1389
        %v1412 = vsub.f32 %v1364, %v1391
        %v1413 = vsub.f32 %v1365, %v1393
        %v1414 = vsub.f32 %v1366, %v1395
        %v1415 = vsub.f32 %v1367, %v1397
        %v1416 = vsub.f32 %v1368, %v1399
        %v1417 = vsub.f32 %v1369, %v1401
        %v1418 = vmul.f32 %v1402, 1.442695
        %v1419 = vpow.pop %v1418
        %v1420 = vmul.f32 %v1403, 1.442695
        %v1421 = vpow.pop %v1420
        %v1422 = vmul.f32 %v1404, 1.442695
        %v1423 = vpow.pop %v1422
        %v1424 = vmul.f32 %v1405, 1.442695
        %v1425 = vpow.pop %v1424
        %v1426 = vmul.f32 %v1406, 1.442695
        %v1427 = vpow.pop %v1426
        %v1428 = vmul.f32 %v1407, 1.442695
        %v1429 = vpow.pop %v1428
        %v1430 = vmul.f32 %v1408, 1.442695
        %v1431 = vpow.pop %v1430
        %v1432 = vmul.f32 %v1409, 1.442695
        %v1433 = vpow.pop %v1432
        %v1434 = vmul.f32 %v1410, 1.442695
        %v1435 = vpow.pop %v1434
        %v1436 = vmul.f32 %v1411, 1.442695
        %v1437 = vpow.pop %v1436
        %v1438 = vmul.f32 %v1412, 1.442695
        %v1439 = vpow.pop %v1438
        %v1440 = vmul.f32 %v1413, 1.442695
        %v1441 = vpow.pop %v1440
        %v1442 = vmul.f32 %v1414, 1.442695
        %v1443 = vpow.pop %v1442
        %v1444 = vmul.f32 %v1415, 1.442695
        %v1445 = vpow.pop %v1444
        %v1446 = vmul.f32 %v1416, 1.442695
        %v1447 = vpow.pop %v1446
        %v1448 = vmul.f32 %v1417, 1.442695
        %v1449 = vpow.pop %v1448
        %1450 = vadd.xlane.f32.xlu0 %v1419
        %v1451 = vpop.xlane.xlu0 %1450
        %1452 = vadd.xlane.f32.xlu0 %v1421
        %v1453 = vpop.xlane.xlu0 %1452
        %1454 = vadd.xlane.f32.xlu0 %v1423
        %v1455 = vpop.xlane.xlu0 %1454
        %1456 = vadd.xlane.f32.xlu0 %v1425
        %v1457 = vpop.xlane.xlu0 %1456
        %1458 = vadd.xlane.f32.xlu0 %v1427
        %v1459 = vpop.xlane.xlu0 %1458
        %1460 = vadd.xlane.f32.xlu0 %v1429
        %v1461 = vpop.xlane.xlu0 %1460
        %1462 = vadd.xlane.f32.xlu0 %v1431
        %v1463 = vpop.xlane.xlu0 %1462
        %1464 = vadd.xlane.f32.xlu0 %v1433
        %v1465 = vpop.xlane.xlu0 %1464
        %1466 = vadd.xlane.f32.xlu0 %v1435
        %v1467 = vpop.xlane.xlu0 %1466
        %1468 = vadd.xlane.f32.xlu0 %v1437
        %v1469 = vpop.xlane.xlu0 %1468
        %1470 = vadd.xlane.f32.xlu0 %v1439
        %v1471 = vpop.xlane.xlu0 %1470
        %1472 = vadd.xlane.f32.xlu0 %v1441
        %v1473 = vpop.xlane.xlu0 %1472
        %1474 = vadd.xlane.f32.xlu0 %v1443
        %v1475 = vpop.xlane.xlu0 %1474
        %1476 = vadd.xlane.f32.xlu0 %v1445
        %v1477 = vpop.xlane.xlu0 %1476
        %1478 = vadd.xlane.f32.xlu0 %v1447
        %v1479 = vpop.xlane.xlu0 %1478
        %1480 = vadd.xlane.f32.xlu0 %v1449
        %v1481 = vpop.xlane.xlu0 %1480
        %v1482 = vpack.c.bf16 %v1421, %v1419
        %v1483 = vpack.c.bf16 %v1425, %v1423
        %v1484 = vpack.c.bf16 %v1429, %v1427
        %v1485 = vpack.c.bf16 %v1433, %v1431
        %v1486 = vpack.c.bf16 %v1437, %v1435
        %v1487 = vpack.c.bf16 %v1441, %v1439
        %v1488 = vpack.c.bf16 %v1445, %v1443
        %v1489 = vpack.c.bf16 %v1449, %v1447
        %1498 = vrot.lane.b32.xlu0 %v730, 96
        %v1499 = vpop.permute.xlu0 %1498
        %1500 = vrot.lane.b32.xlu0 %v731, 96
        %v1501 = vpop.permute.xlu0 %1500
        %1502 = vrot.lane.b32.xlu0 %v732, 96
        %v1503 = vpop.permute.xlu0 %1502
        %1504 = vrot.lane.b32.xlu0 %v733, 96
        %v1505 = vpop.permute.xlu0 %1504
        %1506 = vrot.lane.b32.xlu0 %v734, 96
        %v1507 = vpop.permute.xlu0 %1506
        %1508 = vrot.lane.b32.xlu0 %v735, 96
        %v1509 = vpop.permute.xlu0 %1508
        %1510 = vrot.lane.b32.xlu0 %v736, 96
        %v1511 = vpop.permute.xlu0 %1510
        %1512 = vrot.lane.b32.xlu0 %v737, 96
        %v1513 = vpop.permute.xlu0 %1512
        %1522 = vmatprep.subr.bf16.mxu0 0
        %1523 = vmatpush1.bf16.msra.mxu0 %v1499
        %1524 = vmatprep.subr.bf16.mxu0 0
        %1525 = vmatpush1.bf16.msra.mxu0 %v1501
        %1526 = vmatprep.subr.bf16.mxu0 0
        %1527 = vmatpush1.bf16.msra.mxu0 %v1503
        %1528 = vmatprep.subr.bf16.mxu0 0
        %1529 = vmatpush1.bf16.msra.mxu0 %v1505
        %1530 = vmatprep.subr.bf16.mxu0 0
        %1531 = vmatpush1.bf16.msra.mxu0 %v1507
        %1532 = vmatprep.subr.bf16.mxu0 0
        %1533 = vmatpush1.bf16.msra.mxu0 %v1509
        %1534 = vmatprep.subr.bf16.mxu0 0
        %1535 = vmatpush1.bf16.msra.mxu0 %v1511
        %1536 = vmatprep.subr.bf16.mxu0 0
        %1537 = vmatpush1.bf16.msra.mxu0 %v1513
        %1538 = vmatprep.subr.bf16.mxu0 0
        %1539 = vmatpush1.bf16.msra.mxu0 0
        %1540 = vmatprep.subr.bf16.mxu0 0
        %1541 = vmatpush1.bf16.msra.mxu0 0
        %1542 = vmatprep.subr.bf16.mxu0 0
        %1543 = vmatpush1.bf16.msra.mxu0 0
        %1544 = vmatprep.subr.bf16.mxu0 0
        %1545 = vmatpush1.bf16.msra.mxu0 0
        %1546 = vmatprep.subr.bf16.mxu0 0
        %1547 = vmatpush1.bf16.msra.mxu0 0
        %1548 = vmatprep.subr.bf16.mxu0 0
        %1549 = vmatpush1.bf16.msra.mxu0 0
        %1550 = vmatprep.subr.bf16.mxu0 0
        %1551 = vmatpush1.bf16.msra.mxu0 0
        %1552 = vmatprep.subr.bf16.mxu0 0
        %1553 = vmatpush1.bf16.msra.mxu0 0
        %1554 = vmatprep.mubr.bf16.mxu0 0
        %1555 = vmatmul.mubr.bf16.gmra.mrb[0].mxu0 %v1482
        %v1556 = vpop.f32.mrb[0].mxu0
        %v1557 = vadd.f32 0.0, %v1556
        %v1558 = vpop.f32.mrb[0].mxu0
        %v1559 = vpop.f32.mrb[0].mxu0
        %v1560 = vadd.f32 0.0, %v1559
        %v1561 = vpop.f32.mrb[0].mxu0
        %1562 = vmatprep.mubr.bf16.mxu0 0
        %1563 = vmatmul.mubr.bf16.gmra.mrb[0].mxu0 %v1483
        %v1564 = vpop.f32.mrb[0].mxu0
        %v1565 = vadd.f32 0.0, %v1564
        %v1566 = vpop.f32.mrb[0].mxu0
        %v1567 = vpop.f32.mrb[0].mxu0
        %v1568 = vadd.f32 0.0, %v1567
        %v1569 = vpop.f32.mrb[0].mxu0
        %1570 = vmatprep.mubr.bf16.mxu0 0
        %1571 = vmatmul.mubr.bf16.gmra.mrb[0].mxu0 %v1484
        %v1572 = vpop.f32.mrb[0].mxu0
        %v1573 = vadd.f32 0.0, %v1572
        %v1574 = vpop.f32.mrb[0].mxu0
        %v1575 = vpop.f32.mrb[0].mxu0
        %v1576 = vadd.f32 0.0, %v1575
        %v1577 = vpop.f32.mrb[0].mxu0
        %1578 = vmatprep.mubr.bf16.mxu0 0
        %1579 = vmatmul.mubr.bf16.gmra.mrb[0].mxu0 %v1485
        %v1580 = vpop.f32.mrb[0].mxu0
        %v1581 = vadd.f32 0.0, %v1580
        %v1582 = vpop.f32.mrb[0].mxu0
        %v1583 = vpop.f32.mrb[0].mxu0
        %v1584 = vadd.f32 0.0, %v1583
        %v1585 = vpop.f32.mrb[0].mxu0
        %1586 = vmatprep.mubr.bf16.mxu0 0
        %1587 = vmatmul.mubr.bf16.gmra.mrb[0].mxu0 %v1486
        %v1588 = vpop.f32.mrb[0].mxu0
        %v1589 = vadd.f32 0.0, %v1588
        %v1590 = vpop.f32.mrb[0].mxu0
        %v1591 = vpop.f32.mrb[0].mxu0
        %v1592 = vadd.f32 0.0, %v1591
        %v1593 = vpop.f32.mrb[0].mxu0
        %1594 = vmatprep.mubr.bf16.mxu0 0
        %1595 = vmatmul.mubr.bf16.gmra.mrb[0].mxu0 %v1487
        %v1596 = vpop.f32.mrb[0].mxu0
        %v1597 = vadd.f32 0.0, %v1596
        %v1598 = vpop.f32.mrb[0].mxu0
        %v1599 = vpop.f32.mrb[0].mxu0
        %v1600 = vadd.f32 0.0, %v1599
        %v1601 = vpop.f32.mrb[0].mxu0
        %1602 = vmatprep.mubr.bf16.mxu0 0
        %1603 = vmatmul.mubr.bf16.gmra.mrb[0].mxu0 %v1488
        %v1604 = vpop.f32.mrb[0].mxu0
        %v1605 = vadd.f32 0.0, %v1604
        %v1606 = vpop.f32.mrb[0].mxu0
        %v1607 = vpop.f32.mrb[0].mxu0
        %v1608 = vadd.f32 0.0, %v1607
        %v1609 = vpop.f32.mrb[0].mxu0
        %1610 = vmatprep.mubr.bf16.mxu0 0
        %1611 = vmatmul.mubr.bf16.gmra.mrb[0].mxu0 %v1489
        %v1612 = vpop.f32.mrb[0].mxu0
        %v1613 = vadd.f32 0.0, %v1612
        %v1614 = vpop.f32.mrb[0].mxu0
        %v1615 = vpop.f32.mrb[0].mxu0
        %v1616 = vadd.f32 0.0, %v1615
        %v1617 = vpop.f32.mrb[0].mxu0
        %1618 = vdwg.mxu0
        %v1619 = vrcp.pop %v1451
        %v1620 = vrcp.pop %v1453
        %v1621 = vrcp.pop %v1455
        %v1622 = vrcp.pop %v1457
        %v1623 = vrcp.pop %v1459
        %v1624 = vrcp.pop %v1461
        %v1625 = vrcp.pop %v1463
        %v1626 = vrcp.pop %v1465
        %v1627 = vrcp.pop %v1467
        %v1628 = vrcp.pop %v1469
        %v1629 = vrcp.pop %v1471
        %v1630 = vrcp.pop %v1473
        %v1631 = vrcp.pop %v1475
        %v1632 = vrcp.pop %v1477
        %v1633 = vrcp.pop %v1479
        %v1634 = vrcp.pop %v1481
        %v1635 = vmul.f32 %v1557, %v1619
        %v1636 = vmul.f32 %v1560, %v1620
        %v1637 = vmul.f32 %v1565, %v1621
        %v1638 = vmul.f32 %v1568, %v1622
        %v1639 = vmul.f32 %v1573, %v1623
        %v1640 = vmul.f32 %v1576, %v1624
        %v1641 = vmul.f32 %v1581, %v1625
        %v1642 = vmul.f32 %v1584, %v1626
        %v1643 = vmul.f32 %v1589, %v1627
        %v1644 = vmul.f32 %v1592, %v1628
        %v1645 = vmul.f32 %v1597, %v1629
        %v1646 = vmul.f32 %v1600, %v1630
        %v1647 = vmul.f32 %v1605, %v1631
        %v1648 = vmul.f32 %v1608, %v1632
        %v1649 = vmul.f32 %v1613, %v1633
        %v1650 = vmul.f32 %v1616, %v1634
        %v1651 = vpack.c.bf16 %v1636, %v1635
        %v1652 = vpack.c.bf16 %v1638, %v1637
        %v1653 = vpack.c.bf16 %v1640, %v1639
        %v1654 = vpack.c.bf16 %v1642, %v1641
        %v1655 = vpack.c.bf16 %v1644, %v1643
        %v1656 = vpack.c.bf16 %v1646, %v1645
        %v1657 = vpack.c.bf16 %v1648, %v1647
        %v1658 = vpack.c.bf16 %v1650, %v1649
        %v1659 = vld [vmem:[%s2 + $0x10] sm:$0xf]
        %v1660 = vld [vmem:[%s2 + $0x14] sm:$0xf]
        %v1661 = vld [vmem:[%s2 + $0x18] sm:$0xf]
        %v1662 = vld [vmem:[%s2 + $0x1c] sm:$0xf]
        %v1667 = vunpack.c.l.b16 %v1659
        %v1668 = vunpack.c.l.b16 %v1660
        %v1669 = vunpack.c.l.b16 %v1661
        %v1670 = vunpack.c.l.b16 %v1662
        %v1671 = vpack.c.b16 %v1668, %v1667
        %v1672 = vpack.c.b16 %v1670, %v1669
        %v1676 = vsel %vm738, %v1651, 0
        %v1679 = vsel %vm738, %v1652, 0
        %v1682 = vsel %vm738, %v1653, 0
        %v1685 = vsel %vm738, %v1654, 0
        %v1688 = vsel %vm738, %v1655, 0
        %v1691 = vsel %vm738, %v1656, 0
        %v1694 = vsel %vm738, %v1657, 0
        %v1697 = vsel %vm738, %v1658, 0
        %1699 = vmatprep.subr.bf16.mxu0 0
        %1700 = vmatpush1.bf16.msra.mxu0 %v1671
        %1701 = vmatprep.subr.bf16.mxu0 0
        %1702 = vmatpush1.bf16.msra.mxu0 %v1672
        %1703 = vmatprep.subr.bf16.mxu0 0
        %1704 = vmatpush1.bf16.msra.mxu0 0
        %1705 = vmatprep.subr.bf16.mxu0 0
        %1706 = vmatpush1.bf16.msra.mxu0 0
        %1707 = vmatprep.subr.bf16.mxu0 0
        %1708 = vmatpush1.bf16.msra.mxu0 0
        %1709 = vmatprep.subr.bf16.mxu0 0
        %1710 = vmatpush1.bf16.msra.mxu0 0
        %1711 = vmatprep.subr.bf16.mxu0 0
        %1712 = vmatpush1.bf16.msra.mxu0 0
        %1713 = vmatprep.subr.bf16.mxu0 0
        %1714 = vmatpush1.bf16.msra.mxu0 0
        %1715 = vmatprep.subr.bf16.mxu0 0
        %1716 = vmatpush1.bf16.msra.mxu0 0
        %1717 = vmatprep.subr.bf16.mxu0 0
        %1718 = vmatpush1.bf16.msra.mxu0 0
        %1719 = vmatprep.subr.bf16.mxu0 0
        %1720 = vmatpush1.bf16.msra.mxu0 0
        %1721 = vmatprep.subr.bf16.mxu0 0
        %1722 = vmatpush1.bf16.msra.mxu0 0
        %1723 = vmatprep.subr.bf16.mxu0 0
        %1724 = vmatpush1.bf16.msra.mxu0 0
        %1725 = vmatprep.subr.bf16.mxu0 0
        %1726 = vmatpush1.bf16.msra.mxu0 0
        %1727 = vmatprep.subr.bf16.mxu0 0
        %1728 = vmatpush1.bf16.msra.mxu0 0
        %1729 = vmatprep.subr.bf16.mxu0 0
        %1730 = vmatpush1.bf16.msra.mxu0 0
        %1731 = vmatprep.mubr.bf16.mxu0 0
        %1732 = vmatmul.mubr.bf16.gmra.mrb[0].mxu0 %v1676
        %v1733 = vpop.f32.mrb[0].mxu0
        %v1734 = vadd.f32 0.0, %v1733
        %v1735 = vpop.f32.mrb[0].mxu0
        %v1736 = vpop.f32.mrb[0].mxu0
        %v1737 = vadd.f32 0.0, %v1736
        %v1738 = vpop.f32.mrb[0].mxu0
        %1739 = vmatprep.mubr.bf16.mxu0 0
        %1740 = vmatmul.mubr.bf16.gmra.mrb[0].mxu0 %v1679
        %v1741 = vpop.f32.mrb[0].mxu0
        %v1742 = vadd.f32 0.0, %v1741
        %v1743 = vpop.f32.mrb[0].mxu0
        %v1744 = vpop.f32.mrb[0].mxu0
        %v1745 = vadd.f32 0.0, %v1744
        %v1746 = vpop.f32.mrb[0].mxu0
        %1747 = vmatprep.mubr.bf16.mxu0 0
        %1748 = vmatmul.mubr.bf16.gmra.mrb[0].mxu0 %v1682
        %v1749 = vpop.f32.mrb[0].mxu0
        %v1750 = vadd.f32 0.0, %v1749
        %v1751 = vpop.f32.mrb[0].mxu0
        %v1752 = vpop.f32.mrb[0].mxu0
        %v1753 = vadd.f32 0.0, %v1752
        %v1754 = vpop.f32.mrb[0].mxu0
        %1755 = vmatprep.mubr.bf16.mxu0 0
        %1756 = vmatmul.mubr.bf16.gmra.mrb[0].mxu0 %v1685
        %v1757 = vpop.f32.mrb[0].mxu0
        %v1758 = vadd.f32 0.0, %v1757
        %v1759 = vpop.f32.mrb[0].mxu0
        %v1760 = vpop.f32.mrb[0].mxu0
        %v1761 = vadd.f32 0.0, %v1760
        %v1762 = vpop.f32.mrb[0].mxu0
        %1763 = vmatprep.mubr.bf16.mxu0 0
        %1764 = vmatmul.mubr.bf16.gmra.mrb[0].mxu0 %v1688
        %v1765 = vpop.f32.mrb[0].mxu0
        %v1766 = vadd.f32 0.0, %v1765
        %v1767 = vpop.f32.mrb[0].mxu0
        %v1768 = vpop.f32.mrb[0].mxu0
        %v1769 = vadd.f32 0.0, %v1768
        %v1770 = vpop.f32.mrb[0].mxu0
        %1771 = vmatprep.mubr.bf16.mxu0 0
        %1772 = vmatmul.mubr.bf16.gmra.mrb[0].mxu0 %v1691
        %v1773 = vpop.f32.mrb[0].mxu0
        %v1774 = vadd.f32 0.0, %v1773
        %v1775 = vpop.f32.mrb[0].mxu0
        %v1776 = vpop.f32.mrb[0].mxu0
        %v1777 = vadd.f32 0.0, %v1776
        %v1778 = vpop.f32.mrb[0].mxu0
        %1779 = vmatprep.mubr.bf16.mxu0 0
        %1780 = vmatmul.mubr.bf16.gmra.mrb[0].mxu0 %v1694
        %v1781 = vpop.f32.mrb[0].mxu0
        %v1782 = vadd.f32 0.0, %v1781
        %v1783 = vpop.f32.mrb[0].mxu0
        %v1784 = vpop.f32.mrb[0].mxu0
        %v1785 = vadd.f32 0.0, %v1784
        %v1786 = vpop.f32.mrb[0].mxu0
        %1787 = vmatprep.mubr.bf16.mxu0 0
        %1788 = vmatmul.mubr.bf16.gmra.mrb[0].mxu0 %v1697
        %v1789 = vpop.f32.mrb[0].mxu0
        %v1790 = vadd.f32 0.0, %v1789
        %v1791 = vpop.f32.mrb[0].mxu0
        %v1792 = vpop.f32.mrb[0].mxu0
        %v1793 = vadd.f32 0.0, %v1792
        %v1794 = vpop.f32.mrb[0].mxu0
        %1795 = vdwg.mxu0
        %v1800 = vunpack.c.l.b16 %v1157
        %v1801 = vunpack.c.l.b16 %v1158
        %v1802 = vunpack.c.l.b16 %v1159
        %v1803 = vunpack.c.l.b16 %v1160
        %v1804 = vpack.c.b16 %v1801, %v1800
        %v1805 = vpack.c.b16 %v1803, %v1802
        %v1809 = vsel %vm738, %v1149, 0
        %v1812 = vsel %vm738, %v1150, 0
        %v1815 = vsel %vm738, %v1151, 0
        %v1818 = vsel %vm738, %v1152, 0
        %v1821 = vsel %vm738, %v1153, 0
        %v1824 = vsel %vm738, %v1154, 0
        %v1827 = vsel %vm738, %v1155, 0
        %v1830 = vsel %vm738, %v1156, 0
        %1832 = vmatprep.subr.bf16.mxu0 0
        %1833 = vmatpush1.bf16.msra.mxu0 %v1804
        %1834 = vmatprep.subr.bf16.mxu0 0
        %1835 = vmatpush1.bf16.msra.mxu0 %v1805
        %1836 = vmatprep.subr.bf16.mxu0 0
        %1837 = vmatpush1.bf16.msra.mxu0 0
        %1838 = vmatprep.subr.bf16.mxu0 0
        %1839 = vmatpush1.bf16.msra.mxu0 0
        %1840 = vmatprep.subr.bf16.mxu0 0
        %1841 = vmatpush1.bf16.msra.mxu0 0
        %1842 = vmatprep.subr.bf16.mxu0 0
        %1843 = vmatpush1.bf16.msra.mxu0 0
        %1844 = vmatprep.subr.bf16.mxu0 0
        %1845 = vmatpush1.bf16.msra.mxu0 0
        %1846 = vmatprep.subr.bf16.mxu0 0
        %1847 = vmatpush1.bf16.msra.mxu0 0
        %1848 = vmatprep.subr.bf16.mxu0 0
        %1849 = vmatpush1.bf16.msra.mxu0 0
        %1850 = vmatprep.subr.bf16.mxu0 0
        %1851 = vmatpush1.bf16.msra.mxu0 0
        %1852 = vmatprep.subr.bf16.mxu0 0
        %1853 = vmatpush1.bf16.msra.mxu0 0
        %1854 = vmatprep.subr.bf16.mxu0 0
        %1855 = vmatpush1.bf16.msra.mxu0 0
        %1856 = vmatprep.subr.bf16.mxu0 0
        %1857 = vmatpush1.bf16.msra.mxu0 0
        %1858 = vmatprep.subr.bf16.mxu0 0
        %1859 = vmatpush1.bf16.msra.mxu0 0
        %1860 = vmatprep.subr.bf16.mxu0 0
        %1861 = vmatpush1.bf16.msra.mxu0 0
        %1862 = vmatprep.subr.bf16.mxu0 0
        %1863 = vmatpush1.bf16.msra.mxu0 0
        %1864 = vmatprep.mubr.bf16.mxu0 0
        %1865 = vmatmul.mubr.bf16.gmra.mrb[0].mxu0 %v1809
        %v1866 = vpop.f32.mrb[0].mxu0
        %v1867 = vadd.f32 %v1734, %v1866
        %v1868 = vpop.f32.mrb[0].mxu0
        %v1869 = vpop.f32.mrb[0].mxu0
        %v1870 = vadd.f32 %v1737, %v1869
        %v1871 = vpop.f32.mrb[0].mxu0
        %1872 = vmatprep.mubr.bf16.mxu0 0
        %1873 = vmatmul.mubr.bf16.gmra.mrb[0].mxu0 %v1812
        %v1874 = vpop.f32.mrb[0].mxu0
        %v1875 = vadd.f32 %v1742, %v1874
        %v1876 = vpop.f32.mrb[0].mxu0
        %v1877 = vpop.f32.mrb[0].mxu0
        %v1878 = vadd.f32 %v1745, %v1877
        %v1879 = vpop.f32.mrb[0].mxu0
        %1880 = vmatprep.mubr.bf16.mxu0 0
        %1881 = vmatmul.mubr.bf16.gmra.mrb[0].mxu0 %v1815
        %v1882 = vpop.f32.mrb[0].mxu0
        %v1883 = vadd.f32 %v1750, %v1882
        %v1884 = vpop.f32.mrb[0].mxu0
        %v1885 = vpop.f32.mrb[0].mxu0
        %v1886 = vadd.f32 %v1753, %v1885
        %v1887 = vpop.f32.mrb[0].mxu0
        %1888 = vmatprep.mubr.bf16.mxu0 0
        %1889 = vmatmul.mubr.bf16.gmra.mrb[0].mxu0 %v1818
        %v1890 = vpop.f32.mrb[0].mxu0
        %v1891 = vadd.f32 %v1758, %v1890
        %v1892 = vpop.f32.mrb[0].mxu0
        %v1893 = vpop.f32.mrb[0].mxu0
        %v1894 = vadd.f32 %v1761, %v1893
        %v1895 = vpop.f32.mrb[0].mxu0
        %1896 = vmatprep.mubr.bf16.mxu0 0
        %1897 = vmatmul.mubr.bf16.gmra.mrb[0].mxu0 %v1821
        %v1898 = vpop.f32.mrb[0].mxu0
        %v1899 = vadd.f32 %v1766, %v1898
        %v1900 = vpop.f32.mrb[0].mxu0
        %v1901 = vpop.f32.mrb[0].mxu0
        %v1902 = vadd.f32 %v1769, %v1901
        %v1903 = vpop.f32.mrb[0].mxu0
        %1904 = vmatprep.mubr.bf16.mxu0 0
        %1905 = vmatmul.mubr.bf16.gmra.mrb[0].mxu0 %v1824
        %v1906 = vpop.f32.mrb[0].mxu0
        %v1907 = vadd.f32 %v1774, %v1906
        %v1908 = vpop.f32.mrb[0].mxu0
        %v1909 = vpop.f32.mrb[0].mxu0
        %v1910 = vadd.f32 %v1777, %v1909
        %v1911 = vpop.f32.mrb[0].mxu0
        %1912 = vmatprep.mubr.bf16.mxu0 0
        %1913 = vmatmul.mubr.bf16.gmra.mrb[0].mxu0 %v1827
        %v1914 = vpop.f32.mrb[0].mxu0
        %v1915 = vadd.f32 %v1782, %v1914
        %v1916 = vpop.f32.mrb[0].mxu0
        %v1917 = vpop.f32.mrb[0].mxu0
        %v1918 = vadd.f32 %v1785, %v1917
        %v1919 = vpop.f32.mrb[0].mxu0
        %1920 = vmatprep.mubr.bf16.mxu0 0
        %1921 = vmatmul.mubr.bf16.gmra.mrb[0].mxu0 %v1830
        %v1922 = vpop.f32.mrb[0].mxu0
        %v1923 = vadd.f32 %v1790, %v1922
        %v1924 = vpop.f32.mrb[0].mxu0
        %v1925 = vpop.f32.mrb[0].mxu0
        %v1926 = vadd.f32 %v1793, %v1925
        %v1927 = vpop.f32.mrb[0].mxu0
        %1928 = vdwg.mxu0
        %1929 = vrot.lane.b32.xlu0 %v714, 64
        %v1930 = vpop.permute.xlu0 %1929
        %1931 = vrot.lane.b32.xlu0 %v715, 64
        %v1932 = vpop.permute.xlu0 %1931
        %1933 = vrot.lane.b32.xlu0 %v716, 64
        %v1934 = vpop.permute.xlu0 %1933
        %1935 = vrot.lane.b32.xlu0 %v717, 64
        %v1936 = vpop.permute.xlu0 %1935
        %1937 = vrot.lane.b32.xlu0 %v718, 64
        %v1938 = vpop.permute.xlu0 %1937
        %1939 = vrot.lane.b32.xlu0 %v719, 64
        %v1940 = vpop.permute.xlu0 %1939
        %1941 = vrot.lane.b32.xlu0 %v720, 64
        %v1942 = vpop.permute.xlu0 %1941
        %1943 = vrot.lane.b32.xlu0 %v721, 64
        %v1944 = vpop.permute.xlu0 %1943
        %1945 = vrot.lane.b32.xlu0 %v722, 64
        %v1946 = vpop.permute.xlu0 %1945
        %1947 = vrot.lane.b32.xlu0 %v723, 64
        %v1948 = vpop.permute.xlu0 %1947
        %1949 = vrot.lane.b32.xlu0 %v724, 64
        %v1950 = vpop.permute.xlu0 %1949
        %1951 = vrot.lane.b32.xlu0 %v725, 64
        %v1952 = vpop.permute.xlu0 %1951
        %1953 = vrot.lane.b32.xlu0 %v726, 64
        %v1954 = vpop.permute.xlu0 %1953
        %1955 = vrot.lane.b32.xlu0 %v727, 64
        %v1956 = vpop.permute.xlu0 %1955
        %1957 = vrot.lane.b32.xlu0 %v728, 64
        %v1958 = vpop.permute.xlu0 %1957
        %1959 = vrot.lane.b32.xlu0 %v729, 64
        %v1960 = vpop.permute.xlu0 %1959
        %v1962 = vsel %vm738, %v1930, 0
        %v1965 = vsel %vm738, %v1932, 0
        %v1968 = vsel %vm738, %v1934, 0
        %v1971 = vsel %vm738, %v1936, 0
        %v1974 = vsel %vm738, %v1938, 0
        %v1977 = vsel %vm738, %v1940, 0
        %v1980 = vsel %vm738, %v1942, 0
        %v1983 = vsel %vm738, %v1944, 0
        %v1986 = vsel %vm738, %v1946, 0
        %v1989 = vsel %vm738, %v1948, 0
        %v1992 = vsel %vm738, %v1950, 0
        %v1995 = vsel %vm738, %v1952, 0
        %v1998 = vsel %vm738, %v1954, 0
        %v2001 = vsel %vm738, %v1956, 0
        %v2004 = vsel %vm738, %v1958, 0
        %v2007 = vsel %vm738, %v1960, 0
        %2009 = vmatprep.subr.bf16.mxu0 0
        %2010 = vmatpush1.bf16.xpose.msra.mxu0 %v1986
        %2011 = vmatprep.subr.bf16.mxu0 0
        %2012 = vmatpush1.bf16.xpose.msra.mxu0 %v1989
        %2013 = vmatprep.subr.bf16.mxu0 0
        %2014 = vmatpush1.bf16.xpose.msra.mxu0 %v1992
        %2015 = vmatprep.subr.bf16.mxu0 0
        %2016 = vmatpush1.bf16.xpose.msra.mxu0 %v1995
        %2017 = vmatprep.subr.bf16.mxu0 0
        %2018 = vmatpush1.bf16.xpose.msra.mxu0 %v1998
        %2019 = vmatprep.subr.bf16.mxu0 0
        %2020 = vmatpush1.bf16.xpose.msra.mxu0 %v2001
        %2021 = vmatprep.subr.bf16.mxu0 0
        %2022 = vmatpush1.bf16.xpose.msra.mxu0 %v2004
        %2023 = vmatprep.subr.bf16.mxu0 0
        %2024 = vmatpush1.bf16.xpose.msra.mxu0 %v2007
        %2025 = vmatprep.subr.bf16.mxu0 0
        %2026 = vmatpush1.bf16.xpose.msra.mxu0 0
        %2027 = vmatprep.subr.bf16.mxu0 0
        %2028 = vmatpush1.bf16.xpose.msra.mxu0 0
        %2029 = vmatprep.subr.bf16.mxu0 0
        %2030 = vmatpush1.bf16.xpose.msra.mxu0 0
        %2031 = vmatprep.subr.bf16.mxu0 0
        %2032 = vmatpush1.bf16.xpose.msra.mxu0 0
        %2033 = vmatprep.subr.bf16.mxu0 0
        %2034 = vmatpush1.bf16.xpose.msra.mxu0 0
        %2035 = vmatprep.subr.bf16.mxu0 0
        %2036 = vmatpush1.bf16.xpose.msra.mxu0 0
        %2037 = vmatprep.subr.bf16.mxu0 0
        %2038 = vmatpush1.bf16.xpose.msra.mxu0 0
        %2039 = vmatprep.subr.bf16.mxu0 0
        %2040 = vmatpush1.bf16.xpose.msra.mxu0 0
        %2041 = vmatprep.mubr.bf16.mxu0 0
        %2042 = vmatmul.mubr.bf16.gmra.mrb[0].mxu0 %v1962
        %v2043 = vpop.f32.mrb[0].mxu0
        %v2044 = vadd.f32 0.0, %v2043
        %v2045 = vpop.f32.mrb[0].mxu0
        %v2046 = vpop.f32.mrb[0].mxu0
        %v2047 = vadd.f32 0.0, %v2046
        %v2048 = vpop.f32.mrb[0].mxu0
        %2049 = vmatprep.mubr.bf16.mxu0 0
        %2050 = vmatmul.mubr.bf16.gmra.mrb[0].mxu0 %v1965
        %v2051 = vpop.f32.mrb[0].mxu0
        %v2052 = vadd.f32 0.0, %v2051
        %v2053 = vpop.f32.mrb[0].mxu0
        %v2054 = vpop.f32.mrb[0].mxu0
        %v2055 = vadd.f32 0.0, %v2054
        %v2056 = vpop.f32.mrb[0].mxu0
        %2057 = vmatprep.mubr.bf16.mxu0 0
        %2058 = vmatmul.mubr.bf16.gmra.mrb[0].mxu0 %v1968
        %v2059 = vpop.f32.mrb[0].mxu0
        %v2060 = vadd.f32 0.0, %v2059
        %v2061 = vpop.f32.mrb[0].mxu0
        %v2062 = vpop.f32.mrb[0].mxu0
        %v2063 = vadd.f32 0.0, %v2062
        %v2064 = vpop.f32.mrb[0].mxu0
        %2065 = vmatprep.mubr.bf16.mxu0 0
        %2066 = vmatmul.mubr.bf16.gmra.mrb[0].mxu0 %v1971
        %v2067 = vpop.f32.mrb[0].mxu0
        %v2068 = vadd.f32 0.0, %v2067
        %v2069 = vpop.f32.mrb[0].mxu0
        %v2070 = vpop.f32.mrb[0].mxu0
        %v2071 = vadd.f32 0.0, %v2070
        %v2072 = vpop.f32.mrb[0].mxu0
        %2073 = vmatprep.mubr.bf16.mxu0 0
        %2074 = vmatmul.mubr.bf16.gmra.mrb[0].mxu0 %v1974
        %v2075 = vpop.f32.mrb[0].mxu0
        %v2076 = vadd.f32 0.0, %v2075
        %v2077 = vpop.f32.mrb[0].mxu0
        %v2078 = vpop.f32.mrb[0].mxu0
        %v2079 = vadd.f32 0.0, %v2078
        %v2080 = vpop.f32.mrb[0].mxu0
        %2081 = vmatprep.mubr.bf16.mxu0 0
        %2082 = vmatmul.mubr.bf16.gmra.mrb[0].mxu0 %v1977
        %v2083 = vpop.f32.mrb[0].mxu0
        %v2084 = vadd.f32 0.0, %v2083
        %v2085 = vpop.f32.mrb[0].mxu0
        %v2086 = vpop.f32.mrb[0].mxu0
        %v2087 = vadd.f32 0.0, %v2086
        %v2088 = vpop.f32.mrb[0].mxu0
        %2089 = vmatprep.mubr.bf16.mxu0 0
        %2090 = vmatmul.mubr.bf16.gmra.mrb[0].mxu0 %v1980
        %v2091 = vpop.f32.mrb[0].mxu0
        %v2092 = vadd.f32 0.0, %v2091
        %v2093 = vpop.f32.mrb[0].mxu0
        %v2094 = vpop.f32.mrb[0].mxu0
        %v2095 = vadd.f32 0.0, %v2094
        %v2096 = vpop.f32.mrb[0].mxu0
        %2097 = vmatprep.mubr.bf16.mxu0 0
        %2098 = vmatmul.mubr.bf16.gmra.mrb[0].mxu0 %v1983
        %v2099 = vpop.f32.mrb[0].mxu0
        %v2100 = vadd.f32 0.0, %v2099
        %v2101 = vpop.f32.mrb[0].mxu0
        %v2102 = vpop.f32.mrb[0].mxu0
        %v2103 = vadd.f32 0.0, %v2102
        %v2104 = vpop.f32.mrb[0].mxu0
        %2105 = vdwg.mxu0
        %v2106 = vsel %vm698, %v2044, -inf
        %v2107 = vsel %vm699, %v2047, -inf
        %v2108 = vsel %vm700, %v2052, -inf
        %v2109 = vsel %vm701, %v2055, -inf
        %v2110 = vsel %vm702, %v2060, -inf
        %v2111 = vsel %vm703, %v2063, -inf
        %v2112 = vsel %vm704, %v2068, -inf
        %v2113 = vsel %vm705, %v2071, -inf
        %v2114 = vsel %vm706, %v2076, -inf
        %v2115 = vsel %vm707, %v2079, -inf
        %v2116 = vsel %vm708, %v2084, -inf
        %v2117 = vsel %vm709, %v2087, -inf
        %v2118 = vsel %vm710, %v2092, -inf
        %v2119 = vsel %vm711, %v2095, -inf
        %v2120 = vsel %vm712, %v2100, -inf
        %v2121 = vsel %vm713, %v2103, -inf
        %2122 = vmax.xlane.f32.xlu0 %v2106
        %v2123 = vpop.xlane.xlu0 %2122
        %2124 = vmax.xlane.f32.xlu0 %v2107
        %v2125 = vpop.xlane.xlu0 %2124
        %2126 = vmax.xlane.f32.xlu0 %v2108
        %v2127 = vpop.xlane.xlu0 %2126
        %2128 = vmax.xlane.f32.xlu0 %v2109
        %v2129 = vpop.xlane.xlu0 %2128
        %2130 = vmax.xlane.f32.xlu0 %v2110
        %v2131 = vpop.xlane.xlu0 %2130
        %2132 = vmax.xlane.f32.xlu0 %v2111
        %v2133 = vpop.xlane.xlu0 %2132
        %2134 = vmax.xlane.f32.xlu0 %v2112
        %v2135 = vpop.xlane.xlu0 %2134
        %2136 = vmax.xlane.f32.xlu0 %v2113
        %v2137 = vpop.xlane.xlu0 %2136
        %2138 = vmax.xlane.f32.xlu0 %v2114
        %v2139 = vpop.xlane.xlu0 %2138
        %2140 = vmax.xlane.f32.xlu0 %v2115
        %v2141 = vpop.xlane.xlu0 %2140
        %2142 = vmax.xlane.f32.xlu0 %v2116
        %v2143 = vpop.xlane.xlu0 %2142
        %2144 = vmax.xlane.f32.xlu0 %v2117
        %v2145 = vpop.xlane.xlu0 %2144
        %2146 = vmax.xlane.f32.xlu0 %v2118
        %v2147 = vpop.xlane.xlu0 %2146
        %2148 = vmax.xlane.f32.xlu0 %v2119
        %v2149 = vpop.xlane.xlu0 %2148
        %2150 = vmax.xlane.f32.xlu0 %v2120
        %v2151 = vpop.xlane.xlu0 %2150
        %2152 = vmax.xlane.f32.xlu0 %v2121
        %v2153 = vpop.xlane.xlu0 %2152
        %v2154 = vsub.f32 %v2106, %v2123
        %v2155 = vsub.f32 %v2107, %v2125
        %v2156 = vsub.f32 %v2108, %v2127
        %v2157 = vsub.f32 %v2109, %v2129
        %v2158 = vsub.f32 %v2110, %v2131
        %v2159 = vsub.f32 %v2111, %v2133
        %v2160 = vsub.f32 %v2112, %v2135
        %v2161 = vsub.f32 %v2113, %v2137
        %v2162 = vsub.f32 %v2114, %v2139
        %v2163 = vsub.f32 %v2115, %v2141
        %v2164 = vsub.f32 %v2116, %v2143
        %v2165 = vsub.f32 %v2117, %v2145
        %v2166 = vsub.f32 %v2118, %v2147
        %v2167 = vsub.f32 %v2119, %v2149
        %v2168 = vsub.f32 %v2120, %v2151
        %v2169 = vsub.f32 %v2121, %v2153
        %v2170 = vmul.f32 %v2154, 1.442695
        %v2171 = vpow.pop %v2170
        %v2172 = vmul.f32 %v2155, 1.442695
        %v2173 = vpow.pop %v2172
        %v2174 = vmul.f32 %v2156, 1.442695
        %v2175 = vpow.pop %v2174
        %v2176 = vmul.f32 %v2157, 1.442695
        %v2177 = vpow.pop %v2176
        %v2178 = vmul.f32 %v2158, 1.442695
        %v2179 = vpow.pop %v2178
        %v2180 = vmul.f32 %v2159, 1.442695
        %v2181 = vpow.pop %v2180
        %v2182 = vmul.f32 %v2160, 1.442695
        %v2183 = vpow.pop %v2182
        %v2184 = vmul.f32 %v2161, 1.442695
        %v2185 = vpow.pop %v2184
        %v2186 = vmul.f32 %v2162, 1.442695
        %v2187 = vpow.pop %v2186
        %v2188 = vmul.f32 %v2163, 1.442695
        %v2189 = vpow.pop %v2188
        %v2190 = vmul.f32 %v2164, 1.442695
        %v2191 = vpow.pop %v2190
        %v2192 = vmul.f32 %v2165, 1.442695
        %v2193 = vpow.pop %v2192
        %v2194 = vmul.f32 %v2166, 1.442695
        %v2195 = vpow.pop %v2194
        %v2196 = vmul.f32 %v2167, 1.442695
        %v2197 = vpow.pop %v2196
        %v2198 = vmul.f32 %v2168, 1.442695
        %v2199 = vpow.pop %v2198
        %v2200 = vmul.f32 %v2169, 1.442695
        %v2201 = vpow.pop %v2200
        %2202 = vadd.xlane.f32.xlu0 %v2171
        %v2203 = vpop.xlane.xlu0 %2202
        %2204 = vadd.xlane.f32.xlu0 %v2173
        %v2205 = vpop.xlane.xlu0 %2204
        %2206 = vadd.xlane.f32.xlu0 %v2175
        %v2207 = vpop.xlane.xlu0 %2206
        %2208 = vadd.xlane.f32.xlu0 %v2177
        %v2209 = vpop.xlane.xlu0 %2208
        %2210 = vadd.xlane.f32.xlu0 %v2179
        %v2211 = vpop.xlane.xlu0 %2210
        %2212 = vadd.xlane.f32.xlu0 %v2181
        %v2213 = vpop.xlane.xlu0 %2212
        %2214 = vadd.xlane.f32.xlu0 %v2183
        %v2215 = vpop.xlane.xlu0 %2214
        %2216 = vadd.xlane.f32.xlu0 %v2185
        %v2217 = vpop.xlane.xlu0 %2216
        %2218 = vadd.xlane.f32.xlu0 %v2187
        %v2219 = vpop.xlane.xlu0 %2218
        %2220 = vadd.xlane.f32.xlu0 %v2189
        %v2221 = vpop.xlane.xlu0 %2220
        %2222 = vadd.xlane.f32.xlu0 %v2191
        %v2223 = vpop.xlane.xlu0 %2222
        %2224 = vadd.xlane.f32.xlu0 %v2193
        %v2225 = vpop.xlane.xlu0 %2224
        %2226 = vadd.xlane.f32.xlu0 %v2195
        %v2227 = vpop.xlane.xlu0 %2226
        %2228 = vadd.xlane.f32.xlu0 %v2197
        %v2229 = vpop.xlane.xlu0 %2228
        %2230 = vadd.xlane.f32.xlu0 %v2199
        %v2231 = vpop.xlane.xlu0 %2230
        %2232 = vadd.xlane.f32.xlu0 %v2201
        %v2233 = vpop.xlane.xlu0 %2232
        %v2234 = vpack.c.bf16 %v2173, %v2171
        %v2235 = vpack.c.bf16 %v2177, %v2175
        %v2236 = vpack.c.bf16 %v2181, %v2179
        %v2237 = vpack.c.bf16 %v2185, %v2183
        %v2238 = vpack.c.bf16 %v2189, %v2187
        %v2239 = vpack.c.bf16 %v2193, %v2191
        %v2240 = vpack.c.bf16 %v2197, %v2195
        %v2241 = vpack.c.bf16 %v2201, %v2199
        %2242 = vrot.lane.b32.xlu0 %v730, 64
        %v2243 = vpop.permute.xlu0 %2242
        %2244 = vrot.lane.b32.xlu0 %v731, 64
        %v2245 = vpop.permute.xlu0 %2244
        %2246 = vrot.lane.b32.xlu0 %v732, 64
        %v2247 = vpop.permute.xlu0 %2246
        %2248 = vrot.lane.b32.xlu0 %v733, 64
        %v2249 = vpop.permute.xlu0 %2248
        %2250 = vrot.lane.b32.xlu0 %v734, 64
        %v2251 = vpop.permute.xlu0 %2250
        %2252 = vrot.lane.b32.xlu0 %v735, 64
        %v2253 = vpop.permute.xlu0 %2252
        %2254 = vrot.lane.b32.xlu0 %v736, 64
        %v2255 = vpop.permute.xlu0 %2254
        %2256 = vrot.lane.b32.xlu0 %v737, 64
        %v2257 = vpop.permute.xlu0 %2256
        %2266 = vmatprep.subr.bf16.mxu0 0
        %2267 = vmatpush1.bf16.msra.mxu0 %v2243
        %2268 = vmatprep.subr.bf16.mxu0 0
        %2269 = vmatpush1.bf16.msra.mxu0 %v2245
        %2270 = vmatprep.subr.bf16.mxu0 0
        %2271 = vmatpush1.bf16.msra.mxu0 %v2247
        %2272 = vmatprep.subr.bf16.mxu0 0
        %2273 = vmatpush1.bf16.msra.mxu0 %v2249
        %2274 = vmatprep.subr.bf16.mxu0 0
        %2275 = vmatpush1.bf16.msra.mxu0 %v2251
        %2276 = vmatprep.subr.bf16.mxu0 0
        %2277 = vmatpush1.bf16.msra.mxu0 %v2253
        %2278 = vmatprep.subr.bf16.mxu0 0
        %2279 = vmatpush1.bf16.msra.mxu0 %v2255
        %2280 = vmatprep.subr.bf16.mxu0 0
        %2281 = vmatpush1.bf16.msra.mxu0 %v2257
        %2282 = vmatprep.subr.bf16.mxu0 0
        %2283 = vmatpush1.bf16.msra.mxu0 0
        %2284 = vmatprep.subr.bf16.mxu0 0
        %2285 = vmatpush1.bf16.msra.mxu0 0
        %2286 = vmatprep.subr.bf16.mxu0 0
        %2287 = vmatpush1.bf16.msra.mxu0 0
        %2288 = vmatprep.subr.bf16.mxu0 0
        %2289 = vmatpush1.bf16.msra.mxu0 0
        %2290 = vmatprep.subr.bf16.mxu0 0
        %2291 = vmatpush1.bf16.msra.mxu0 0
        %2292 = vmatprep.subr.bf16.mxu0 0
        %2293 = vmatpush1.bf16.msra.mxu0 0
        %2294 = vmatprep.subr.bf16.mxu0 0
        %2295 = vmatpush1.bf16.msra.mxu0 0
        %2296 = vmatprep.subr.bf16.mxu0 0
        %2297 = vmatpush1.bf16.msra.mxu0 0
        %2298 = vmatprep.mubr.bf16.mxu0 0
        %2299 = vmatmul.mubr.bf16.gmra.mrb[0].mxu0 %v2234
        %v2300 = vpop.f32.mrb[0].mxu0
        %v2301 = vadd.f32 0.0, %v2300
        %v2302 = vpop.f32.mrb[0].mxu0
        %v2303 = vpop.f32.mrb[0].mxu0
        %v2304 = vadd.f32 0.0, %v2303
        %v2305 = vpop.f32.mrb[0].mxu0
        %2306 = vmatprep.mubr.bf16.mxu0 0
        %2307 = vmatmul.mubr.bf16.gmra.mrb[0].mxu0 %v2235
        %v2308 = vpop.f32.mrb[0].mxu0
        %v2309 = vadd.f32 0.0, %v2308
        %v2310 = vpop.f32.mrb[0].mxu0
        %v2311 = vpop.f32.mrb[0].mxu0
        %v2312 = vadd.f32 0.0, %v2311
        %v2313 = vpop.f32.mrb[0].mxu0
        %2314 = vmatprep.mubr.bf16.mxu0 0
        %2315 = vmatmul.mubr.bf16.gmra.mrb[0].mxu0 %v2236
        %v2316 = vpop.f32.mrb[0].mxu0
        %v2317 = vadd.f32 0.0, %v2316
        %v2318 = vpop.f32.mrb[0].mxu0
        %v2319 = vpop.f32.mrb[0].mxu0
        %v2320 = vadd.f32 0.0, %v2319
        %v2321 = vpop.f32.mrb[0].mxu0
        %2322 = vmatprep.mubr.bf16.mxu0 0
        %2323 = vmatmul.mubr.bf16.gmra.mrb[0].mxu0 %v2237
        %v2324 = vpop.f32.mrb[0].mxu0
        %v2325 = vadd.f32 0.0, %v2324
        %v2326 = vpop.f32.mrb[0].mxu0
        %v2327 = vpop.f32.mrb[0].mxu0
        %v2328 = vadd.f32 0.0, %v2327
        %v2329 = vpop.f32.mrb[0].mxu0
        %2330 = vmatprep.mubr.bf16.mxu0 0
        %2331 = vmatmul.mubr.bf16.gmra.mrb[0].mxu0 %v2238
        %v2332 = vpop.f32.mrb[0].mxu0
        %v2333 = vadd.f32 0.0, %v2332
        %v2334 = vpop.f32.mrb[0].mxu0
        %v2335 = vpop.f32.mrb[0].mxu0
        %v2336 = vadd.f32 0.0, %v2335
        %v2337 = vpop.f32.mrb[0].mxu0
        %2338 = vmatprep.mubr.bf16.mxu0 0
        %2339 = vmatmul.mubr.bf16.gmra.mrb[0].mxu0 %v2239
        %v2340 = vpop.f32.mrb[0].mxu0
        %v2341 = vadd.f32 0.0, %v2340
        %v2342 = vpop.f32.mrb[0].mxu0
        %v2343 = vpop.f32.mrb[0].mxu0
        %v2344 = vadd.f32 0.0, %v2343
        %v2345 = vpop.f32.mrb[0].mxu0
        %2346 = vmatprep.mubr.bf16.mxu0 0
        %2347 = vmatmul.mubr.bf16.gmra.mrb[0].mxu0 %v2240
        %v2348 = vpop.f32.mrb[0].mxu0
        %v2349 = vadd.f32 0.0, %v2348
        %v2350 = vpop.f32.mrb[0].mxu0
        %v2351 = vpop.f32.mrb[0].mxu0
        %v2352 = vadd.f32 0.0, %v2351
        %v2353 = vpop.f32.mrb[0].mxu0
        %2354 = vmatprep.mubr.bf16.mxu0 0
        %2355 = vmatmul.mubr.bf16.gmra.mrb[0].mxu0 %v2241
        %v2356 = vpop.f32.mrb[0].mxu0
        %v2357 = vadd.f32 0.0, %v2356
        %v2358 = vpop.f32.mrb[0].mxu0
        %v2359 = vpop.f32.mrb[0].mxu0
        %v2360 = vadd.f32 0.0, %v2359
        %v2361 = vpop.f32.mrb[0].mxu0
        %2362 = vdwg.mxu0
        %v2363 = vrcp.pop %v2203
        %v2364 = vrcp.pop %v2205
        %v2365 = vrcp.pop %v2207
        %v2366 = vrcp.pop %v2209
        %v2367 = vrcp.pop %v2211
        %v2368 = vrcp.pop %v2213
        %v2369 = vrcp.pop %v2215
        %v2370 = vrcp.pop %v2217
        %v2371 = vrcp.pop %v2219
        %v2372 = vrcp.pop %v2221
        %v2373 = vrcp.pop %v2223
        %v2374 = vrcp.pop %v2225
        %v2375 = vrcp.pop %v2227
        %v2376 = vrcp.pop %v2229
        %v2377 = vrcp.pop %v2231
        %v2378 = vrcp.pop %v2233
        %v2379 = vmul.f32 %v2301, %v2363
        %v2380 = vmul.f32 %v2304, %v2364
        %v2381 = vmul.f32 %v2309, %v2365
        %v2382 = vmul.f32 %v2312, %v2366
        %v2383 = vmul.f32 %v2317, %v2367
        %v2384 = vmul.f32 %v2320, %v2368
        %v2385 = vmul.f32 %v2325, %v2369
        %v2386 = vmul.f32 %v2328, %v2370
        %v2387 = vmul.f32 %v2333, %v2371
        %v2388 = vmul.f32 %v2336, %v2372
        %v2389 = vmul.f32 %v2341, %v2373
        %v2390 = vmul.f32 %v2344, %v2374
        %v2391 = vmul.f32 %v2349, %v2375
        %v2392 = vmul.f32 %v2352, %v2376
        %v2393 = vmul.f32 %v2357, %v2377
        %v2394 = vmul.f32 %v2360, %v2378
        %v2395 = vpack.c.bf16 %v2380, %v2379
        %v2396 = vpack.c.bf16 %v2382, %v2381
        %v2397 = vpack.c.bf16 %v2384, %v2383
        %v2398 = vpack.c.bf16 %v2386, %v2385
        %v2399 = vpack.c.bf16 %v2388, %v2387
        %v2400 = vpack.c.bf16 %v2390, %v2389
        %v2401 = vpack.c.bf16 %v2392, %v2391
        %v2402 = vpack.c.bf16 %v2394, %v2393
        %v2403 = vld [vmem:[%s2 + $0x20] sm:$0xf]
        %v2404 = vld [vmem:[%s2 + $0x24] sm:$0xf]
        %v2405 = vld [vmem:[%s2 + $0x28] sm:$0xf]
        %v2406 = vld [vmem:[%s2 + $0x2c] sm:$0xf]
        %v2411 = vunpack.c.l.b16 %v2403
        %v2412 = vunpack.c.l.b16 %v2404
        %v2413 = vunpack.c.l.b16 %v2405
        %v2414 = vunpack.c.l.b16 %v2406
        %v2415 = vpack.c.b16 %v2412, %v2411
        %v2416 = vpack.c.b16 %v2414, %v2413
        %v2420 = vsel %vm738, %v2395, 0
        %v2423 = vsel %vm738, %v2396, 0
        %v2426 = vsel %vm738, %v2397, 0
        %v2429 = vsel %vm738, %v2398, 0
        %v2432 = vsel %vm738, %v2399, 0
        %v2435 = vsel %vm738, %v2400, 0
        %v2438 = vsel %vm738, %v2401, 0
        %v2441 = vsel %vm738, %v2402, 0
        %2443 = vmatprep.subr.bf16.mxu0 0
        %2444 = vmatpush1.bf16.msra.mxu0 %v2415
        %2445 = vmatprep.subr.bf16.mxu0 0
        %2446 = vmatpush1.bf16.msra.mxu0 %v2416
        %2447 = vmatprep.subr.bf16.mxu0 0
        %2448 = vmatpush1.bf16.msra.mxu0 0
        %2449 = vmatprep.subr.bf16.mxu0 0
        %2450 = vmatpush1.bf16.msra.mxu0 0
        %2451 = vmatprep.subr.bf16.mxu0 0
        %2452 = vmatpush1.bf16.msra.mxu0 0
        %2453 = vmatprep.subr.bf16.mxu0 0
        %2454 = vmatpush1.bf16.msra.mxu0 0
        %2455 = vmatprep.subr.bf16.mxu0 0
        %2456 = vmatpush1.bf16.msra.mxu0 0
        %2457 = vmatprep.subr.bf16.mxu0 0
        %2458 = vmatpush1.bf16.msra.mxu0 0
        %2459 = vmatprep.subr.bf16.mxu0 0
        %2460 = vmatpush1.bf16.msra.mxu0 0
        %2461 = vmatprep.subr.bf16.mxu0 0
        %2462 = vmatpush1.bf16.msra.mxu0 0
        %2463 = vmatprep.subr.bf16.mxu0 0
        %2464 = vmatpush1.bf16.msra.mxu0 0
        %2465 = vmatprep.subr.bf16.mxu0 0
        %2466 = vmatpush1.bf16.msra.mxu0 0
        %2467 = vmatprep.subr.bf16.mxu0 0
        %2468 = vmatpush1.bf16.msra.mxu0 0
        %2469 = vmatprep.subr.bf16.mxu0 0
        %2470 = vmatpush1.bf16.msra.mxu0 0
        %2471 = vmatprep.subr.bf16.mxu0 0
        %2472 = vmatpush1.bf16.msra.mxu0 0
        %2473 = vmatprep.subr.bf16.mxu0 0
        %2474 = vmatpush1.bf16.msra.mxu0 0
        %2475 = vmatprep.mubr.bf16.mxu0 0
        %2476 = vmatmul.mubr.bf16.gmra.mrb[0].mxu0 %v2420
        %v2477 = vpop.f32.mrb[0].mxu0
        %v2478 = vadd.f32 0.0, %v2477
        %v2479 = vpop.f32.mrb[0].mxu0
        %v2480 = vpop.f32.mrb[0].mxu0
        %v2481 = vadd.f32 0.0, %v2480
        %v2482 = vpop.f32.mrb[0].mxu0
        %2483 = vmatprep.mubr.bf16.mxu0 0
        %2484 = vmatmul.mubr.bf16.gmra.mrb[0].mxu0 %v2423
        %v2485 = vpop.f32.mrb[0].mxu0
        %v2486 = vadd.f32 0.0, %v2485
        %v2487 = vpop.f32.mrb[0].mxu0
        %v2488 = vpop.f32.mrb[0].mxu0
        %v2489 = vadd.f32 0.0, %v2488
        %v2490 = vpop.f32.mrb[0].mxu0
        %2491 = vmatprep.mubr.bf16.mxu0 0
        %2492 = vmatmul.mubr.bf16.gmra.mrb[0].mxu0 %v2426
        %v2493 = vpop.f32.mrb[0].mxu0
        %v2494 = vadd.f32 0.0, %v2493
        %v2495 = vpop.f32.mrb[0].mxu0
        %v2496 = vpop.f32.mrb[0].mxu0
        %v2497 = vadd.f32 0.0, %v2496
        %v2498 = vpop.f32.mrb[0].mxu0
        %2499 = vmatprep.mubr.bf16.mxu0 0
        %2500 = vmatmul.mubr.bf16.gmra.mrb[0].mxu0 %v2429
        %v2501 = vpop.f32.mrb[0].mxu0
        %v2502 = vadd.f32 0.0, %v2501
        %v2503 = vpop.f32.mrb[0].mxu0
        %v2504 = vpop.f32.mrb[0].mxu0
        %v2505 = vadd.f32 0.0, %v2504
        %v2506 = vpop.f32.mrb[0].mxu0
        %2507 = vmatprep.mubr.bf16.mxu0 0
        %2508 = vmatmul.mubr.bf16.gmra.mrb[0].mxu0 %v2432
        %v2509 = vpop.f32.mrb[0].mxu0
        %v2510 = vadd.f32 0.0, %v2509
        %v2511 = vpop.f32.mrb[0].mxu0
        %v2512 = vpop.f32.mrb[0].mxu0
        %v2513 = vadd.f32 0.0, %v2512
        %v2514 = vpop.f32.mrb[0].mxu0
        %2515 = vmatprep.mubr.bf16.mxu0 0
        %2516 = vmatmul.mubr.bf16.gmra.mrb[0].mxu0 %v2435
        %v2517 = vpop.f32.mrb[0].mxu0
        %v2518 = vadd.f32 0.0, %v2517
        %v2519 = vpop.f32.mrb[0].mxu0
        %v2520 = vpop.f32.mrb[0].mxu0
        %v2521 = vadd.f32 0.0, %v2520
        %v2522 = vpop.f32.mrb[0].mxu0
        %2523 = vmatprep.mubr.bf16.mxu0 0
        %2524 = vmatmul.mubr.bf16.gmra.mrb[0].mxu0 %v2438
        %v2525 = vpop.f32.mrb[0].mxu0
        %v2526 = vadd.f32 0.0, %v2525
        %v2527 = vpop.f32.mrb[0].mxu0
        %v2528 = vpop.f32.mrb[0].mxu0
        %v2529 = vadd.f32 0.0, %v2528
        %v2530 = vpop.f32.mrb[0].mxu0
        %2531 = vmatprep.mubr.bf16.mxu0 0
        %2532 = vmatmul.mubr.bf16.gmra.mrb[0].mxu0 %v2441
        %v2533 = vpop.f32.mrb[0].mxu0
        %v2534 = vadd.f32 0.0, %v2533
        %v2535 = vpop.f32.mrb[0].mxu0
        %v2536 = vpop.f32.mrb[0].mxu0
        %v2537 = vadd.f32 0.0, %v2536
        %v2538 = vpop.f32.mrb[0].mxu0
        %2539 = vdwg.mxu0
        %v2540 = vadd.f32 %v1867, %v2478
        %v2541 = vadd.f32 %v1870, %v2481
        %v2542 = vadd.f32 %v1875, %v2486
        %v2543 = vadd.f32 %v1878, %v2489
        %v2544 = vadd.f32 %v1883, %v2494
        %v2545 = vadd.f32 %v1886, %v2497
        %v2546 = vadd.f32 %v1891, %v2502
        %v2547 = vadd.f32 %v1894, %v2505
        %v2548 = vadd.f32 %v1899, %v2510
        %v2549 = vadd.f32 %v1902, %v2513
        %v2550 = vadd.f32 %v1907, %v2518
        %v2551 = vadd.f32 %v1910, %v2521
        %v2552 = vadd.f32 %v1915, %v2526
        %v2553 = vadd.f32 %v1918, %v2529
        %v2554 = vadd.f32 %v1923, %v2534
        %v2555 = vadd.f32 %v1926, %v2537
        %2556 = vrot.lane.b32.xlu0 %v714, 32
        %v2557 = vpop.permute.xlu0 %2556
        %2558 = vrot.lane.b32.xlu0 %v715, 32
        %v2559 = vpop.permute.xlu0 %2558
        %2560 = vrot.lane.b32.xlu0 %v716, 32
        %v2561 = vpop.permute.xlu0 %2560
        %2562 = vrot.lane.b32.xlu0 %v717, 32
        %v2563 = vpop.permute.xlu0 %2562
        %2564 = vrot.lane.b32.xlu0 %v718, 32
        %v2565 = vpop.permute.xlu0 %2564
        %2566 = vrot.lane.b32.xlu0 %v719, 32
        %v2567 = vpop.permute.xlu0 %2566
        %2568 = vrot.lane.b32.xlu0 %v720, 32
        %v2569 = vpop.permute.xlu0 %2568
        %2570 = vrot.lane.b32.xlu0 %v721, 32
        %v2571 = vpop.permute.xlu0 %2570
        %2572 = vrot.lane.b32.xlu0 %v722, 32
        %v2573 = vpop.permute.xlu0 %2572
        %2574 = vrot.lane.b32.xlu0 %v723, 32
        %v2575 = vpop.permute.xlu0 %2574
        %2576 = vrot.lane.b32.xlu0 %v724, 32
        %v2577 = vpop.permute.xlu0 %2576
        %2578 = vrot.lane.b32.xlu0 %v725, 32
        %v2579 = vpop.permute.xlu0 %2578
        %2580 = vrot.lane.b32.xlu0 %v726, 32
        %v2581 = vpop.permute.xlu0 %2580
        %2582 = vrot.lane.b32.xlu0 %v727, 32
        %v2583 = vpop.permute.xlu0 %2582
        %2584 = vrot.lane.b32.xlu0 %v728, 32
        %v2585 = vpop.permute.xlu0 %2584
        %2586 = vrot.lane.b32.xlu0 %v729, 32
        %v2587 = vpop.permute.xlu0 %2586
        %v2589 = vsel %vm738, %v2557, 0
        %v2592 = vsel %vm738, %v2559, 0
        %v2595 = vsel %vm738, %v2561, 0
        %v2598 = vsel %vm738, %v2563, 0
        %v2601 = vsel %vm738, %v2565, 0
        %v2604 = vsel %vm738, %v2567, 0
        %v2607 = vsel %vm738, %v2569, 0
        %v2610 = vsel %vm738, %v2571, 0
        %v2613 = vsel %vm738, %v2573, 0
        %v2616 = vsel %vm738, %v2575, 0
        %v2619 = vsel %vm738, %v2577, 0
        %v2622 = vsel %vm738, %v2579, 0
        %v2625 = vsel %vm738, %v2581, 0
        %v2628 = vsel %vm738, %v2583, 0
        %v2631 = vsel %vm738, %v2585, 0
        %v2634 = vsel %vm738, %v2587, 0
        %2636 = vmatprep.subr.bf16.mxu0 0
        %2637 = vmatpush1.bf16.xpose.msra.mxu0 %v2613
        %2638 = vmatprep.subr.bf16.mxu0 0
        %2639 = vmatpush1.bf16.xpose.msra.mxu0 %v2616
        %2640 = vmatprep.subr.bf16.mxu0 0
        %2641 = vmatpush1.bf16.xpose.msra.mxu0 %v2619
        %2642 = vmatprep.subr.bf16.mxu0 0
        %2643 = vmatpush1.bf16.xpose.msra.mxu0 %v2622
        %2644 = vmatprep.subr.bf16.mxu0 0
        %2645 = vmatpush1.bf16.xpose.msra.mxu0 %v2625
        %2646 = vmatprep.subr.bf16.mxu0 0
        %2647 = vmatpush1.bf16.xpose.msra.mxu0 %v2628
        %2648 = vmatprep.subr.bf16.mxu0 0
        %2649 = vmatpush1.bf16.xpose.msra.mxu0 %v2631
        %2650 = vmatprep.subr.bf16.mxu0 0
        %2651 = vmatpush1.bf16.xpose.msra.mxu0 %v2634
        %2652 = vmatprep.subr.bf16.mxu0 0
        %2653 = vmatpush1.bf16.xpose.msra.mxu0 0
        %2654 = vmatprep.subr.bf16.mxu0 0
        %2655 = vmatpush1.bf16.xpose.msra.mxu0 0
        %2656 = vmatprep.subr.bf16.mxu0 0
        %2657 = vmatpush1.bf16.xpose.msra.mxu0 0
        %2658 = vmatprep.subr.bf16.mxu0 0
        %2659 = vmatpush1.bf16.xpose.msra.mxu0 0
        %2660 = vmatprep.subr.bf16.mxu0 0
        %2661 = vmatpush1.bf16.xpose.msra.mxu0 0
        %2662 = vmatprep.subr.bf16.mxu0 0
        %2663 = vmatpush1.bf16.xpose.msra.mxu0 0
        %2664 = vmatprep.subr.bf16.mxu0 0
        %2665 = vmatpush1.bf16.xpose.msra.mxu0 0
        %2666 = vmatprep.subr.bf16.mxu0 0
        %2667 = vmatpush1.bf16.xpose.msra.mxu0 0
        %2668 = vmatprep.mubr.bf16.mxu0 0
        %2669 = vmatmul.mubr.bf16.gmra.mrb[0].mxu0 %v2589
        %v2670 = vpop.f32.mrb[0].mxu0
        %v2671 = vadd.f32 0.0, %v2670
        %v2672 = vpop.f32.mrb[0].mxu0
        %v2673 = vpop.f32.mrb[0].mxu0
        %v2674 = vadd.f32 0.0, %v2673
        %v2675 = vpop.f32.mrb[0].mxu0
        %2676 = vmatprep.mubr.bf16.mxu0 0
        %2677 = vmatmul.mubr.bf16.gmra.mrb[0].mxu0 %v2592
        %v2678 = vpop.f32.mrb[0].mxu0
        %v2679 = vadd.f32 0.0, %v2678
        %v2680 = vpop.f32.mrb[0].mxu0
        %v2681 = vpop.f32.mrb[0].mxu0
        %v2682 = vadd.f32 0.0, %v2681
        %v2683 = vpop.f32.mrb[0].mxu0
        %2684 = vmatprep.mubr.bf16.mxu0 0
        %2685 = vmatmul.mubr.bf16.gmra.mrb[0].mxu0 %v2595
        %v2686 = vpop.f32.mrb[0].mxu0
        %v2687 = vadd.f32 0.0, %v2686
        %v2688 = vpop.f32.mrb[0].mxu0
        %v2689 = vpop.f32.mrb[0].mxu0
        %v2690 = vadd.f32 0.0, %v2689
        %v2691 = vpop.f32.mrb[0].mxu0
        %2692 = vmatprep.mubr.bf16.mxu0 0
        %2693 = vmatmul.mubr.bf16.gmra.mrb[0].mxu0 %v2598
        %v2694 = vpop.f32.mrb[0].mxu0
        %v2695 = vadd.f32 0.0, %v2694
        %v2696 = vpop.f32.mrb[0].mxu0
        %v2697 = vpop.f32.mrb[0].mxu0
        %v2698 = vadd.f32 0.0, %v2697
        %v2699 = vpop.f32.mrb[0].mxu0
        %2700 = vmatprep.mubr.bf16.mxu0 0
        %2701 = vmatmul.mubr.bf16.gmra.mrb[0].mxu0 %v2601
        %v2702 = vpop.f32.mrb[0].mxu0
        %v2703 = vadd.f32 0.0, %v2702
        %v2704 = vpop.f32.mrb[0].mxu0
        %v2705 = vpop.f32.mrb[0].mxu0
        %v2706 = vadd.f32 0.0, %v2705
        %v2707 = vpop.f32.mrb[0].mxu0
        %2708 = vmatprep.mubr.bf16.mxu0 0
        %2709 = vmatmul.mubr.bf16.gmra.mrb[0].mxu0 %v2604
        %v2710 = vpop.f32.mrb[0].mxu0
        %v2711 = vadd.f32 0.0, %v2710
        %v2712 = vpop.f32.mrb[0].mxu0
        %v2713 = vpop.f32.mrb[0].mxu0
        %v2714 = vadd.f32 0.0, %v2713
        %v2715 = vpop.f32.mrb[0].mxu0
        %2716 = vmatprep.mubr.bf16.mxu0 0
        %2717 = vmatmul.mubr.bf16.gmra.mrb[0].mxu0 %v2607
        %v2718 = vpop.f32.mrb[0].mxu0
        %v2719 = vadd.f32 0.0, %v2718
        %v2720 = vpop.f32.mrb[0].mxu0
        %v2721 = vpop.f32.mrb[0].mxu0
        %v2722 = vadd.f32 0.0, %v2721
        %v2723 = vpop.f32.mrb[0].mxu0
        %2724 = vmatprep.mubr.bf16.mxu0 0
        %2725 = vmatmul.mubr.bf16.gmra.mrb[0].mxu0 %v2610
        %v2726 = vpop.f32.mrb[0].mxu0
        %v2727 = vadd.f32 0.0, %v2726
        %v2728 = vpop.f32.mrb[0].mxu0
        %v2729 = vpop.f32.mrb[0].mxu0
        %v2730 = vadd.f32 0.0, %v2729
        %v2731 = vpop.f32.mrb[0].mxu0
        %2732 = vdwg.mxu0
        %v2733 = vsel %vm698, %v2671, -inf
        %v2734 = vsel %vm699, %v2674, -inf
        %v2735 = vsel %vm700, %v2679, -inf
        %v2736 = vsel %vm701, %v2682, -inf
        %v2737 = vsel %vm702, %v2687, -inf
        %v2738 = vsel %vm703, %v2690, -inf
        %v2739 = vsel %vm704, %v2695, -inf
        %v2740 = vsel %vm705, %v2698, -inf
        %v2741 = vsel %vm706, %v2703, -inf
        %v2742 = vsel %vm707, %v2706, -inf
        %v2743 = vsel %vm708, %v2711, -inf
        %v2744 = vsel %vm709, %v2714, -inf
        %v2745 = vsel %vm710, %v2719, -inf
        %v2746 = vsel %vm711, %v2722, -inf
        %v2747 = vsel %vm712, %v2727, -inf
        %v2748 = vsel %vm713, %v2730, -inf
        %2749 = vmax.xlane.f32.xlu0 %v2733
        %v2750 = vpop.xlane.xlu0 %2749
        %2751 = vmax.xlane.f32.xlu0 %v2734
        %v2752 = vpop.xlane.xlu0 %2751
        %2753 = vmax.xlane.f32.xlu0 %v2735
        %v2754 = vpop.xlane.xlu0 %2753
        %2755 = vmax.xlane.f32.xlu0 %v2736
        %v2756 = vpop.xlane.xlu0 %2755
        %2757 = vmax.xlane.f32.xlu0 %v2737
        %v2758 = vpop.xlane.xlu0 %2757
        %2759 = vmax.xlane.f32.xlu0 %v2738
        %v2760 = vpop.xlane.xlu0 %2759
        %2761 = vmax.xlane.f32.xlu0 %v2739
        %v2762 = vpop.xlane.xlu0 %2761
        %2763 = vmax.xlane.f32.xlu0 %v2740
        %v2764 = vpop.xlane.xlu0 %2763
        %2765 = vmax.xlane.f32.xlu0 %v2741
        %v2766 = vpop.xlane.xlu0 %2765
        %2767 = vmax.xlane.f32.xlu0 %v2742
        %v2768 = vpop.xlane.xlu0 %2767
        %2769 = vmax.xlane.f32.xlu0 %v2743
        %v2770 = vpop.xlane.xlu0 %2769
        %2771 = vmax.xlane.f32.xlu0 %v2744
        %v2772 = vpop.xlane.xlu0 %2771
        %2773 = vmax.xlane.f32.xlu0 %v2745
        %v2774 = vpop.xlane.xlu0 %2773
        %2775 = vmax.xlane.f32.xlu0 %v2746
        %v2776 = vpop.xlane.xlu0 %2775
        %2777 = vmax.xlane.f32.xlu0 %v2747
        %v2778 = vpop.xlane.xlu0 %2777
        %2779 = vmax.xlane.f32.xlu0 %v2748
        %v2780 = vpop.xlane.xlu0 %2779
        %v2781 = vsub.f32 %v2733, %v2750
        %v2782 = vsub.f32 %v2734, %v2752
        %v2783 = vsub.f32 %v2735, %v2754
        %v2784 = vsub.f32 %v2736, %v2756
        %v2785 = vsub.f32 %v2737, %v2758
        %v2786 = vsub.f32 %v2738, %v2760
        %v2787 = vsub.f32 %v2739, %v2762
        %v2788 = vsub.f32 %v2740, %v2764
        %v2789 = vsub.f32 %v2741, %v2766
        %v2790 = vsub.f32 %v2742, %v2768
        %v2791 = vsub.f32 %v2743, %v2770
        %v2792 = vsub.f32 %v2744, %v2772
        %v2793 = vsub.f32 %v2745, %v2774
        %v2794 = vsub.f32 %v2746, %v2776
        %v2795 = vsub.f32 %v2747, %v2778
        %v2796 = vsub.f32 %v2748, %v2780
        %v2797 = vmul.f32 %v2781, 1.442695
        %v2798 = vpow.pop %v2797
        %v2799 = vmul.f32 %v2782, 1.442695
        %v2800 = vpow.pop %v2799
        %v2801 = vmul.f32 %v2783, 1.442695
        %v2802 = vpow.pop %v2801
        %v2803 = vmul.f32 %v2784, 1.442695
        %v2804 = vpow.pop %v2803
        %v2805 = vmul.f32 %v2785, 1.442695
        %v2806 = vpow.pop %v2805
        %v2807 = vmul.f32 %v2786, 1.442695
        %v2808 = vpow.pop %v2807
        %v2809 = vmul.f32 %v2787, 1.442695
        %v2810 = vpow.pop %v2809
        %v2811 = vmul.f32 %v2788, 1.442695
        %v2812 = vpow.pop %v2811
        %v2813 = vmul.f32 %v2789, 1.442695
        %v2814 = vpow.pop %v2813
        %v2815 = vmul.f32 %v2790, 1.442695
        %v2816 = vpow.pop %v2815
        %v2817 = vmul.f32 %v2791, 1.442695
        %v2818 = vpow.pop %v2817
        %v2819 = vmul.f32 %v2792, 1.442695
        %v2820 = vpow.pop %v2819
        %v2821 = vmul.f32 %v2793, 1.442695
        %v2822 = vpow.pop %v2821
        %v2823 = vmul.f32 %v2794, 1.442695
        %v2824 = vpow.pop %v2823
        %v2825 = vmul.f32 %v2795, 1.442695
        %v2826 = vpow.pop %v2825
        %v2827 = vmul.f32 %v2796, 1.442695
        %v2828 = vpow.pop %v2827
        %2829 = vadd.xlane.f32.xlu0 %v2798
        %v2830 = vpop.xlane.xlu0 %2829
        %2831 = vadd.xlane.f32.xlu0 %v2800
        %v2832 = vpop.xlane.xlu0 %2831
        %2833 = vadd.xlane.f32.xlu0 %v2802
        %v2834 = vpop.xlane.xlu0 %2833
        %2835 = vadd.xlane.f32.xlu0 %v2804
        %v2836 = vpop.xlane.xlu0 %2835
        %2837 = vadd.xlane.f32.xlu0 %v2806
        %v2838 = vpop.xlane.xlu0 %2837
        %2839 = vadd.xlane.f32.xlu0 %v2808
        %v2840 = vpop.xlane.xlu0 %2839
        %2841 = vadd.xlane.f32.xlu0 %v2810
        %v2842 = vpop.xlane.xlu0 %2841
        %2843 = vadd.xlane.f32.xlu0 %v2812
        %v2844 = vpop.xlane.xlu0 %2843
        %2845 = vadd.xlane.f32.xlu0 %v2814
        %v2846 = vpop.xlane.xlu0 %2845
        %2847 = vadd.xlane.f32.xlu0 %v2816
        %v2848 = vpop.xlane.xlu0 %2847
        %2849 = vadd.xlane.f32.xlu0 %v2818
        %v2850 = vpop.xlane.xlu0 %2849
        %2851 = vadd.xlane.f32.xlu0 %v2820
        %v2852 = vpop.xlane.xlu0 %2851
        %2853 = vadd.xlane.f32.xlu0 %v2822
        %v2854 = vpop.xlane.xlu0 %2853
        %2855 = vadd.xlane.f32.xlu0 %v2824
        %v2856 = vpop.xlane.xlu0 %2855
        %2857 = vadd.xlane.f32.xlu0 %v2826
        %v2858 = vpop.xlane.xlu0 %2857
        %2859 = vadd.xlane.f32.xlu0 %v2828
        %v2860 = vpop.xlane.xlu0 %2859
        %v2861 = vpack.c.bf16 %v2800, %v2798
        %v2862 = vpack.c.bf16 %v2804, %v2802
        %v2863 = vpack.c.bf16 %v2808, %v2806
        %v2864 = vpack.c.bf16 %v2812, %v2810
        %v2865 = vpack.c.bf16 %v2816, %v2814
        %v2866 = vpack.c.bf16 %v2820, %v2818
        %v2867 = vpack.c.bf16 %v2824, %v2822
        %v2868 = vpack.c.bf16 %v2828, %v2826
        %2869 = vrot.lane.b32.xlu0 %v730, 32
        %v2870 = vpop.permute.xlu0 %2869
        %2871 = vrot.lane.b32.xlu0 %v731, 32
        %v2872 = vpop.permute.xlu0 %2871
        %2873 = vrot.lane.b32.xlu0 %v732, 32
        %v2874 = vpop.permute.xlu0 %2873
        %2875 = vrot.lane.b32.xlu0 %v733, 32
        %v2876 = vpop.permute.xlu0 %2875
        %2877 = vrot.lane.b32.xlu0 %v734, 32
        %v2878 = vpop.permute.xlu0 %2877
        %2879 = vrot.lane.b32.xlu0 %v735, 32
        %v2880 = vpop.permute.xlu0 %2879
        %2881 = vrot.lane.b32.xlu0 %v736, 32
        %v2882 = vpop.permute.xlu0 %2881
        %2883 = vrot.lane.b32.xlu0 %v737, 32
        %v2884 = vpop.permute.xlu0 %2883
        %2893 = vmatprep.subr.bf16.mxu0 0
        %2894 = vmatpush1.bf16.msra.mxu0 %v2870
        %2895 = vmatprep.subr.bf16.mxu0 0
        %2896 = vmatpush1.bf16.msra.mxu0 %v2872
        %2897 = vmatprep.subr.bf16.mxu0 0
        %2898 = vmatpush1.bf16.msra.mxu0 %v2874
        %2899 = vmatprep.subr.bf16.mxu0 0
        %2900 = vmatpush1.bf16.msra.mxu0 %v2876
        %2901 = vmatprep.subr.bf16.mxu0 0
        %2902 = vmatpush1.bf16.msra.mxu0 %v2878
        %2903 = vmatprep.subr.bf16.mxu0 0
        %2904 = vmatpush1.bf16.msra.mxu0 %v2880
        %2905 = vmatprep.subr.bf16.mxu0 0
        %2906 = vmatpush1.bf16.msra.mxu0 %v2882
        %2907 = vmatprep.subr.bf16.mxu0 0
        %2908 = vmatpush1.bf16.msra.mxu0 %v2884
        %2909 = vmatprep.subr.bf16.mxu0 0
        %2910 = vmatpush1.bf16.msra.mxu0 0
        %2911 = vmatprep.subr.bf16.mxu0 0
        %2912 = vmatpush1.bf16.msra.mxu0 0
        %2913 = vmatprep.subr.bf16.mxu0 0
        %2914 = vmatpush1.bf16.msra.mxu0 0
        %2915 = vmatprep.subr.bf16.mxu0 0
        %2916 = vmatpush1.bf16.msra.mxu0 0
        %2917 = vmatprep.subr.bf16.mxu0 0
        %2918 = vmatpush1.bf16.msra.mxu0 0
        %2919 = vmatprep.subr.bf16.mxu0 0
        %2920 = vmatpush1.bf16.msra.mxu0 0
        %2921 = vmatprep.subr.bf16.mxu0 0
        %2922 = vmatpush1.bf16.msra.mxu0 0
        %2923 = vmatprep.subr.bf16.mxu0 0
        %2924 = vmatpush1.bf16.msra.mxu0 0
        %2925 = vmatprep.mubr.bf16.mxu0 0
        %2926 = vmatmul.mubr.bf16.gmra.mrb[0].mxu0 %v2861
        %v2927 = vpop.f32.mrb[0].mxu0
        %v2928 = vadd.f32 0.0, %v2927
        %v2929 = vpop.f32.mrb[0].mxu0
        %v2930 = vpop.f32.mrb[0].mxu0
        %v2931 = vadd.f32 0.0, %v2930
        %v2932 = vpop.f32.mrb[0].mxu0
        %2933 = vmatprep.mubr.bf16.mxu0 0
        %2934 = vmatmul.mubr.bf16.gmra.mrb[0].mxu0 %v2862
        %v2935 = vpop.f32.mrb[0].mxu0
        %v2936 = vadd.f32 0.0, %v2935
        %v2937 = vpop.f32.mrb[0].mxu0
        %v2938 = vpop.f32.mrb[0].mxu0
        %v2939 = vadd.f32 0.0, %v2938
        %v2940 = vpop.f32.mrb[0].mxu0
        %2941 = vmatprep.mubr.bf16.mxu0 0
        %2942 = vmatmul.mubr.bf16.gmra.mrb[0].mxu0 %v2863
        %v2943 = vpop.f32.mrb[0].mxu0
        %v2944 = vadd.f32 0.0, %v2943
        %v2945 = vpop.f32.mrb[0].mxu0
        %v2946 = vpop.f32.mrb[0].mxu0
        %v2947 = vadd.f32 0.0, %v2946
        %v2948 = vpop.f32.mrb[0].mxu0
        %2949 = vmatprep.mubr.bf16.mxu0 0
        %2950 = vmatmul.mubr.bf16.gmra.mrb[0].mxu0 %v2864
        %v2951 = vpop.f32.mrb[0].mxu0
        %v2952 = vadd.f32 0.0, %v2951
        %v2953 = vpop.f32.mrb[0].mxu0
        %v2954 = vpop.f32.mrb[0].mxu0
        %v2955 = vadd.f32 0.0, %v2954
        %v2956 = vpop.f32.mrb[0].mxu0
        %2957 = vmatprep.mubr.bf16.mxu0 0
        %2958 = vmatmul.mubr.bf16.gmra.mrb[0].mxu0 %v2865
        %v2959 = vpop.f32.mrb[0].mxu0
        %v2960 = vadd.f32 0.0, %v2959
        %v2961 = vpop.f32.mrb[0].mxu0
        %v2962 = vpop.f32.mrb[0].mxu0
        %v2963 = vadd.f32 0.0, %v2962
        %v2964 = vpop.f32.mrb[0].mxu0
        %2965 = vmatprep.mubr.bf16.mxu0 0
        %2966 = vmatmul.mubr.bf16.gmra.mrb[0].mxu0 %v2866
        %v2967 = vpop.f32.mrb[0].mxu0
        %v2968 = vadd.f32 0.0, %v2967
        %v2969 = vpop.f32.mrb[0].mxu0
        %v2970 = vpop.f32.mrb[0].mxu0
        %v2971 = vadd.f32 0.0, %v2970
        %v2972 = vpop.f32.mrb[0].mxu0
        %2973 = vmatprep.mubr.bf16.mxu0 0
        %2974 = vmatmul.mubr.bf16.gmra.mrb[0].mxu0 %v2867
        %v2975 = vpop.f32.mrb[0].mxu0
        %v2976 = vadd.f32 0.0, %v2975
        %v2977 = vpop.f32.mrb[0].mxu0
        %v2978 = vpop.f32.mrb[0].mxu0
        %v2979 = vadd.f32 0.0, %v2978
        %v2980 = vpop.f32.mrb[0].mxu0
        %2981 = vmatprep.mubr.bf16.mxu0 0
        %2982 = vmatmul.mubr.bf16.gmra.mrb[0].mxu0 %v2868
        %v2983 = vpop.f32.mrb[0].mxu0
        %v2984 = vadd.f32 0.0, %v2983
        %v2985 = vpop.f32.mrb[0].mxu0
        %v2986 = vpop.f32.mrb[0].mxu0
        %v2987 = vadd.f32 0.0, %v2986
        %v2988 = vpop.f32.mrb[0].mxu0
        %2989 = vdwg.mxu0
        %v2990 = vrcp.pop %v2830
        %v2991 = vrcp.pop %v2832
        %v2992 = vrcp.pop %v2834
        %v2993 = vrcp.pop %v2836
        %v2994 = vrcp.pop %v2838
        %v2995 = vrcp.pop %v2840
        %v2996 = vrcp.pop %v2842
        %v2997 = vrcp.pop %v2844
        %v2998 = vrcp.pop %v2846
        %v2999 = vrcp.pop %v2848
        %v3000 = vrcp.pop %v2850
        %v3001 = vrcp.pop %v2852
        %v3002 = vrcp.pop %v2854
        %v3003 = vrcp.pop %v2856
        %v3004 = vrcp.pop %v2858
        %v3005 = vrcp.pop %v2860
        %v3006 = vmul.f32 %v2928, %v2990
        %v3007 = vmul.f32 %v2931, %v2991
        %v3008 = vmul.f32 %v2936, %v2992
        %v3009 = vmul.f32 %v2939, %v2993
        %v3010 = vmul.f32 %v2944, %v2994
        %v3011 = vmul.f32 %v2947, %v2995
        %v3012 = vmul.f32 %v2952, %v2996
        %v3013 = vmul.f32 %v2955, %v2997
        %v3014 = vmul.f32 %v2960, %v2998
        %v3015 = vmul.f32 %v2963, %v2999
        %v3016 = vmul.f32 %v2968, %v3000
        %v3017 = vmul.f32 %v2971, %v3001
        %v3018 = vmul.f32 %v2976, %v3002
        %v3019 = vmul.f32 %v2979, %v3003
        %v3020 = vmul.f32 %v2984, %v3004
        %v3021 = vmul.f32 %v2987, %v3005
        %v3022 = vpack.c.bf16 %v3007, %v3006
        %v3023 = vpack.c.bf16 %v3009, %v3008
        %v3024 = vpack.c.bf16 %v3011, %v3010
        %v3025 = vpack.c.bf16 %v3013, %v3012
        %v3026 = vpack.c.bf16 %v3015, %v3014
        %v3027 = vpack.c.bf16 %v3017, %v3016
        %v3028 = vpack.c.bf16 %v3019, %v3018
        %v3029 = vpack.c.bf16 %v3021, %v3020
        %v3030 = vld [vmem:[%s2 + $0x30] sm:$0xf]
        %v3031 = vld [vmem:[%s2 + $0x34] sm:$0xf]
        %v3032 = vld [vmem:[%s2 + $0x38] sm:$0xf]
        %v3033 = vld [vmem:[%s2 + $0x3c] sm:$0xf]
        %v3038 = vunpack.c.l.b16 %v3030
        %v3039 = vunpack.c.l.b16 %v3031
        %v3040 = vunpack.c.l.b16 %v3032
        %v3041 = vunpack.c.l.b16 %v3033
        %v3042 = vpack.c.b16 %v3039, %v3038
        %v3043 = vpack.c.b16 %v3041, %v3040
        %v3047 = vsel %vm738, %v3022, 0
        %v3050 = vsel %vm738, %v3023, 0
        %v3053 = vsel %vm738, %v3024, 0
        %v3056 = vsel %vm738, %v3025, 0
        %v3059 = vsel %vm738, %v3026, 0
        %v3062 = vsel %vm738, %v3027, 0
        %v3065 = vsel %vm738, %v3028, 0
        %v3068 = vsel %vm738, %v3029, 0
        %3070 = vmatprep.subr.bf16.mxu0 0
        %3071 = vmatpush1.bf16.msra.mxu0 %v3042
        %3072 = vmatprep.subr.bf16.mxu0 0
        %3073 = vmatpush1.bf16.msra.mxu0 %v3043
        %3074 = vmatprep.subr.bf16.mxu0 0
        %3075 = vmatpush1.bf16.msra.mxu0 0
        %3076 = vmatprep.subr.bf16.mxu0 0
        %3077 = vmatpush1.bf16.msra.mxu0 0
        %3078 = vmatprep.subr.bf16.mxu0 0
        %3079 = vmatpush1.bf16.msra.mxu0 0
        %3080 = vmatprep.subr.bf16.mxu0 0
        %3081 = vmatpush1.bf16.msra.mxu0 0
        %3082 = vmatprep.subr.bf16.mxu0 0
        %3083 = vmatpush1.bf16.msra.mxu0 0
        %3084 = vmatprep.subr.bf16.mxu0 0
        %3085 = vmatpush1.bf16.msra.mxu0 0
        %3086 = vmatprep.subr.bf16.mxu0 0
        %3087 = vmatpush1.bf16.msra.mxu0 0
        %3088 = vmatprep.subr.bf16.mxu0 0
        %3089 = vmatpush1.bf16.msra.mxu0 0
        %3090 = vmatprep.subr.bf16.mxu0 0
        %3091 = vmatpush1.bf16.msra.mxu0 0
        %3092 = vmatprep.subr.bf16.mxu0 0
        %3093 = vmatpush1.bf16.msra.mxu0 0
        %3094 = vmatprep.subr.bf16.mxu0 0
        %3095 = vmatpush1.bf16.msra.mxu0 0
        %3096 = vmatprep.subr.bf16.mxu0 0
        %3097 = vmatpush1.bf16.msra.mxu0 0
        %3098 = vmatprep.subr.bf16.mxu0 0
        %3099 = vmatpush1.bf16.msra.mxu0 0
        %3100 = vmatprep.subr.bf16.mxu0 0
        %3101 = vmatpush1.bf16.msra.mxu0 0
        %3102 = vmatprep.mubr.bf16.mxu0 0
        %3103 = vmatmul.mubr.bf16.gmra.mrb[0].mxu0 %v3047
        %v3104 = vpop.f32.mrb[0].mxu0
        %v3105 = vadd.f32 0.0, %v3104
        %v3106 = vpop.f32.mrb[0].mxu0
        %v3107 = vpop.f32.mrb[0].mxu0
        %v3108 = vadd.f32 0.0, %v3107
        %v3109 = vpop.f32.mrb[0].mxu0
        %3110 = vmatprep.mubr.bf16.mxu0 0
        %3111 = vmatmul.mubr.bf16.gmra.mrb[0].mxu0 %v3050
        %v3112 = vpop.f32.mrb[0].mxu0
        %v3113 = vadd.f32 0.0, %v3112
        %v3114 = vpop.f32.mrb[0].mxu0
        %v3115 = vpop.f32.mrb[0].mxu0
        %v3116 = vadd.f32 0.0, %v3115
        %v3117 = vpop.f32.mrb[0].mxu0
        %3118 = vmatprep.mubr.bf16.mxu0 0
        %3119 = vmatmul.mubr.bf16.gmra.mrb[0].mxu0 %v3053
        %v3120 = vpop.f32.mrb[0].mxu0
        %v3121 = vadd.f32 0.0, %v3120
        %v3122 = vpop.f32.mrb[0].mxu0
        %v3123 = vpop.f32.mrb[0].mxu0
        %v3124 = vadd.f32 0.0, %v3123
        %v3125 = vpop.f32.mrb[0].mxu0
        %3126 = vmatprep.mubr.bf16.mxu0 0
        %3127 = vmatmul.mubr.bf16.gmra.mrb[0].mxu0 %v3056
        %v3128 = vpop.f32.mrb[0].mxu0
        %v3129 = vadd.f32 0.0, %v3128
        %v3130 = vpop.f32.mrb[0].mxu0
        %v3131 = vpop.f32.mrb[0].mxu0
        %v3132 = vadd.f32 0.0, %v3131
        %v3133 = vpop.f32.mrb[0].mxu0
        %3134 = vmatprep.mubr.bf16.mxu0 0
        %3135 = vmatmul.mubr.bf16.gmra.mrb[0].mxu0 %v3059
        %v3136 = vpop.f32.mrb[0].mxu0
        %v3137 = vadd.f32 0.0, %v3136
        %v3138 = vpop.f32.mrb[0].mxu0
        %v3139 = vpop.f32.mrb[0].mxu0
        %v3140 = vadd.f32 0.0, %v3139
        %v3141 = vpop.f32.mrb[0].mxu0
        %3142 = vmatprep.mubr.bf16.mxu0 0
        %3143 = vmatmul.mubr.bf16.gmra.mrb[0].mxu0 %v3062
        %v3144 = vpop.f32.mrb[0].mxu0
        %v3145 = vadd.f32 0.0, %v3144
        %v3146 = vpop.f32.mrb[0].mxu0
        %v3147 = vpop.f32.mrb[0].mxu0
        %v3148 = vadd.f32 0.0, %v3147
        %v3149 = vpop.f32.mrb[0].mxu0
        %3150 = vmatprep.mubr.bf16.mxu0 0
        %3151 = vmatmul.mubr.bf16.gmra.mrb[0].mxu0 %v3065
        %v3152 = vpop.f32.mrb[0].mxu0
        %v3153 = vadd.f32 0.0, %v3152
        %v3154 = vpop.f32.mrb[0].mxu0
        %v3155 = vpop.f32.mrb[0].mxu0
        %v3156 = vadd.f32 0.0, %v3155
        %v3157 = vpop.f32.mrb[0].mxu0
        %3158 = vmatprep.mubr.bf16.mxu0 0
        %3159 = vmatmul.mubr.bf16.gmra.mrb[0].mxu0 %v3068
        %v3160 = vpop.f32.mrb[0].mxu0
        %v3161 = vadd.f32 0.0, %v3160
        %v3162 = vpop.f32.mrb[0].mxu0
        %v3163 = vpop.f32.mrb[0].mxu0
        %v3164 = vadd.f32 0.0, %v3163
        %v3165 = vpop.f32.mrb[0].mxu0
        %3166 = vdwg.mxu0
        %v3167 = vadd.f32 %v2540, %v3105
        %v3168 = vadd.f32 %v2541, %v3108
        %v3169 = vadd.f32 %v2542, %v3113
        %v3170 = vadd.f32 %v2543, %v3116
        %v3171 = vadd.f32 %v2544, %v3121
        %v3172 = vadd.f32 %v2545, %v3124
        %v3173 = vadd.f32 %v2546, %v3129
        %v3174 = vadd.f32 %v2547, %v3132
        %v3175 = vadd.f32 %v2548, %v3137
        %v3176 = vadd.f32 %v2549, %v3140
        %v3177 = vadd.f32 %v2550, %v3145
        %v3178 = vadd.f32 %v2551, %v3148
        %v3179 = vadd.f32 %v2552, %v3153
        %v3180 = vadd.f32 %v2553, %v3156
        %v3181 = vadd.f32 %v2554, %v3161
        %v3182 = vadd.f32 %v2555, %v3164
        %v3183 = vld [vmem:[%s3] sm:$0x1]
        %v3185 = vlaneseq
        %v3186 = vshrl.u32 %v3185, 7
        %v3187 = vsub.s32 0, %v3186
        %v3188 = vrot.slane %v3183, %v3187
        %v3190 = vadd.f32 %v3167, %v3188
        %v3191 = vadd.f32 %v3168, %v3188
        %v3192 = vadd.f32 %v3169, %v3188
        %v3193 = vadd.f32 %v3170, %v3188
        %v3194 = vadd.f32 %v3171, %v3188
        %v3195 = vadd.f32 %v3172, %v3188
        %v3196 = vadd.f32 %v3173, %v3188
        %v3197 = vadd.f32 %v3174, %v3188
        %v3198 = vadd.f32 %v3175, %v3188
        %v3199 = vadd.f32 %v3176, %v3188
        %v3200 = vadd.f32 %v3177, %v3188
        %v3201 = vadd.f32 %v3178, %v3188
        %v3202 = vadd.f32 %v3179, %v3188
        %v3203 = vadd.f32 %v3180, %v3188
        %v3204 = vadd.f32 %v3181, %v3188
        %v3205 = vadd.f32 %v3182, %v3188
        %3206 = vst [vmem:[%s190] sm:$0xff] %v3190
        %3207 = vst [vmem:[%s190 + $0x8] sm:$0xff] %v3191
        %3208 = vst [vmem:[%s190 + $0x10] sm:$0xff] %v3192
        %3209 = vst [vmem:[%s190 + $0x18] sm:$0xff] %v3193
        %3210 = vst [vmem:[%s190 + $0x20] sm:$0xff] %v3194
        %3211 = vst [vmem:[%s190 + $0x28] sm:$0xff] %v3195
        %3212 = vst [vmem:[%s190 + $0x30] sm:$0xff] %v3196
        %3213 = vst [vmem:[%s190 + $0x38] sm:$0xff] %v3197
        %3214 = vst [vmem:[%s190 + $0x40] sm:$0xff] %v3198
        %3215 = vst [vmem:[%s190 + $0x48] sm:$0xff] %v3199
        %3216 = vst [vmem:[%s190 + $0x50] sm:$0xff] %v3200
        %3217 = vst [vmem:[%s190 + $0x58] sm:$0xff] %v3201
        %3218 = vst [vmem:[%s190 + $0x60] sm:$0xff] %v3202
        %3219 = vst [vmem:[%s190 + $0x68] sm:$0xff] %v3203
        %3220 = vst [vmem:[%s190 + $0x70] sm:$0xff] %v3204
        %3221 = vst [vmem:[%s190 + $0x78] sm:$0xff] %v3205
        %s3222 = sand.u32 %s115, 1
        %s3223 = scalar_lea.sflag [#allocation4], %s3222
        %s3224 = sand.u32 %s115, 1
        %s3225 = smul.addr %s3224, 128
        %s3226 = scalar_lea.vmem [#allocation3], %s3225
        // Predicated region
        $region37: #{multi_head_attention.1} parent=35 // pred_check
          %p3227 = pneg %p125
        $region38: #{multi_head_attention.1} parent=35 // pred_check_branch
          %3229 = sbr.rel (%p3227) target = $region40
        $region39: #{multi_head_attention.1} parent=35 // pred_region
          %s3231 = ssub.s32 2048, 2048
          %3232 = vsyncadd %s3223, %s3231
          %s3233 = smul.addr %s18, 16
          %s3234 = smul.addr %s3233, 128
          %s3235 = scalar_lea.hbm %s4, %s3234
          %s3236 = sshll.u32 %s3226, 4
          %s3237 = int_to_ptr.vmem [resolvable:$true] %s3236
          %3242 = dma.vmem_to_hbm [thread:$0]  %s3237, 2048, %s3235, %s3223, 128, 128, 8
        $region40: #{multi_head_attention.1} parent=35 // pred_fallthru
          _
      $region36: #{multi_head_attention.1} parent=5 // pred_fallthru
        _
      %p3243 = scmp.le.s32.totalorder 2, %s13
      // Predicated region
      $region41: #{multi_head_attention.1} parent=5 // pred_check
        %p3244 = pneg %p3243
      $region42: #{multi_head_attention.1} parent=5 // pred_check_branch
        %3246 = sbr.rel (%p3244) target = $region44
      $region43: #{multi_head_attention.1} parent=5 // pred_region
        %s3247 = ssub.s32 %s13, 2
        // Predicated region
        $region45: #{multi_head_attention.1} parent=43 // pred_check
          %p3248 = pneg %p131
        $region46: #{multi_head_attention.1} parent=43 // pred_check_branch
          %3250 = sbr.rel (%p3248) target = $region48
        $region47: #{multi_head_attention.1} parent=43 // pred_region
          %s3251 = sand.u32 %s116, 1
          %s3252 = scalar_lea.sflag [#allocation4], %s3251
          %s3253 = sand.u32 %s116, 1
          %s3254 = smul.addr %s3253, 128
          %s3255 = scalar_lea.vmem [#allocation3], %s3254
          %3256 = dma.done %s3252, 2048
        $region48: #{multi_head_attention.1} parent=43 // pred_fallthru
          _
      $region44: #{multi_head_attention.1} parent=5 // pred_fallthru
        _
    $region6: #{multi_head_attention.1} parent=1 // loop_footer
      %s17 = sadd.s32 1, %s13
    $region7: #{multi_head_attention.1} parent=1 // loop_footer_branch
      %12 = sbr.rel target = $region3
    $region8: #{multi_head_attention.1} parent=1 // loop_exit
      _
    %3257 = vsyncpa [#allocation4], 1
    %s3258 = scalar_lea.sflag [#allocation4], 1
    %3259 = vsyncpa %s3258, 1

</llo_original>
